<compile_context>
chip_gen: v6e
topology: v6e:2x2x1
jax: 0.10.0
libtpu: 0.0.40
codegen_flags: <defaults>
</compile_context>

<pallas_src>
import functools

import jax
import jax.numpy as jnp
from jax.experimental import pallas as pl
from jax.experimental.pallas import tpu as pltpu

LN_EPS = 1e-5


# ----------------------------- shared math helpers (jnp; used in kernel & ref) ----

def _layernorm(x, g, b):
    mu = jnp.mean(x, axis=-1, keepdims=True)
    var = jnp.mean((x - mu) ** 2, axis=-1, keepdims=True)
    return (x - mu) * jax.lax.rsqrt(var + LN_EPS) * g + b


def _mish(x):
    # mish(x) = x * tanh(softplus(x)); numerically-stable softplus.
    sp = jnp.where(x > 20.0, x, jnp.log(1.0 + jnp.exp(jnp.minimum(x, 20.0))))
    return x * jnp.tanh(sp)


# ----------------------------- Pallas kernel --------------------------------------

def film_decoder_kernel(
    x_ref, mem_ref, t_ref,
    sa_wq, sa_bq, sa_wk, sa_bk, sa_wv, sa_bv, sa_wo, sa_bo,
    ca_wq, ca_bq, ca_wk, ca_bk, ca_wv, ca_bv, ca_wo, ca_bo,
    w1, b1, w2, b2,
    n1g, n1b, n2g, n2b, n3g, n3b,
    f1gw, f1gb, f1sw, f1sb,
    f2gw, f2gb, f2sw, f2sb,
    f3gw, f3gb, f3sw, f3sb,
    out_ref,
    *, nhead,
):
    TB, S, D = x_ref.shape
    M = mem_ref.shape[1]
    H = nhead
    hd = D // H

    x = x_ref[...]                                     # (TB, S, D) f32 residual stream
    memb = mem_ref[...].reshape(TB * M, D)             # bf16 (cast once in wrapper)

    # ---- FiLM at batch granularity (t is per-batch, not per-token).
    #      gain == (scale + 1): the +1 is pre-folded into the gain bias.
    tm = _mish(t_ref[...].reshape(TB, D)).astype(jnp.bfloat16)

    def film(gw, gb, sw, sb):
        gain = jnp.dot(tm, gw[...], preferred_element_type=jnp.float32) + gb[...]
        shift = jnp.dot(tm, sw[...], preferred_element_type=jnp.float32) + sb[...]
        return gain[:, None, :], shift[:, None, :]     # (TB, 1, D) -> broadcast on apply

    # ---- multi-head attention (eval mode, no masks).  Q scale pre-folded.
    #      Full-width lane-dense QKV / output projections; per-head work only
    #      for the hd-wide score and PV contractions.
    def mha(qn2, kv2, kv_len, wq, bq, wk, bk, wv, bv, wo, bo):
        q = jnp.dot(qn2, wq[...], preferred_element_type=jnp.float32) + bq[...]
        k = jnp.dot(kv2, wk[...], preferred_element_type=jnp.float32) + bk[...]
        v = jnp.dot(kv2, wv[...], preferred_element_type=jnp.float32) + bv[...]
        q3 = q.reshape(TB, S, D).astype(jnp.bfloat16)
        k3 = k.reshape(TB, kv_len, D).astype(jnp.bfloat16)
        v3 = v.reshape(TB, kv_len, D).astype(jnp.bfloat16)
        # TODO(synk): for long S/M, tile the kv axis with an online (flash-style)
        # softmax so the per-head (TB, S, kv) score tensor stays within the v7x
        # 64 MiB VMEM budget.
        heads = []
        for h in range(H):                             # static, small H
            lo = h * hd
            sc = jnp.einsum('bqe,bke->bqk', q3[:, :, lo:lo + hd],
                            k3[:, :, lo:lo + hd],
                            preferred_element_type=jnp.float32)
            sc = sc - jnp.max(sc, axis=-1, keepdims=True)
            e = jnp.exp(sc)
            # approx reciprocal => probabilities normalized to ~1e-3 relative;
            # fine for eval, revisit for training / tight-accuracy inference.
            pr = e * pl.reciprocal(jnp.sum(e, axis=-1, keepdims=True), approx=True)
            heads.append(jnp.einsum('bqk,bke->bqe', pr.astype(jnp.bfloat16),
                                    v3[:, :, lo:lo + hd],
                                    preferred_element_type=jnp.float32))
        o2 = jnp.concatenate(heads, axis=-1).reshape(TB * S, D).astype(jnp.bfloat16)
        return jnp.dot(o2, wo[...], preferred_element_type=jnp.float32) + bo[...]

    # ---- block 1: x = x + FiLM1_gain * SA(norm1(x)) + FiLM1_shift
    g, sh = film(f1gw, f1gb, f1sw, f1sb)
    xn = _layernorm(x.reshape(TB * S, D), n1g[...], n1b[...]).astype(jnp.bfloat16)
    y = mha(xn, xn, S, sa_wq, sa_bq, sa_wk, sa_bk, sa_wv, sa_bv, sa_wo, sa_bo)
    x = x + g * y.reshape(TB, S, D) + sh

    # ---- block 2: x = x + FiLM2_gain * MHA(norm2(x), memory) + FiLM2_shift
    g, sh = film(f2gw, f2gb, f2sw, f2sb)
    xn = _layernorm(x.reshape(TB * S, D), n2g[...], n2b[...]).astype(jnp.bfloat16)
    y = mha(xn, memb, M, ca_wq, ca_bq, ca_wk, ca_bk, ca_wv, ca_bv, ca_wo, ca_bo)
    x = x + g * y.reshape(TB, S, D) + sh

    # ---- block 3: x = x + FiLM3_gain * FFN(norm3(x)) + FiLM3_shift
    #      FFN chunked along dim_feedforward: the (tokens, FF) hidden never
    #      materializes; each chunk is a lane-dense (tokens, FC) tile.
    g, sh = film(f3gw, f3gb, f3sw, f3sb)
    xn = _layernorm(x.reshape(TB * S, D), n3g[...], n3b[...]).astype(jnp.bfloat16)
    n_chunks = w1.shape[0]
    if n_chunks == 1:
        hmid = jnp.maximum(
            jnp.dot(xn, w1[0], preferred_element_type=jnp.float32) + b1[0], 0.0)
        y = jnp.dot(hmid.astype(jnp.bfloat16), w2[0],
                    preferred_element_type=jnp.float32)
    else:
        def ff_body(c, acc):
            hmid = jnp.maximum(
                jnp.dot(xn, w1[c], preferred_element_type=jnp.float32) + b1[c], 0.0)
            return acc + jnp.dot(hmid.astype(jnp.bfloat16), w2[c],
                                 preferred_element_type=jnp.float32)
        y = jax.lax.fori_loop(0, n_chunks, ff_body,
                              jnp.zeros((TB * S, D), jnp.float32), unroll=True)
    y = y + b2[...]
    x = x + g * y.reshape(TB, S, D) + sh

    out_ref[...] = x.astype(out_ref.dtype)


_WEIGHT_ORDER = [
    'sa_wq', 'sa_bq', 'sa_wk', 'sa_bk', 'sa_wv', 'sa_bv', 'sa_wo', 'sa_bo',
    'ca_wq', 'ca_bq', 'ca_wk', 'ca_bk', 'ca_wv', 'ca_bv', 'ca_wo', 'ca_bo',
    'w1', 'b1', 'w2', 'b2',
    'n1g', 'n1b', 'n2g', 'n2b', 'n3g', 'n3b',
    'f1gw', 'f1gb', 'f1sw', 'f1sb',
    'f2gw', 'f2gb', 'f2sw', 'f2sb',
    'f3gw', 'f3gb', 'f3sw', 'f3sb',
]


def _default_batch_tile(B):
    # Prefer a grid of >= 2 steps (keeps both v7x TensorCores busy and lets
    # the blocked pipeline overlap activation DMAs with compute); pick the
    # largest batch tile that still gives >= 2 steps.
    if B < 2:
        return B
    for tb in range(B // 2, 0, -1):
        if B % tb == 0:
            return tb
    return B


def film_decoder_forward(tgt, memory, t, kp, nhead, batch_tile=None):
    B, S, D = tgt.shape
    M = memory.shape[1]
    n_chunks, _, FC = kp['w1'].shape
    FF = n_chunks * FC
    TB = _default_batch_tile(B) if batch_tile is None else batch_tile
    assert B % TB == 0, "batch tile must divide batch"

    t3 = t[:, None, :]                                  # (B, 1, D)
    mem_bf16 = memory.astype(jnp.bfloat16)              # only consumed as bf16
    weights = [kp[n] for n in _WEIGHT_ORDER]

    act_specs = [
        pl.BlockSpec((TB, S, D), lambda b: (b, 0, 0)),  # tgt
        pl.BlockSpec((TB, M, D), lambda b: (b, 0, 0)),  # memory (bf16)
        pl.BlockSpec((TB, 1, D), lambda b: (b, 0, 0)),  # t
    ]
    # Whole-array VMEM residency for weights (constant across the grid):
    # no pipelining => no 2x double-buffer of the weight footprint.
    w_specs = [pl.BlockSpec(memory_space=pltpu.MemorySpace.VMEM) for _ in weights]
    out_spec = pl.BlockSpec((TB, S, D), lambda b: (b, 0, 0))

    # Explicit VMEM budget: weights + double-buffered activation blocks +
    # in-kernel intermediates, with headroom; clamped to the v7x physical cap.
    tokens = TB * S
    weight_bytes = sum(int(w.size) * w.dtype.itemsize for w in weights)
    act_bytes = 2 * (tokens * D * 4 + TB * M * D * 2 + TB * D * 4 + tokens * D * 4)
    scratch_bytes = (12 * tokens * D * 4
                     + 2 * nhead * tokens * max(S, M) * 4
                     + 2 * tokens * FC * 4)
    vmem_limit = int(min(max(weight_bytes + act_bytes + 2 * scratch_bytes,
                             32 << 20), 64 << 20))

    # Advisory cost estimate so XLA schedules the custom call sensibly.
    macs = B * (4 * S * D * D + 2 * S * S * D                      # self-attention
                + 2 * S * D * D + 2 * M * D * D + 2 * S * M * D    # cross-attention
                + 2 * S * D * FF                                   # feed-forward
                + 6 * D * D)                                       # 3x FiLM (batch granularity)
    trans = B * nhead * (S * S + S * M) + 2 * B * D + 3 * B * S
    byts = (4 * tgt.size + 2 * memory.size + 4 * t.size + 4 * tgt.size
            + weight_bytes)
    cost = pl.CostEstimate(flops=int(2 * macs), transcendentals=int(trans),
                           bytes_accessed=int(byts))

    kern = functools.partial(film_decoder_kernel, nhead=nhead)
    return pl.pallas_call(
        kern,
        out_shape=jax.ShapeDtypeStruct((B, S, D), jnp.float32),
        grid=(B // TB,),
        in_specs=act_specs + w_specs,
        out_specs=out_spec,
        compiler_params=pltpu.CompilerParams(
            dimension_semantics=("parallel",),
            vmem_limit_bytes=vmem_limit),
        cost_estimate=cost,
    )(tgt, mem_bf16, t3, *weights)


# ----------------------------- deterministic parameter init (PyTorch layout) ------

def init_params(key, D, F):
    keys = iter(jax.random.split(key, 32))

    def nrm(shape, s=0.1):
        return jax.random.normal(next(keys), shape, jnp.float32) * s

    p = {}
    p['sa_in_w'] = nrm((3 * D, D)); p['sa_in_b'] = nrm((3 * D,), 0.05)
    p['sa_out_w'] = nrm((D, D));    p['sa_out_b'] = nrm((D,), 0.05)
    p['ca_in_w'] = nrm((3 * D, D)); p['ca_in_b'] = nrm((3 * D,), 0.05)
    p['ca_out_w'] = nrm((D, D));    p['ca_out_b'] = nrm((D,), 0.05)
    p['lin1_w'] = nrm((F, D));      p['lin1_b'] = nrm((F,), 0.05)
    p['lin2_w'] = nrm((D, F));      p['lin2_b'] = nrm((D,), 0.05)
    for i in (1, 2, 3):
        p[f'n{i}_g'] = 1.0 + nrm((D,), 0.1)
        p[f'n{i}_b'] = nrm((D,), 0.05)
        p[f'f{i}_w'] = nrm((2 * D, D))
        p[f'f{i}_b'] = nrm((2 * D,), 0.05)
    return p


def prepare(p, D, nhead, ff_chunk=512):
    """PyTorch-layout params -> kernel layout: full-width (D_in, D_out)
    transposes, bf16 matmul weights, folded attention scale and FiLM '+1',
    FFN weights pre-split into (n_chunks, D, FC) / (n_chunks, FC, D)."""
    H = nhead
    hd = D // H
    scale = 1.0 / (hd ** 0.5)
    bf16, f32 = jnp.bfloat16, jnp.float32
    kp = {}

    def attn(prefix, in_w, in_b, out_w, out_b):
        kp[prefix + '_wq'] = (in_w[:D].T * scale).astype(bf16)       # (D, D)
        kp[prefix + '_bq'] = (in_b[:D] * scale)[None].astype(f32)    # (1, D)
        kp[prefix + '_wk'] = in_w[D:2 * D].T.astype(bf16)
        kp[prefix + '_bk'] = in_b[D:2 * D][None].astype(f32)
        kp[prefix + '_wv'] = in_w[2 * D:].T.astype(bf16)
        kp[prefix + '_bv'] = in_b[2 * D:][None].astype(f32)
        kp[prefix + '_wo'] = out_w.T.astype(bf16)                    # (D, D)
        kp[prefix + '_bo'] = out_b[None].astype(f32)

    attn('sa', p['sa_in_w'], p['sa_in_b'], p['sa_out_w'], p['sa_out_b'])
    attn('ca', p['ca_in_w'], p['ca_in_b'], p['ca_out_w'], p['ca_out_b'])

    F = p['lin1_w'].shape[0]
    FC = min(ff_chunk, F)
    assert F % FC == 0 and FC % 128 == 0, "FF chunk must be a lane-dense divisor of FF"
    nck = F // FC
    kp['w1'] = p['lin1_w'].T.reshape(D, nck, FC).transpose(1, 0, 2).astype(bf16)
    kp['b1'] = p['lin1_b'].reshape(nck, 1, FC).astype(f32)
    kp['w2'] = p['lin2_w'].T.reshape(nck, FC, D).astype(bf16)
    kp['b2'] = p['lin2_b'][None].astype(f32)

    for i in (1, 2, 3):
        kp[f'n{i}g'] = p[f'n{i}_g'][None].astype(f32)
        kp[f'n{i}b'] = p[f'n{i}_b'][None].astype(f32)
        fw, fb = p[f'f{i}_w'], p[f'f{i}_b']
        kp[f'f{i}gw'] = fw[:D].T.astype(bf16)                        # scale half
        kp[f'f{i}gb'] = (fb[:D] + 1.0)[None].astype(f32)             # fold the (+1)
        kp[f'f{i}sw'] = fw[D:].T.astype(bf16)                        # shift half
        kp[f'f{i}sb'] = fb[D:][None].astype(f32)
    return kp


# ----------------------------- pure-JAX f32 reference ------------------------------

def ref_forward(tgt, memory, t, p, nhead):
    D = tgt.shape[-1]
    H = nhead
    hd = D // H
    P = jax.lax.Precision.HIGHEST

    def mha(q_in, kv_in, in_w, in_b, out_w, out_b):
        B, S, _ = q_in.shape
        M = kv_in.shape[1]
        q = jnp.einsum('bsd,ed->bse', q_in, in_w[:D], precision=P) + in_b[:D]
        k = jnp.einsum('bmd,ed->bme', kv_in, in_w[D:2 * D], precision=P) + in_b[D:2 * D]
        v = jnp.einsum('bmd,ed->bme', kv_in, in_w[2 * D:], precision=P) + in_b[2 * D:]
        q = q.reshape(B, S, H, hd).transpose(0, 2, 1, 3)
        k = k.reshape(B, M, H, hd).transpose(0, 2, 1, 3)
        v = v.reshape(B, M, H, hd).transpose(0, 2, 1, 3)
        s = jnp.einsum('bhse,bhme->bhsm', q, k, precision=P) / (hd ** 0.5)
        pr = jax.nn.softmax(s, axis=-1)
        o = jnp.einsum('bhsm,bhme->bhse', pr, v, precision=P)
        o = o.transpose(0, 2, 1, 3).reshape(B, S, D)
        return jnp.einsum('bsd,ed->bse', o, out_w, precision=P) + out_b

    def film(tv, fw, fb):
        pos = jnp.einsum('bd,ed->be', _mish(tv), fw, precision=P) + fb  # (B, 2D)
        return pos[:, None, :D], pos[:, None, D:]

    x = tgt
    xn = _layernorm(x, p['n1_g'], p['n1_b'])
    x1 = mha(xn, xn, p['sa_in_w'], p['sa_in_b'], p['sa_out_w'], p['sa_out_b'])
    sc, sh = film(t, p['f1_w'], p['f1_b'])
    x = x + (sc + 1.0) * x1 + sh

    xn = _layernorm(x, p['n2_g'], p['n2_b'])
    x2 = mha(xn, memory, p['ca_in_w'], p['ca_in_b'], p['ca_out_w'], p['ca_out_b'])
    sc, sh = film(t, p['f2_w'], p['f2_b'])
    x = x + (sc + 1.0) * x2 + sh

    xn = _layernorm(x, p['n3_g'], p['n3_b'])
    hmid = jnp.maximum(
        jnp.einsum('bsd,fd->bsf', xn, p['lin1_w'], precision=P) + p['lin1_b'], 0.0)
    x3 = jnp.einsum('bsf,df->bsd', hmid, p['lin2_w'], precision=P) + p['lin2_b']
    sc, sh = film(t, p['f3_w'], p['f3_b'])
    x = x + (sc + 1.0) * x3 + sh
    return x


# ----------------------------- main -------------------------------------------------

if __name__ == "__main__":
    # d_model=128 keeps every block lane-dense (multiple of the 128-lane vreg
    # width); nhead=4 -> head_dim=32.  B=2 -> default batch_tile=1 -> grid=(2,)
    # so both v7x TensorCores get a tile.
    B, S, M, D, FF, NHEAD = 2, 8, 16, 128, 256, 4

    key = jax.random.PRNGKey(0)
    k1, k2, k3, kparams = jax.random.split(key, 4)
    tgt = jax.random.normal(k1, (B, S, D), jnp.float32)       # (B, S, D)
    memory = jax.random.normal(k2, (B, M, D), jnp.float32)    # (B, M, D)
    t = jax.random.normal(k3, (B, D), jnp.float32)            # (B, D)

    params = init_params(kparams, D, FF)
    # ff_chunk=128 -> 2 FFN chunks so the chunked-hidden path is exercised even
    # at the small demo FF (production would use 512-1024).
    kp = prepare(params, D, NHEAD, ff_chunk=128)

    out = film_decoder_forward(tgt, memory, t, kp, NHEAD)
    out = jax.block_until_ready(out)

    ref = ref_forward(tgt, memory, t, params, NHEAD)
    assert out.shape == (B, S, D)
    assert bool(jnp.all(jnp.isfinite(out)))
    max_err = float(jnp.max(jnp.abs(out - ref)))
    # bf16 MXU operands (+ bf16 memory, approx softmax recip) vs f32 reference.
    assert jnp.allclose(out, ref, atol=5e-2, rtol=5e-2), f"max_err={max_err}"

    print("KERNEL_OK")
</pallas_src>

<mosaic_0001>
module attributes {stable_mosaic.version = 11 : i64} {
  func.func @film_decoder_kernel(%arg0: i32, %arg1: memref<1x8x128xf32, #tpu.memory_space<vmem>>, %arg2: memref<1x16x128xbf16, #tpu.memory_space<vmem>>, %arg3: memref<1x1x128xf32, #tpu.memory_space<vmem>>, %arg4: memref<128x128xbf16, #tpu.memory_space<vmem>>, %arg5: memref<1x128xf32, #tpu.memory_space<vmem>>, %arg6: memref<128x128xbf16, #tpu.memory_space<vmem>>, %arg7: memref<1x128xf32, #tpu.memory_space<vmem>>, %arg8: memref<128x128xbf16, #tpu.memory_space<vmem>>, %arg9: memref<1x128xf32, #tpu.memory_space<vmem>>, %arg10: memref<128x128xbf16, #tpu.memory_space<vmem>>, %arg11: memref<1x128xf32, #tpu.memory_space<vmem>>, %arg12: memref<128x128xbf16, #tpu.memory_space<vmem>>, %arg13: memref<1x128xf32, #tpu.memory_space<vmem>>, %arg14: memref<128x128xbf16, #tpu.memory_space<vmem>>, %arg15: memref<1x128xf32, #tpu.memory_space<vmem>>, %arg16: memref<128x128xbf16, #tpu.memory_space<vmem>>, %arg17: memref<1x128xf32, #tpu.memory_space<vmem>>, %arg18: memref<128x128xbf16, #tpu.memory_space<vmem>>, %arg19: memref<1x128xf32, #tpu.memory_space<vmem>>, %arg20: memref<2x128x128xbf16, #tpu.memory_space<vmem>>, %arg21: memref<2x1x128xf32, #tpu.memory_space<vmem>>, %arg22: memref<2x128x128xbf16, #tpu.memory_space<vmem>>, %arg23: memref<1x128xf32, #tpu.memory_space<vmem>>, %arg24: memref<1x128xf32, #tpu.memory_space<vmem>>, %arg25: memref<1x128xf32, #tpu.memory_space<vmem>>, %arg26: memref<1x128xf32, #tpu.memory_space<vmem>>, %arg27: memref<1x128xf32, #tpu.memory_space<vmem>>, %arg28: memref<1x128xf32, #tpu.memory_space<vmem>>, %arg29: memref<1x128xf32, #tpu.memory_space<vmem>>, %arg30: memref<128x128xbf16, #tpu.memory_space<vmem>>, %arg31: memref<1x128xf32, #tpu.memory_space<vmem>>, %arg32: memref<128x128xbf16, #tpu.memory_space<vmem>>, %arg33: memref<1x128xf32, #tpu.memory_space<vmem>>, %arg34: memref<128x128xbf16, #tpu.memory_space<vmem>>, %arg35: memref<1x128xf32, #tpu.memory_space<vmem>>, %arg36: memref<128x128xbf16, #tpu.memory_space<vmem>>, %arg37: memref<1x128xf32, #tpu.memory_space<vmem>>, %arg38: memref<128x128xbf16, #tpu.memory_space<vmem>>, %arg39: memref<1x128xf32, #tpu.memory_space<vmem>>, %arg40: memref<128x128xbf16, #tpu.memory_space<vmem>>, %arg41: memref<1x128xf32, #tpu.memory_space<vmem>>, %arg42: memref<1x8x128xf32, #tpu.memory_space<vmem>>) attributes {dimension_semantics = [#tpu.dimension_semantics<parallel>], iteration_bounds = array<i64: 2>, scalar_prefetch = 0 : i64, scratch_operands = 0 : i64, tpu.core_type = #tpu.core_type<tc>, window_params = [{transform_indices = @transform_0, window_bounds = array<i64: 1, 8, 128>}, {transform_indices = @transform_1, window_bounds = array<i64: 1, 16, 128>}, {transform_indices = @transform_2, window_bounds = array<i64: 1, 1, 128>}, {pipeline_mode = #tpu.pipeline_mode<synchronous>, transform_indices = @transform_3, window_bounds = array<i64: 128, 128>}, {pipeline_mode = #tpu.pipeline_mode<synchronous>, transform_indices = @transform_4, window_bounds = array<i64: 1, 128>}, {pipeline_mode = #tpu.pipeline_mode<synchronous>, transform_indices = @transform_5, window_bounds = array<i64: 128, 128>}, {pipeline_mode = #tpu.pipeline_mode<synchronous>, transform_indices = @transform_6, window_bounds = array<i64: 1, 128>}, {pipeline_mode = #tpu.pipeline_mode<synchronous>, transform_indices = @transform_7, window_bounds = array<i64: 128, 128>}, {pipeline_mode = #tpu.pipeline_mode<synchronous>, transform_indices = @transform_8, window_bounds = array<i64: 1, 128>}, {pipeline_mode = #tpu.pipeline_mode<synchronous>, transform_indices = @transform_9, window_bounds = array<i64: 128, 128>}, {pipeline_mode = #tpu.pipeline_mode<synchronous>, transform_indices = @transform_10, window_bounds = array<i64: 1, 128>}, {pipeline_mode = #tpu.pipeline_mode<synchronous>, transform_indices = @transform_11, window_bounds = array<i64: 128, 128>}, {pipeline_mode = #tpu.pipeline_mode<synchronous>, transform_indices = @transform_12, window_bounds = array<i64: 1, 128>}, {pipeline_mode = #tpu.pipeline_mode<synchronous>, transform_indices = @transform_13, window_bounds = array<i64: 128, 128>}, {pipeline_mode = #tpu.pipeline_mode<synchronous>, transform_indices = @transform_14, window_bounds = array<i64: 1, 128>}, {pipeline_mode = #tpu.pipeline_mode<synchronous>, transform_indices = @transform_15, window_bounds = array<i64: 128, 128>}, {pipeline_mode = #tpu.pipeline_mode<synchronous>, transform_indices = @transform_16, window_bounds = array<i64: 1, 128>}, {pipeline_mode = #tpu.pipeline_mode<synchronous>, transform_indices = @transform_17, window_bounds = array<i64: 128, 128>}, {pipeline_mode = #tpu.pipeline_mode<synchronous>, transform_indices = @transform_18, window_bounds = array<i64: 1, 128>}, {pipeline_mode = #tpu.pipeline_mode<synchronous>, transform_indices = @transform_19, window_bounds = array<i64: 2, 128, 128>}, {pipeline_mode = #tpu.pipeline_mode<synchronous>, transform_indices = @transform_20, window_bounds = array<i64: 2, 1, 128>}, {pipeline_mode = #tpu.pipeline_mode<synchronous>, transform_indices = @transform_21, window_bounds = array<i64: 2, 128, 128>}, {pipeline_mode = #tpu.pipeline_mode<synchronous>, transform_indices = @transform_22, window_bounds = array<i64: 1, 128>}, {pipeline_mode = #tpu.pipeline_mode<synchronous>, transform_indices = @transform_23, window_bounds = array<i64: 1, 128>}, {pipeline_mode = #tpu.pipeline_mode<synchronous>, transform_indices = @transform_24, window_bounds = array<i64: 1, 128>}, {pipeline_mode = #tpu.pipeline_mode<synchronous>, transform_indices = @transform_25, window_bounds = array<i64: 1, 128>}, {pipeline_mode = #tpu.pipeline_mode<synchronous>, transform_indices = @transform_26, window_bounds = array<i64: 1, 128>}, {pipeline_mode = #tpu.pipeline_mode<synchronous>, transform_indices = @transform_27, window_bounds = array<i64: 1, 128>}, {pipeline_mode = #tpu.pipeline_mode<synchronous>, transform_indices = @transform_28, window_bounds = array<i64: 1, 128>}, {pipeline_mode = #tpu.pipeline_mode<synchronous>, transform_indices = @transform_29, window_bounds = array<i64: 128, 128>}, {pipeline_mode = #tpu.pipeline_mode<synchronous>, transform_indices = @transform_30, window_bounds = array<i64: 1, 128>}, {pipeline_mode = #tpu.pipeline_mode<synchronous>, transform_indices = @transform_31, window_bounds = array<i64: 128, 128>}, {pipeline_mode = #tpu.pipeline_mode<synchronous>, transform_indices = @transform_32, window_bounds = array<i64: 1, 128>}, {pipeline_mode = #tpu.pipeline_mode<synchronous>, transform_indices = @transform_33, window_bounds = array<i64: 128, 128>}, {pipeline_mode = #tpu.pipeline_mode<synchronous>, transform_indices = @transform_34, window_bounds = array<i64: 1, 128>}, {pipeline_mode = #tpu.pipeline_mode<synchronous>, transform_indices = @transform_35, window_bounds = array<i64: 128, 128>}, {pipeline_mode = #tpu.pipeline_mode<synchronous>, transform_indices = @transform_36, window_bounds = array<i64: 1, 128>}, {pipeline_mode = #tpu.pipeline_mode<synchronous>, transform_indices = @transform_37, window_bounds = array<i64: 128, 128>}, {pipeline_mode = #tpu.pipeline_mode<synchronous>, transform_indices = @transform_38, window_bounds = array<i64: 1, 128>}, {pipeline_mode = #tpu.pipeline_mode<synchronous>, transform_indices = @transform_39, window_bounds = array<i64: 128, 128>}, {pipeline_mode = #tpu.pipeline_mode<synchronous>, transform_indices = @transform_40, window_bounds = array<i64: 1, 128>}, {transform_indices = @transform_41, window_bounds = array<i64: 1, 8, 128>}]} {
    %c0 = arith.constant 0 : index
    %c0_0 = arith.constant 0 : index
    %c0_1 = arith.constant 0 : index
    %0 = vector.load %arg1[%c0, %c0_0, %c0_1] : memref<1x8x128xf32, #tpu.memory_space<vmem>>, vector<1x8x128xf32>
    %c0_2 = arith.constant 0 : index
    %c0_3 = arith.constant 0 : index
    %c0_4 = arith.constant 0 : index
    %1 = vector.load %arg2[%c0_2, %c0_3, %c0_4] : memref<1x16x128xbf16, #tpu.memory_space<vmem>>, vector<1x16x128xbf16>
    %2 = vector.shape_cast %1 : vector<1x16x128xbf16> to vector<16x128xbf16>
    %c0_5 = arith.constant 0 : index
    %c0_6 = arith.constant 0 : index
    %c0_7 = arith.constant 0 : index
    %3 = vector.load %arg3[%c0_5, %c0_6, %c0_7] : memref<1x1x128xf32, #tpu.memory_space<vmem>>, vector<1x1x128xf32>
    %4 = vector.shape_cast %3 : vector<1x1x128xf32> to vector<1x128xf32>
    %cst = arith.constant 2.000000e+01 : f32
    %5 = vector.broadcast %cst : f32 to vector<1x128xf32>
    %6 = arith.cmpf ogt, %4, %5 : vector<1x128xf32>
    %cst_8 = arith.constant 2.000000e+01 : f32
    %7 = vector.broadcast %cst_8 : f32 to vector<1x128xf32>
    %8 = arith.minimumf %4, %7 : vector<1x128xf32>
    %9 = math.exp %8 : vector<1x128xf32>
    %cst_9 = arith.constant 1.000000e+00 : f32
    %10 = vector.broadcast %cst_9 : f32 to vector<1x128xf32>
    %11 = arith.addf %10, %9 : vector<1x128xf32>
    %12 = math.log %11 : vector<1x128xf32>
    %13 = arith.select %6, %4, %12 : vector<1x128xi1>, vector<1x128xf32>
    %14 = math.tanh %13 : vector<1x128xf32>
    %15 = arith.mulf %4, %14 : vector<1x128xf32>
    %16 = arith.truncf %15 : vector<1x128xf32> to vector<1x128xbf16>
    %c0_10 = arith.constant 0 : index
    %c0_11 = arith.constant 0 : index
    %17 = vector.load %arg30[%c0_10, %c0_11] : memref<128x128xbf16, #tpu.memory_space<vmem>>, vector<128x128xbf16>
    %cst_12 = arith.constant dense<0.000000e+00> : vector<1x128xf32>
    %18 = tpu.matmul %16, %17, %cst_12 {dimension_numbers = #tpu.dot_dimension_numbers<[1], [0], [0], [1], [0, 0, 1, 1], [], []>} : vector<1x128xbf16>, vector<128x128xbf16>, vector<1x128xf32> -> vector<1x128xf32>
    %c0_13 = arith.constant 0 : index
    %c0_14 = arith.constant 0 : index
    %19 = vector.load %arg31[%c0_13, %c0_14] : memref<1x128xf32, #tpu.memory_space<vmem>>, vector<1x128xf32>
    %20 = arith.addf %18, %19 : vector<1x128xf32>
    %c0_15 = arith.constant 0 : index
    %c0_16 = arith.constant 0 : index
    %21 = vector.load %arg32[%c0_15, %c0_16] : memref<128x128xbf16, #tpu.memory_space<vmem>>, vector<128x128xbf16>
    %cst_17 = arith.constant dense<0.000000e+00> : vector<1x128xf32>
    %22 = tpu.matmul %16, %21, %cst_17 {dimension_numbers = #tpu.dot_dimension_numbers<[1], [0], [0], [1], [0, 0, 1, 1], [], []>} : vector<1x128xbf16>, vector<128x128xbf16>, vector<1x128xf32> -> vector<1x128xf32>
    %c0_18 = arith.constant 0 : index
    %c0_19 = arith.constant 0 : index
    %23 = vector.load %arg33[%c0_18, %c0_19] : memref<1x128xf32, #tpu.memory_space<vmem>>, vector<1x128xf32>
    %24 = arith.addf %22, %23 : vector<1x128xf32>
    %25 = vector.shape_cast %20 : vector<1x128xf32> to vector<1x1x128xf32>
    %26 = vector.shape_cast %24 : vector<1x128xf32> to vector<1x1x128xf32>
    %27 = vector.shape_cast %0 : vector<1x8x128xf32> to vector<8x128xf32>
    %c0_20 = arith.constant 0 : index
    %c0_21 = arith.constant 0 : index
    %28 = vector.load %arg24[%c0_20, %c0_21] : memref<1x128xf32, #tpu.memory_space<vmem>>, vector<1x128xf32>
    %c0_22 = arith.constant 0 : index
    %c0_23 = arith.constant 0 : index
    %29 = vector.load %arg25[%c0_22, %c0_23] : memref<1x128xf32, #tpu.memory_space<vmem>>, vector<1x128xf32>
    %cst_24 = arith.constant dense<0.000000e+00> : vector<8xf32>
    %30 = vector.multi_reduction <add>, %27, %cst_24 [1] : vector<8x128xf32> to vector<8xf32>
    %31 = vector.shape_cast %30 : vector<8xf32> to vector<8x1xf32>
    %cst_25 = arith.constant 1.280000e+02 : f32
    %32 = vector.broadcast %cst_25 : f32 to vector<8x1xf32>
    %33 = arith.divf %31, %32 : vector<8x1xf32>
    %34 = vector.broadcast %33 : vector<8x1xf32> to vector<8x128xf32>
    %35 = arith.subf %27, %34 : vector<8x128xf32>
    %36 = arith.mulf %35, %35 : vector<8x128xf32>
    %cst_26 = arith.constant dense<0.000000e+00> : vector<8xf32>
    %37 = vector.multi_reduction <add>, %36, %cst_26 [1] : vector<8x128xf32> to vector<8xf32>
    %38 = vector.shape_cast %37 : vector<8xf32> to vector<8x1xf32>
    %cst_27 = arith.constant 1.280000e+02 : f32
    %39 = vector.broadcast %cst_27 : f32 to vector<8x1xf32>
    %40 = arith.divf %38, %39 : vector<8x1xf32>
    %41 = vector.broadcast %33 : vector<8x1xf32> to vector<8x128xf32>
    %42 = arith.subf %27, %41 : vector<8x128xf32>
    %cst_28 = arith.constant 9.99999974E-6 : f32
    %43 = vector.broadcast %cst_28 : f32 to vector<8x1xf32>
    %44 = arith.addf %40, %43 : vector<8x1xf32>
    %45 = math.rsqrt %44 : vector<8x1xf32>
    %46 = vector.broadcast %45 : vector<8x1xf32> to vector<8x128xf32>
    %47 = arith.mulf %42, %46 : vector<8x128xf32>
    %48 = vector.broadcast %28 : vector<1x128xf32> to vector<8x128xf32>
    %49 = arith.mulf %47, %48 : vector<8x128xf32>
    %50 = vector.broadcast %29 : vector<1x128xf32> to vector<8x128xf32>
    %51 = arith.addf %49, %50 : vector<8x128xf32>
    %52 = arith.truncf %51 : vector<8x128xf32> to vector<8x128xbf16>
    %c0_29 = arith.constant 0 : index
    %c0_30 = arith.constant 0 : index
    %53 = vector.load %arg4[%c0_29, %c0_30] : memref<128x128xbf16, #tpu.memory_space<vmem>>, vector<128x128xbf16>
    %cst_31 = arith.constant dense<0.000000e+00> : vector<8x128xf32>
    %54 = tpu.matmul %52, %53, %cst_31 {dimension_numbers = #tpu.dot_dimension_numbers<[1], [0], [0], [1], [0, 0, 1, 1], [], []>} : vector<8x128xbf16>, vector<128x128xbf16>, vector<8x128xf32> -> vector<8x128xf32>
    %c0_32 = arith.constant 0 : index
    %c0_33 = arith.constant 0 : index
    %55 = vector.load %arg5[%c0_32, %c0_33] : memref<1x128xf32, #tpu.memory_space<vmem>>, vector<1x128xf32>
    %56 = vector.broadcast %55 : vector<1x128xf32> to vector<8x128xf32>
    %57 = arith.addf %54, %56 : vector<8x128xf32>
    %c0_34 = arith.constant 0 : index
    %c0_35 = arith.constant 0 : index
    %58 = vector.load %arg6[%c0_34, %c0_35] : memref<128x128xbf16, #tpu.memory_space<vmem>>, vector<128x128xbf16>
    %cst_36 = arith.constant dense<0.000000e+00> : vector<8x128xf32>
    %59 = tpu.matmul %52, %58, %cst_36 {dimension_numbers = #tpu.dot_dimension_numbers<[1], [0], [0], [1], [0, 0, 1, 1], [], []>} : vector<8x128xbf16>, vector<128x128xbf16>, vector<8x128xf32> -> vector<8x128xf32>
    %c0_37 = arith.constant 0 : index
    %c0_38 = arith.constant 0 : index
    %60 = vector.load %arg7[%c0_37, %c0_38] : memref<1x128xf32, #tpu.memory_space<vmem>>, vector<1x128xf32>
    %61 = vector.broadcast %60 : vector<1x128xf32> to vector<8x128xf32>
    %62 = arith.addf %59, %61 : vector<8x128xf32>
    %c0_39 = arith.constant 0 : index
    %c0_40 = arith.constant 0 : index
    %63 = vector.load %arg8[%c0_39, %c0_40] : memref<128x128xbf16, #tpu.memory_space<vmem>>, vector<128x128xbf16>
    %cst_41 = arith.constant dense<0.000000e+00> : vector<8x128xf32>
    %64 = tpu.matmul %52, %63, %cst_41 {dimension_numbers = #tpu.dot_dimension_numbers<[1], [0], [0], [1], [0, 0, 1, 1], [], []>} : vector<8x128xbf16>, vector<128x128xbf16>, vector<8x128xf32> -> vector<8x128xf32>
    %c0_42 = arith.constant 0 : index
    %c0_43 = arith.constant 0 : index
    %65 = vector.load %arg9[%c0_42, %c0_43] : memref<1x128xf32, #tpu.memory_space<vmem>>, vector<1x128xf32>
    %66 = vector.broadcast %65 : vector<1x128xf32> to vector<8x128xf32>
    %67 = arith.addf %64, %66 : vector<8x128xf32>
    %68 = vector.shape_cast %57 : vector<8x128xf32> to vector<1x8x128xf32>
    %69 = arith.truncf %68 : vector<1x8x128xf32> to vector<1x8x128xbf16>
    %70 = vector.shape_cast %62 : vector<8x128xf32> to vector<1x8x128xf32>
    %71 = arith.truncf %70 : vector<1x8x128xf32> to vector<1x8x128xbf16>
    %72 = vector.shape_cast %67 : vector<8x128xf32> to vector<1x8x128xf32>
    %73 = arith.truncf %72 : vector<1x8x128xf32> to vector<1x8x128xbf16>
    %74 = vector.extract_strided_slice %69 {offsets = [0, 0, 0], sizes = [1, 8, 32], strides = [1, 1, 1]} : vector<1x8x128xbf16> to vector<1x8x32xbf16>
    %75 = vector.extract_strided_slice %71 {offsets = [0, 0, 0], sizes = [1, 8, 32], strides = [1, 1, 1]} : vector<1x8x128xbf16> to vector<1x8x32xbf16>
    "tpu.trace_start"() <{level = 10 : i32, message = "bqe,bke->bqk"}> : () -> ()
    %cst_44 = arith.constant dense<0.000000e+00> : vector<1x8x8xf32>
    %76 = tpu.matmul %74, %75, %cst_44 {dimension_numbers = #tpu.dot_dimension_numbers<[2], [2], [1], [1], [0, 0, 0, 1, 1, 1], [0], [0]>} : vector<1x8x32xbf16>, vector<1x8x32xbf16>, vector<1x8x8xf32> -> vector<1x8x8xf32>
    "tpu.trace_stop"() : () -> ()
    %cst_45 = arith.constant dense<0xFF800000> : vector<1x8xf32>
    %77 = vector.multi_reduction <maximumf>, %76, %cst_45 [2] : vector<1x8x8xf32> to vector<1x8xf32>
    %78 = vector.shape_cast %77 : vector<1x8xf32> to vector<1x8x1xf32>
    %79 = vector.broadcast %78 : vector<1x8x1xf32> to vector<1x8x8xf32>
    %80 = arith.subf %76, %79 : vector<1x8x8xf32>
    %81 = math.exp %80 : vector<1x8x8xf32>
    %cst_46 = arith.constant dense<0.000000e+00> : vector<1x8xf32>
    %82 = vector.multi_reduction <add>, %81, %cst_46 [2] : vector<1x8x8xf32> to vector<1x8xf32>
    %83 = vector.shape_cast %82 : vector<1x8xf32> to vector<1x8x1xf32>
    %84 = tpu.reciprocal %83 {approx = true} : vector<1x8x1xf32> -> vector<1x8x1xf32>
    %85 = vector.broadcast %84 : vector<1x8x1xf32> to vector<1x8x8xf32>
    %86 = arith.mulf %81, %85 : vector<1x8x8xf32>
    %87 = arith.truncf %86 : vector<1x8x8xf32> to vector<1x8x8xbf16>
    %88 = vector.extract_strided_slice %73 {offsets = [0, 0, 0], sizes = [1, 8, 32], strides = [1, 1, 1]} : vector<1x8x128xbf16> to vector<1x8x32xbf16>
    "tpu.trace_start"() <{level = 10 : i32, message = "bqk,bke->bqe"}> : () -> ()
    %cst_47 = arith.constant dense<0.000000e+00> : vector<1x8x32xf32>
    %89 = tpu.matmul %87, %88, %cst_47 {dimension_numbers = #tpu.dot_dimension_numbers<[2], [1], [1], [2], [0, 0, 0, 1, 1, 2], [0], [0]>} : vector<1x8x8xbf16>, vector<1x8x32xbf16>, vector<1x8x32xf32> -> vector<1x8x32xf32>
    "tpu.trace_stop"() : () -> ()
    %90 = vector.extract_strided_slice %69 {offsets = [0, 0, 32], sizes = [1, 8, 32], strides = [1, 1, 1]} : vector<1x8x128xbf16> to vector<1x8x32xbf16>
    %91 = vector.extract_strided_slice %71 {offsets = [0, 0, 32], sizes = [1, 8, 32], strides = [1, 1, 1]} : vector<1x8x128xbf16> to vector<1x8x32xbf16>
    "tpu.trace_start"() <{level = 10 : i32, message = "bqe,bke->bqk"}> : () -> ()
    %cst_48 = arith.constant dense<0.000000e+00> : vector<1x8x8xf32>
    %92 = tpu.matmul %90, %91, %cst_48 {dimension_numbers = #tpu.dot_dimension_numbers<[2], [2], [1], [1], [0, 0, 0, 1, 1, 1], [0], [0]>} : vector<1x8x32xbf16>, vector<1x8x32xbf16>, vector<1x8x8xf32> -> vector<1x8x8xf32>
    "tpu.trace_stop"() : () -> ()
    %cst_49 = arith.constant dense<0xFF800000> : vector<1x8xf32>
    %93 = vector.multi_reduction <maximumf>, %92, %cst_49 [2] : vector<1x8x8xf32> to vector<1x8xf32>
    %94 = vector.shape_cast %93 : vector<1x8xf32> to vector<1x8x1xf32>
    %95 = vector.broadcast %94 : vector<1x8x1xf32> to vector<1x8x8xf32>
    %96 = arith.subf %92, %95 : vector<1x8x8xf32>
    %97 = math.exp %96 : vector<1x8x8xf32>
    %cst_50 = arith.constant dense<0.000000e+00> : vector<1x8xf32>
    %98 = vector.multi_reduction <add>, %97, %cst_50 [2] : vector<1x8x8xf32> to vector<1x8xf32>
    %99 = vector.shape_cast %98 : vector<1x8xf32> to vector<1x8x1xf32>
    %100 = tpu.reciprocal %99 {approx = true} : vector<1x8x1xf32> -> vector<1x8x1xf32>
    %101 = vector.broadcast %100 : vector<1x8x1xf32> to vector<1x8x8xf32>
    %102 = arith.mulf %97, %101 : vector<1x8x8xf32>
    %103 = arith.truncf %102 : vector<1x8x8xf32> to vector<1x8x8xbf16>
    %104 = vector.extract_strided_slice %73 {offsets = [0, 0, 32], sizes = [1, 8, 32], strides = [1, 1, 1]} : vector<1x8x128xbf16> to vector<1x8x32xbf16>
    "tpu.trace_start"() <{level = 10 : i32, message = "bqk,bke->bqe"}> : () -> ()
    %cst_51 = arith.constant dense<0.000000e+00> : vector<1x8x32xf32>
    %105 = tpu.matmul %103, %104, %cst_51 {dimension_numbers = #tpu.dot_dimension_numbers<[2], [1], [1], [2], [0, 0, 0, 1, 1, 2], [0], [0]>} : vector<1x8x8xbf16>, vector<1x8x32xbf16>, vector<1x8x32xf32> -> vector<1x8x32xf32>
    "tpu.trace_stop"() : () -> ()
    %106 = vector.extract_strided_slice %69 {offsets = [0, 0, 64], sizes = [1, 8, 32], strides = [1, 1, 1]} : vector<1x8x128xbf16> to vector<1x8x32xbf16>
    %107 = vector.extract_strided_slice %71 {offsets = [0, 0, 64], sizes = [1, 8, 32], strides = [1, 1, 1]} : vector<1x8x128xbf16> to vector<1x8x32xbf16>
    "tpu.trace_start"() <{level = 10 : i32, message = "bqe,bke->bqk"}> : () -> ()
    %cst_52 = arith.constant dense<0.000000e+00> : vector<1x8x8xf32>
    %108 = tpu.matmul %106, %107, %cst_52 {dimension_numbers = #tpu.dot_dimension_numbers<[2], [2], [1], [1], [0, 0, 0, 1, 1, 1], [0], [0]>} : vector<1x8x32xbf16>, vector<1x8x32xbf16>, vector<1x8x8xf32> -> vector<1x8x8xf32>
    "tpu.trace_stop"() : () -> ()
    %cst_53 = arith.constant dense<0xFF800000> : vector<1x8xf32>
    %109 = vector.multi_reduction <maximumf>, %108, %cst_53 [2] : vector<1x8x8xf32> to vector<1x8xf32>
    %110 = vector.shape_cast %109 : vector<1x8xf32> to vector<1x8x1xf32>
    %111 = vector.broadcast %110 : vector<1x8x1xf32> to vector<1x8x8xf32>
    %112 = arith.subf %108, %111 : vector<1x8x8xf32>
    %113 = math.exp %112 : vector<1x8x8xf32>
    %cst_54 = arith.constant dense<0.000000e+00> : vector<1x8xf32>
    %114 = vector.multi_reduction <add>, %113, %cst_54 [2] : vector<1x8x8xf32> to vector<1x8xf32>
    %115 = vector.shape_cast %114 : vector<1x8xf32> to vector<1x8x1xf32>
    %116 = tpu.reciprocal %115 {approx = true} : vector<1x8x1xf32> -> vector<1x8x1xf32>
    %117 = vector.broadcast %116 : vector<1x8x1xf32> to vector<1x8x8xf32>
    %118 = arith.mulf %113, %117 : vector<1x8x8xf32>
    %119 = arith.truncf %118 : vector<1x8x8xf32> to vector<1x8x8xbf16>
    %120 = vector.extract_strided_slice %73 {offsets = [0, 0, 64], sizes = [1, 8, 32], strides = [1, 1, 1]} : vector<1x8x128xbf16> to vector<1x8x32xbf16>
    "tpu.trace_start"() <{level = 10 : i32, message = "bqk,bke->bqe"}> : () -> ()
    %cst_55 = arith.constant dense<0.000000e+00> : vector<1x8x32xf32>
    %121 = tpu.matmul %119, %120, %cst_55 {dimension_numbers = #tpu.dot_dimension_numbers<[2], [1], [1], [2], [0, 0, 0, 1, 1, 2], [0], [0]>} : vector<1x8x8xbf16>, vector<1x8x32xbf16>, vector<1x8x32xf32> -> vector<1x8x32xf32>
    "tpu.trace_stop"() : () -> ()
    %122 = vector.extract_strided_slice %69 {offsets = [0, 0, 96], sizes = [1, 8, 32], strides = [1, 1, 1]} : vector<1x8x128xbf16> to vector<1x8x32xbf16>
    %123 = vector.extract_strided_slice %71 {offsets = [0, 0, 96], sizes = [1, 8, 32], strides = [1, 1, 1]} : vector<1x8x128xbf16> to vector<1x8x32xbf16>
    "tpu.trace_start"() <{level = 10 : i32, message = "bqe,bke->bqk"}> : () -> ()
    %cst_56 = arith.constant dense<0.000000e+00> : vector<1x8x8xf32>
    %124 = tpu.matmul %122, %123, %cst_56 {dimension_numbers = #tpu.dot_dimension_numbers<[2], [2], [1], [1], [0, 0, 0, 1, 1, 1], [0], [0]>} : vector<1x8x32xbf16>, vector<1x8x32xbf16>, vector<1x8x8xf32> -> vector<1x8x8xf32>
    "tpu.trace_stop"() : () -> ()
    %cst_57 = arith.constant dense<0xFF800000> : vector<1x8xf32>
    %125 = vector.multi_reduction <maximumf>, %124, %cst_57 [2] : vector<1x8x8xf32> to vector<1x8xf32>
    %126 = vector.shape_cast %125 : vector<1x8xf32> to vector<1x8x1xf32>
    %127 = vector.broadcast %126 : vector<1x8x1xf32> to vector<1x8x8xf32>
    %128 = arith.subf %124, %127 : vector<1x8x8xf32>
    %129 = math.exp %128 : vector<1x8x8xf32>
    %cst_58 = arith.constant dense<0.000000e+00> : vector<1x8xf32>
    %130 = vector.multi_reduction <add>, %129, %cst_58 [2] : vector<1x8x8xf32> to vector<1x8xf32>
    %131 = vector.shape_cast %130 : vector<1x8xf32> to vector<1x8x1xf32>
    %132 = tpu.reciprocal %131 {approx = true} : vector<1x8x1xf32> -> vector<1x8x1xf32>
    %133 = vector.broadcast %132 : vector<1x8x1xf32> to vector<1x8x8xf32>
    %134 = arith.mulf %129, %133 : vector<1x8x8xf32>
    %135 = arith.truncf %134 : vector<1x8x8xf32> to vector<1x8x8xbf16>
    %136 = vector.extract_strided_slice %73 {offsets = [0, 0, 96], sizes = [1, 8, 32], strides = [1, 1, 1]} : vector<1x8x128xbf16> to vector<1x8x32xbf16>
    "tpu.trace_start"() <{level = 10 : i32, message = "bqk,bke->bqe"}> : () -> ()
    %cst_59 = arith.constant dense<0.000000e+00> : vector<1x8x32xf32>
    %137 = tpu.matmul %135, %136, %cst_59 {dimension_numbers = #tpu.dot_dimension_numbers<[2], [1], [1], [2], [0, 0, 0, 1, 1, 2], [0], [0]>} : vector<1x8x8xbf16>, vector<1x8x32xbf16>, vector<1x8x32xf32> -> vector<1x8x32xf32>
    "tpu.trace_stop"() : () -> ()
    %138 = tpu.concatenate %89, %105, %121, %137 in 2 : vector<1x8x32xf32>, vector<1x8x32xf32>, vector<1x8x32xf32>, vector<1x8x32xf32> -> vector<1x8x128xf32>
    %139 = vector.shape_cast %138 : vector<1x8x128xf32> to vector<8x128xf32>
    %140 = arith.truncf %139 : vector<8x128xf32> to vector<8x128xbf16>
    %c0_60 = arith.constant 0 : index
    %c0_61 = arith.constant 0 : index
    %141 = vector.load %arg10[%c0_60, %c0_61] : memref<128x128xbf16, #tpu.memory_space<vmem>>, vector<128x128xbf16>
    %cst_62 = arith.constant dense<0.000000e+00> : vector<8x128xf32>
    %142 = tpu.matmul %140, %141, %cst_62 {dimension_numbers = #tpu.dot_dimension_numbers<[1], [0], [0], [1], [0, 0, 1, 1], [], []>} : vector<8x128xbf16>, vector<128x128xbf16>, vector<8x128xf32> -> vector<8x128xf32>
    %c0_63 = arith.constant 0 : index
    %c0_64 = arith.constant 0 : index
    %143 = vector.load %arg11[%c0_63, %c0_64] : memref<1x128xf32, #tpu.memory_space<vmem>>, vector<1x128xf32>
    %144 = vector.broadcast %143 : vector<1x128xf32> to vector<8x128xf32>
    %145 = arith.addf %142, %144 : vector<8x128xf32>
    %146 = vector.shape_cast %145 : vector<8x128xf32> to vector<1x8x128xf32>
    %147 = vector.broadcast %25 : vector<1x1x128xf32> to vector<1x8x128xf32>
    %148 = arith.mulf %147, %146 : vector<1x8x128xf32>
    %149 = arith.addf %0, %148 : vector<1x8x128xf32>
    %150 = vector.broadcast %26 : vector<1x1x128xf32> to vector<1x8x128xf32>
    %151 = arith.addf %149, %150 : vector<1x8x128xf32>
    %c0_65 = arith.constant 0 : index
    %c0_66 = arith.constant 0 : index
    %152 = vector.load %arg34[%c0_65, %c0_66] : memref<128x128xbf16, #tpu.memory_space<vmem>>, vector<128x128xbf16>
    %cst_67 = arith.constant dense<0.000000e+00> : vector<1x128xf32>
    %153 = tpu.matmul %16, %152, %cst_67 {dimension_numbers = #tpu.dot_dimension_numbers<[1], [0], [0], [1], [0, 0, 1, 1], [], []>} : vector<1x128xbf16>, vector<128x128xbf16>, vector<1x128xf32> -> vector<1x128xf32>
    %c0_68 = arith.constant 0 : index
    %c0_69 = arith.constant 0 : index
    %154 = vector.load %arg35[%c0_68, %c0_69] : memref<1x128xf32, #tpu.memory_space<vmem>>, vector<1x128xf32>
    %155 = arith.addf %153, %154 : vector<1x128xf32>
    %c0_70 = arith.constant 0 : index
    %c0_71 = arith.constant 0 : index
    %156 = vector.load %arg36[%c0_70, %c0_71] : memref<128x128xbf16, #tpu.memory_space<vmem>>, vector<128x128xbf16>
    %cst_72 = arith.constant dense<0.000000e+00> : vector<1x128xf32>
    %157 = tpu.matmul %16, %156, %cst_72 {dimension_numbers = #tpu.dot_dimension_numbers<[1], [0], [0], [1], [0, 0, 1, 1], [], []>} : vector<1x128xbf16>, vector<128x128xbf16>, vector<1x128xf32> -> vector<1x128xf32>
    %c0_73 = arith.constant 0 : index
    %c0_74 = arith.constant 0 : index
    %158 = vector.load %arg37[%c0_73, %c0_74] : memref<1x128xf32, #tpu.memory_space<vmem>>, vector<1x128xf32>
    %159 = arith.addf %157, %158 : vector<1x128xf32>
    %160 = vector.shape_cast %155 : vector<1x128xf32> to vector<1x1x128xf32>
    %161 = vector.shape_cast %159 : vector<1x128xf32> to vector<1x1x128xf32>
    %162 = vector.shape_cast %151 : vector<1x8x128xf32> to vector<8x128xf32>
    %c0_75 = arith.constant 0 : index
    %c0_76 = arith.constant 0 : index
    %163 = vector.load %arg26[%c0_75, %c0_76] : memref<1x128xf32, #tpu.memory_space<vmem>>, vector<1x128xf32>
    %c0_77 = arith.constant 0 : index
    %c0_78 = arith.constant 0 : index
    %164 = vector.load %arg27[%c0_77, %c0_78] : memref<1x128xf32, #tpu.memory_space<vmem>>, vector<1x128xf32>
    %cst_79 = arith.constant dense<0.000000e+00> : vector<8xf32>
    %165 = vector.multi_reduction <add>, %162, %cst_79 [1] : vector<8x128xf32> to vector<8xf32>
    %166 = vector.shape_cast %165 : vector<8xf32> to vector<8x1xf32>
    %cst_80 = arith.constant 1.280000e+02 : f32
    %167 = vector.broadcast %cst_80 : f32 to vector<8x1xf32>
    %168 = arith.divf %166, %167 : vector<8x1xf32>
    %169 = vector.broadcast %168 : vector<8x1xf32> to vector<8x128xf32>
    %170 = arith.subf %162, %169 : vector<8x128xf32>
    %171 = arith.mulf %170, %170 : vector<8x128xf32>
    %cst_81 = arith.constant dense<0.000000e+00> : vector<8xf32>
    %172 = vector.multi_reduction <add>, %171, %cst_81 [1] : vector<8x128xf32> to vector<8xf32>
    %173 = vector.shape_cast %172 : vector<8xf32> to vector<8x1xf32>
    %cst_82 = arith.constant 1.280000e+02 : f32
    %174 = vector.broadcast %cst_82 : f32 to vector<8x1xf32>
    %175 = arith.divf %173, %174 : vector<8x1xf32>
    %176 = vector.broadcast %168 : vector<8x1xf32> to vector<8x128xf32>
    %177 = arith.subf %162, %176 : vector<8x128xf32>
    %cst_83 = arith.constant 9.99999974E-6 : f32
    %178 = vector.broadcast %cst_83 : f32 to vector<8x1xf32>
    %179 = arith.addf %175, %178 : vector<8x1xf32>
    %180 = math.rsqrt %179 : vector<8x1xf32>
    %181 = vector.broadcast %180 : vector<8x1xf32> to vector<8x128xf32>
    %182 = arith.mulf %177, %181 : vector<8x128xf32>
    %183 = vector.broadcast %163 : vector<1x128xf32> to vector<8x128xf32>
    %184 = arith.mulf %182, %183 : vector<8x128xf32>
    %185 = vector.broadcast %164 : vector<1x128xf32> to vector<8x128xf32>
    %186 = arith.addf %184, %185 : vector<8x128xf32>
    %187 = arith.truncf %186 : vector<8x128xf32> to vector<8x128xbf16>
    %c0_84 = arith.constant 0 : index
    %c0_85 = arith.constant 0 : index
    %188 = vector.load %arg12[%c0_84, %c0_85] : memref<128x128xbf16, #tpu.memory_space<vmem>>, vector<128x128xbf16>
    %cst_86 = arith.constant dense<0.000000e+00> : vector<8x128xf32>
    %189 = tpu.matmul %187, %188, %cst_86 {dimension_numbers = #tpu.dot_dimension_numbers<[1], [0], [0], [1], [0, 0, 1, 1], [], []>} : vector<8x128xbf16>, vector<128x128xbf16>, vector<8x128xf32> -> vector<8x128xf32>
    %c0_87 = arith.constant 0 : index
    %c0_88 = arith.constant 0 : index
    %190 = vector.load %arg13[%c0_87, %c0_88] : memref<1x128xf32, #tpu.memory_space<vmem>>, vector<1x128xf32>
    %191 = vector.broadcast %190 : vector<1x128xf32> to vector<8x128xf32>
    %192 = arith.addf %189, %191 : vector<8x128xf32>
    %c0_89 = arith.constant 0 : index
    %c0_90 = arith.constant 0 : index
    %193 = vector.load %arg14[%c0_89, %c0_90] : memref<128x128xbf16, #tpu.memory_space<vmem>>, vector<128x128xbf16>
    %cst_91 = arith.constant dense<0.000000e+00> : vector<16x128xf32>
    %194 = tpu.matmul %2, %193, %cst_91 {dimension_numbers = #tpu.dot_dimension_numbers<[1], [0], [0], [1], [0, 0, 1, 1], [], []>} : vector<16x128xbf16>, vector<128x128xbf16>, vector<16x128xf32> -> vector<16x128xf32>
    %c0_92 = arith.constant 0 : index
    %c0_93 = arith.constant 0 : index
    %195 = vector.load %arg15[%c0_92, %c0_93] : memref<1x128xf32, #tpu.memory_space<vmem>>, vector<1x128xf32>
    %196 = vector.broadcast %195 : vector<1x128xf32> to vector<16x128xf32>
    %197 = arith.addf %194, %196 : vector<16x128xf32>
    %c0_94 = arith.constant 0 : index
    %c0_95 = arith.constant 0 : index
    %198 = vector.load %arg16[%c0_94, %c0_95] : memref<128x128xbf16, #tpu.memory_space<vmem>>, vector<128x128xbf16>
    %cst_96 = arith.constant dense<0.000000e+00> : vector<16x128xf32>
    %199 = tpu.matmul %2, %198, %cst_96 {dimension_numbers = #tpu.dot_dimension_numbers<[1], [0], [0], [1], [0, 0, 1, 1], [], []>} : vector<16x128xbf16>, vector<128x128xbf16>, vector<16x128xf32> -> vector<16x128xf32>
    %c0_97 = arith.constant 0 : index
    %c0_98 = arith.constant 0 : index
    %200 = vector.load %arg17[%c0_97, %c0_98] : memref<1x128xf32, #tpu.memory_space<vmem>>, vector<1x128xf32>
    %201 = vector.broadcast %200 : vector<1x128xf32> to vector<16x128xf32>
    %202 = arith.addf %199, %201 : vector<16x128xf32>
    %203 = vector.shape_cast %192 : vector<8x128xf32> to vector<1x8x128xf32>
    %204 = arith.truncf %203 : vector<1x8x128xf32> to vector<1x8x128xbf16>
    %205 = vector.shape_cast %197 : vector<16x128xf32> to vector<1x16x128xf32>
    %206 = arith.truncf %205 : vector<1x16x128xf32> to vector<1x16x128xbf16>
    %207 = vector.shape_cast %202 : vector<16x128xf32> to vector<1x16x128xf32>
    %208 = arith.truncf %207 : vector<1x16x128xf32> to vector<1x16x128xbf16>
    %209 = vector.extract_strided_slice %204 {offsets = [0, 0, 0], sizes = [1, 8, 32], strides = [1, 1, 1]} : vector<1x8x128xbf16> to vector<1x8x32xbf16>
    %210 = vector.extract_strided_slice %206 {offsets = [0, 0, 0], sizes = [1, 16, 32], strides = [1, 1, 1]} : vector<1x16x128xbf16> to vector<1x16x32xbf16>
    "tpu.trace_start"() <{level = 10 : i32, message = "bqe,bke->bqk"}> : () -> ()
    %cst_99 = arith.constant dense<0.000000e+00> : vector<1x8x16xf32>
    %211 = tpu.matmul %209, %210, %cst_99 {dimension_numbers = #tpu.dot_dimension_numbers<[2], [2], [1], [1], [0, 0, 0, 1, 1, 1], [0], [0]>} : vector<1x8x32xbf16>, vector<1x16x32xbf16>, vector<1x8x16xf32> -> vector<1x8x16xf32>
    "tpu.trace_stop"() : () -> ()
    %cst_100 = arith.constant dense<0xFF800000> : vector<1x8xf32>
    %212 = vector.multi_reduction <maximumf>, %211, %cst_100 [2] : vector<1x8x16xf32> to vector<1x8xf32>
    %213 = vector.shape_cast %212 : vector<1x8xf32> to vector<1x8x1xf32>
    %214 = vector.broadcast %213 : vector<1x8x1xf32> to vector<1x8x16xf32>
    %215 = arith.subf %211, %214 : vector<1x8x16xf32>
    %216 = math.exp %215 : vector<1x8x16xf32>
    %cst_101 = arith.constant dense<0.000000e+00> : vector<1x8xf32>
    %217 = vector.multi_reduction <add>, %216, %cst_101 [2] : vector<1x8x16xf32> to vector<1x8xf32>
    %218 = vector.shape_cast %217 : vector<1x8xf32> to vector<1x8x1xf32>
    %219 = tpu.reciprocal %218 {approx = true} : vector<1x8x1xf32> -> vector<1x8x1xf32>
    %220 = vector.broadcast %219 : vector<1x8x1xf32> to vector<1x8x16xf32>
    %221 = arith.mulf %216, %220 : vector<1x8x16xf32>
    %222 = arith.truncf %221 : vector<1x8x16xf32> to vector<1x8x16xbf16>
    %223 = vector.extract_strided_slice %208 {offsets = [0, 0, 0], sizes = [1, 16, 32], strides = [1, 1, 1]} : vector<1x16x128xbf16> to vector<1x16x32xbf16>
    "tpu.trace_start"() <{level = 10 : i32, message = "bqk,bke->bqe"}> : () -> ()
    %cst_102 = arith.constant dense<0.000000e+00> : vector<1x8x32xf32>
    %224 = tpu.matmul %222, %223, %cst_102 {dimension_numbers = #tpu.dot_dimension_numbers<[2], [1], [1], [2], [0, 0, 0, 1, 1, 2], [0], [0]>} : vector<1x8x16xbf16>, vector<1x16x32xbf16>, vector<1x8x32xf32> -> vector<1x8x32xf32>
    "tpu.trace_stop"() : () -> ()
    %225 = vector.extract_strided_slice %204 {offsets = [0, 0, 32], sizes = [1, 8, 32], strides = [1, 1, 1]} : vector<1x8x128xbf16> to vector<1x8x32xbf16>
    %226 = vector.extract_strided_slice %206 {offsets = [0, 0, 32], sizes = [1, 16, 32], strides = [1, 1, 1]} : vector<1x16x128xbf16> to vector<1x16x32xbf16>
    "tpu.trace_start"() <{level = 10 : i32, message = "bqe,bke->bqk"}> : () -> ()
    %cst_103 = arith.constant dense<0.000000e+00> : vector<1x8x16xf32>
    %227 = tpu.matmul %225, %226, %cst_103 {dimension_numbers = #tpu.dot_dimension_numbers<[2], [2], [1], [1], [0, 0, 0, 1, 1, 1], [0], [0]>} : vector<1x8x32xbf16>, vector<1x16x32xbf16>, vector<1x8x16xf32> -> vector<1x8x16xf32>
    "tpu.trace_stop"() : () -> ()
    %cst_104 = arith.constant dense<0xFF800000> : vector<1x8xf32>
    %228 = vector.multi_reduction <maximumf>, %227, %cst_104 [2] : vector<1x8x16xf32> to vector<1x8xf32>
    %229 = vector.shape_cast %228 : vector<1x8xf32> to vector<1x8x1xf32>
    %230 = vector.broadcast %229 : vector<1x8x1xf32> to vector<1x8x16xf32>
    %231 = arith.subf %227, %230 : vector<1x8x16xf32>
    %232 = math.exp %231 : vector<1x8x16xf32>
    %cst_105 = arith.constant dense<0.000000e+00> : vector<1x8xf32>
    %233 = vector.multi_reduction <add>, %232, %cst_105 [2] : vector<1x8x16xf32> to vector<1x8xf32>
    %234 = vector.shape_cast %233 : vector<1x8xf32> to vector<1x8x1xf32>
    %235 = tpu.reciprocal %234 {approx = true} : vector<1x8x1xf32> -> vector<1x8x1xf32>
    %236 = vector.broadcast %235 : vector<1x8x1xf32> to vector<1x8x16xf32>
    %237 = arith.mulf %232, %236 : vector<1x8x16xf32>
    %238 = arith.truncf %237 : vector<1x8x16xf32> to vector<1x8x16xbf16>
    %239 = vector.extract_strided_slice %208 {offsets = [0, 0, 32], sizes = [1, 16, 32], strides = [1, 1, 1]} : vector<1x16x128xbf16> to vector<1x16x32xbf16>
    "tpu.trace_start"() <{level = 10 : i32, message = "bqk,bke->bqe"}> : () -> ()
    %cst_106 = arith.constant dense<0.000000e+00> : vector<1x8x32xf32>
    %240 = tpu.matmul %238, %239, %cst_106 {dimension_numbers = #tpu.dot_dimension_numbers<[2], [1], [1], [2], [0, 0, 0, 1, 1, 2], [0], [0]>} : vector<1x8x16xbf16>, vector<1x16x32xbf16>, vector<1x8x32xf32> -> vector<1x8x32xf32>
    "tpu.trace_stop"() : () -> ()
    %241 = vector.extract_strided_slice %204 {offsets = [0, 0, 64], sizes = [1, 8, 32], strides = [1, 1, 1]} : vector<1x8x128xbf16> to vector<1x8x32xbf16>
    %242 = vector.extract_strided_slice %206 {offsets = [0, 0, 64], sizes = [1, 16, 32], strides = [1, 1, 1]} : vector<1x16x128xbf16> to vector<1x16x32xbf16>
    "tpu.trace_start"() <{level = 10 : i32, message = "bqe,bke->bqk"}> : () -> ()
    %cst_107 = arith.constant dense<0.000000e+00> : vector<1x8x16xf32>
    %243 = tpu.matmul %241, %242, %cst_107 {dimension_numbers = #tpu.dot_dimension_numbers<[2], [2], [1], [1], [0, 0, 0, 1, 1, 1], [0], [0]>} : vector<1x8x32xbf16>, vector<1x16x32xbf16>, vector<1x8x16xf32> -> vector<1x8x16xf32>
    "tpu.trace_stop"() : () -> ()
    %cst_108 = arith.constant dense<0xFF800000> : vector<1x8xf32>
    %244 = vector.multi_reduction <maximumf>, %243, %cst_108 [2] : vector<1x8x16xf32> to vector<1x8xf32>
    %245 = vector.shape_cast %244 : vector<1x8xf32> to vector<1x8x1xf32>
    %246 = vector.broadcast %245 : vector<1x8x1xf32> to vector<1x8x16xf32>
    %247 = arith.subf %243, %246 : vector<1x8x16xf32>
    %248 = math.exp %247 : vector<1x8x16xf32>
    %cst_109 = arith.constant dense<0.000000e+00> : vector<1x8xf32>
    %249 = vector.multi_reduction <add>, %248, %cst_109 [2] : vector<1x8x16xf32> to vector<1x8xf32>
    %250 = vector.shape_cast %249 : vector<1x8xf32> to vector<1x8x1xf32>
    %251 = tpu.reciprocal %250 {approx = true} : vector<1x8x1xf32> -> vector<1x8x1xf32>
    %252 = vector.broadcast %251 : vector<1x8x1xf32> to vector<1x8x16xf32>
    %253 = arith.mulf %248, %252 : vector<1x8x16xf32>
    %254 = arith.truncf %253 : vector<1x8x16xf32> to vector<1x8x16xbf16>
    %255 = vector.extract_strided_slice %208 {offsets = [0, 0, 64], sizes = [1, 16, 32], strides = [1, 1, 1]} : vector<1x16x128xbf16> to vector<1x16x32xbf16>
    "tpu.trace_start"() <{level = 10 : i32, message = "bqk,bke->bqe"}> : () -> ()
    %cst_110 = arith.constant dense<0.000000e+00> : vector<1x8x32xf32>
    %256 = tpu.matmul %254, %255, %cst_110 {dimension_numbers = #tpu.dot_dimension_numbers<[2], [1], [1], [2], [0, 0, 0, 1, 1, 2], [0], [0]>} : vector<1x8x16xbf16>, vector<1x16x32xbf16>, vector<1x8x32xf32> -> vector<1x8x32xf32>
    "tpu.trace_stop"() : () -> ()
    %257 = vector.extract_strided_slice %204 {offsets = [0, 0, 96], sizes = [1, 8, 32], strides = [1, 1, 1]} : vector<1x8x128xbf16> to vector<1x8x32xbf16>
    %258 = vector.extract_strided_slice %206 {offsets = [0, 0, 96], sizes = [1, 16, 32], strides = [1, 1, 1]} : vector<1x16x128xbf16> to vector<1x16x32xbf16>
    "tpu.trace_start"() <{level = 10 : i32, message = "bqe,bke->bqk"}> : () -> ()
    %cst_111 = arith.constant dense<0.000000e+00> : vector<1x8x16xf32>
    %259 = tpu.matmul %257, %258, %cst_111 {dimension_numbers = #tpu.dot_dimension_numbers<[2], [2], [1], [1], [0, 0, 0, 1, 1, 1], [0], [0]>} : vector<1x8x32xbf16>, vector<1x16x32xbf16>, vector<1x8x16xf32> -> vector<1x8x16xf32>
    "tpu.trace_stop"() : () -> ()
    %cst_112 = arith.constant dense<0xFF800000> : vector<1x8xf32>
    %260 = vector.multi_reduction <maximumf>, %259, %cst_112 [2] : vector<1x8x16xf32> to vector<1x8xf32>
    %261 = vector.shape_cast %260 : vector<1x8xf32> to vector<1x8x1xf32>
    %262 = vector.broadcast %261 : vector<1x8x1xf32> to vector<1x8x16xf32>
    %263 = arith.subf %259, %262 : vector<1x8x16xf32>
    %264 = math.exp %263 : vector<1x8x16xf32>
    %cst_113 = arith.constant dense<0.000000e+00> : vector<1x8xf32>
    %265 = vector.multi_reduction <add>, %264, %cst_113 [2] : vector<1x8x16xf32> to vector<1x8xf32>
    %266 = vector.shape_cast %265 : vector<1x8xf32> to vector<1x8x1xf32>
    %267 = tpu.reciprocal %266 {approx = true} : vector<1x8x1xf32> -> vector<1x8x1xf32>
    %268 = vector.broadcast %267 : vector<1x8x1xf32> to vector<1x8x16xf32>
    %269 = arith.mulf %264, %268 : vector<1x8x16xf32>
    %270 = arith.truncf %269 : vector<1x8x16xf32> to vector<1x8x16xbf16>
    %271 = vector.extract_strided_slice %208 {offsets = [0, 0, 96], sizes = [1, 16, 32], strides = [1, 1, 1]} : vector<1x16x128xbf16> to vector<1x16x32xbf16>
    "tpu.trace_start"() <{level = 10 : i32, message = "bqk,bke->bqe"}> : () -> ()
    %cst_114 = arith.constant dense<0.000000e+00> : vector<1x8x32xf32>
    %272 = tpu.matmul %270, %271, %cst_114 {dimension_numbers = #tpu.dot_dimension_numbers<[2], [1], [1], [2], [0, 0, 0, 1, 1, 2], [0], [0]>} : vector<1x8x16xbf16>, vector<1x16x32xbf16>, vector<1x8x32xf32> -> vector<1x8x32xf32>
    "tpu.trace_stop"() : () -> ()
    %273 = tpu.concatenate %224, %240, %256, %272 in 2 : vector<1x8x32xf32>, vector<1x8x32xf32>, vector<1x8x32xf32>, vector<1x8x32xf32> -> vector<1x8x128xf32>
    %274 = vector.shape_cast %273 : vector<1x8x128xf32> to vector<8x128xf32>
    %275 = arith.truncf %274 : vector<8x128xf32> to vector<8x128xbf16>
    %c0_115 = arith.constant 0 : index
    %c0_116 = arith.constant 0 : index
    %276 = vector.load %arg18[%c0_115, %c0_116] : memref<128x128xbf16, #tpu.memory_space<vmem>>, vector<128x128xbf16>
    %cst_117 = arith.constant dense<0.000000e+00> : vector<8x128xf32>
    %277 = tpu.matmul %275, %276, %cst_117 {dimension_numbers = #tpu.dot_dimension_numbers<[1], [0], [0], [1], [0, 0, 1, 1], [], []>} : vector<8x128xbf16>, vector<128x128xbf16>, vector<8x128xf32> -> vector<8x128xf32>
    %c0_118 = arith.constant 0 : index
    %c0_119 = arith.constant 0 : index
    %278 = vector.load %arg19[%c0_118, %c0_119] : memref<1x128xf32, #tpu.memory_space<vmem>>, vector<1x128xf32>
    %279 = vector.broadcast %278 : vector<1x128xf32> to vector<8x128xf32>
    %280 = arith.addf %277, %279 : vector<8x128xf32>
    %281 = vector.shape_cast %280 : vector<8x128xf32> to vector<1x8x128xf32>
    %282 = vector.broadcast %160 : vector<1x1x128xf32> to vector<1x8x128xf32>
    %283 = arith.mulf %282, %281 : vector<1x8x128xf32>
    %284 = arith.addf %151, %283 : vector<1x8x128xf32>
    %285 = vector.broadcast %161 : vector<1x1x128xf32> to vector<1x8x128xf32>
    %286 = arith.addf %284, %285 : vector<1x8x128xf32>
    %c0_120 = arith.constant 0 : index
    %c0_121 = arith.constant 0 : index
    %287 = vector.load %arg38[%c0_120, %c0_121] : memref<128x128xbf16, #tpu.memory_space<vmem>>, vector<128x128xbf16>
    %cst_122 = arith.constant dense<0.000000e+00> : vector<1x128xf32>
    %288 = tpu.matmul %16, %287, %cst_122 {dimension_numbers = #tpu.dot_dimension_numbers<[1], [0], [0], [1], [0, 0, 1, 1], [], []>} : vector<1x128xbf16>, vector<128x128xbf16>, vector<1x128xf32> -> vector<1x128xf32>
    %c0_123 = arith.constant 0 : index
    %c0_124 = arith.constant 0 : index
    %289 = vector.load %arg39[%c0_123, %c0_124] : memref<1x128xf32, #tpu.memory_space<vmem>>, vector<1x128xf32>
    %290 = arith.addf %288, %289 : vector<1x128xf32>
    %c0_125 = arith.constant 0 : index
    %c0_126 = arith.constant 0 : index
    %291 = vector.load %arg40[%c0_125, %c0_126] : memref<128x128xbf16, #tpu.memory_space<vmem>>, vector<128x128xbf16>
    %cst_127 = arith.constant dense<0.000000e+00> : vector<1x128xf32>
    %292 = tpu.matmul %16, %291, %cst_127 {dimension_numbers = #tpu.dot_dimension_numbers<[1], [0], [0], [1], [0, 0, 1, 1], [], []>} : vector<1x128xbf16>, vector<128x128xbf16>, vector<1x128xf32> -> vector<1x128xf32>
    %c0_128 = arith.constant 0 : index
    %c0_129 = arith.constant 0 : index
    %293 = vector.load %arg41[%c0_128, %c0_129] : memref<1x128xf32, #tpu.memory_space<vmem>>, vector<1x128xf32>
    %294 = arith.addf %292, %293 : vector<1x128xf32>
    %295 = vector.shape_cast %290 : vector<1x128xf32> to vector<1x1x128xf32>
    %296 = vector.shape_cast %294 : vector<1x128xf32> to vector<1x1x128xf32>
    %297 = vector.shape_cast %286 : vector<1x8x128xf32> to vector<8x128xf32>
    %c0_130 = arith.constant 0 : index
    %c0_131 = arith.constant 0 : index
    %298 = vector.load %arg28[%c0_130, %c0_131] : memref<1x128xf32, #tpu.memory_space<vmem>>, vector<1x128xf32>
    %c0_132 = arith.constant 0 : index
    %c0_133 = arith.constant 0 : index
    %299 = vector.load %arg29[%c0_132, %c0_133] : memref<1x128xf32, #tpu.memory_space<vmem>>, vector<1x128xf32>
    %cst_134 = arith.constant dense<0.000000e+00> : vector<8xf32>
    %300 = vector.multi_reduction <add>, %297, %cst_134 [1] : vector<8x128xf32> to vector<8xf32>
    %301 = vector.shape_cast %300 : vector<8xf32> to vector<8x1xf32>
    %cst_135 = arith.constant 1.280000e+02 : f32
    %302 = vector.broadcast %cst_135 : f32 to vector<8x1xf32>
    %303 = arith.divf %301, %302 : vector<8x1xf32>
    %304 = vector.broadcast %303 : vector<8x1xf32> to vector<8x128xf32>
    %305 = arith.subf %297, %304 : vector<8x128xf32>
    %306 = arith.mulf %305, %305 : vector<8x128xf32>
    %cst_136 = arith.constant dense<0.000000e+00> : vector<8xf32>
    %307 = vector.multi_reduction <add>, %306, %cst_136 [1] : vector<8x128xf32> to vector<8xf32>
    %308 = vector.shape_cast %307 : vector<8xf32> to vector<8x1xf32>
    %cst_137 = arith.constant 1.280000e+02 : f32
    %309 = vector.broadcast %cst_137 : f32 to vector<8x1xf32>
    %310 = arith.divf %308, %309 : vector<8x1xf32>
    %311 = vector.broadcast %303 : vector<8x1xf32> to vector<8x128xf32>
    %312 = arith.subf %297, %311 : vector<8x128xf32>
    %cst_138 = arith.constant 9.99999974E-6 : f32
    %313 = vector.broadcast %cst_138 : f32 to vector<8x1xf32>
    %314 = arith.addf %310, %313 : vector<8x1xf32>
    %315 = math.rsqrt %314 : vector<8x1xf32>
    %316 = vector.broadcast %315 : vector<8x1xf32> to vector<8x128xf32>
    %317 = arith.mulf %312, %316 : vector<8x128xf32>
    %318 = vector.broadcast %298 : vector<1x128xf32> to vector<8x128xf32>
    %319 = arith.mulf %317, %318 : vector<8x128xf32>
    %320 = vector.broadcast %299 : vector<1x128xf32> to vector<8x128xf32>
    %321 = arith.addf %319, %320 : vector<8x128xf32>
    %322 = arith.truncf %321 : vector<8x128xf32> to vector<8x128xbf16>
    %cst_139 = arith.constant 0.000000e+00 : f32
    %323 = vector.broadcast %cst_139 : f32 to vector<8x128xf32>
    %c0_i32 = arith.constant 0 : i32
    %324 = arith.index_cast %c0_i32 : i32 to index
    %c0_140 = arith.constant 0 : index
    %c0_141 = arith.constant 0 : index
    %325 = vector.load %arg20[%324, %c0_140, %c0_141] : memref<2x128x128xbf16, #tpu.memory_space<vmem>>, vector<1x128x128xbf16>
    %326 = vector.shape_cast %325 : vector<1x128x128xbf16> to vector<128x128xbf16>
    %cst_142 = arith.constant dense<0.000000e+00> : vector<8x128xf32>
    %327 = tpu.matmul %322, %326, %cst_142 {dimension_numbers = #tpu.dot_dimension_numbers<[1], [0], [0], [1], [0, 0, 1, 1], [], []>} : vector<8x128xbf16>, vector<128x128xbf16>, vector<8x128xf32> -> vector<8x128xf32>
    %328 = arith.index_cast %c0_i32 : i32 to index
    %c0_143 = arith.constant 0 : index
    %c0_144 = arith.constant 0 : index
    %329 = vector.load %arg21[%328, %c0_143, %c0_144] : memref<2x1x128xf32, #tpu.memory_space<vmem>>, vector<1x1x128xf32>
    %330 = vector.shape_cast %329 : vector<1x1x128xf32> to vector<1x128xf32>
    %331 = vector.broadcast %330 : vector<1x128xf32> to vector<8x128xf32>
    %332 = arith.addf %327, %331 : vector<8x128xf32>
    %cst_145 = arith.constant 0.000000e+00 : f32
    %333 = vector.broadcast %cst_145 : f32 to vector<8x128xf32>
    %334 = arith.maximumf %332, %333 : vector<8x128xf32>
    %335 = arith.truncf %334 : vector<8x128xf32> to vector<8x128xbf16>
    %336 = arith.index_cast %c0_i32 : i32 to index
    %c0_146 = arith.constant 0 : index
    %c0_147 = arith.constant 0 : index
    %337 = vector.load %arg22[%336, %c0_146, %c0_147] : memref<2x128x128xbf16, #tpu.memory_space<vmem>>, vector<1x128x128xbf16>
    %338 = vector.shape_cast %337 : vector<1x128x128xbf16> to vector<128x128xbf16>
    %cst_148 = arith.constant dense<0.000000e+00> : vector<8x128xf32>
    %339 = tpu.matmul %335, %338, %cst_148 {dimension_numbers = #tpu.dot_dimension_numbers<[1], [0], [0], [1], [0, 0, 1, 1], [], []>} : vector<8x128xbf16>, vector<128x128xbf16>, vector<8x128xf32> -> vector<8x128xf32>
    %340 = arith.addf %323, %339 : vector<8x128xf32>
    %c1_i32 = arith.constant 1 : i32
    %341 = arith.index_cast %c1_i32 : i32 to index
    %c0_149 = arith.constant 0 : index
    %c0_150 = arith.constant 0 : index
    %342 = vector.load %arg20[%341, %c0_149, %c0_150] : memref<2x128x128xbf16, #tpu.memory_space<vmem>>, vector<1x128x128xbf16>
    %343 = vector.shape_cast %342 : vector<1x128x128xbf16> to vector<128x128xbf16>
    %cst_151 = arith.constant dense<0.000000e+00> : vector<8x128xf32>
    %344 = tpu.matmul %322, %343, %cst_151 {dimension_numbers = #tpu.dot_dimension_numbers<[1], [0], [0], [1], [0, 0, 1, 1], [], []>} : vector<8x128xbf16>, vector<128x128xbf16>, vector<8x128xf32> -> vector<8x128xf32>
    %345 = arith.index_cast %c1_i32 : i32 to index
    %c0_152 = arith.constant 0 : index
    %c0_153 = arith.constant 0 : index
    %346 = vector.load %arg21[%345, %c0_152, %c0_153] : memref<2x1x128xf32, #tpu.memory_space<vmem>>, vector<1x1x128xf32>
    %347 = vector.shape_cast %346 : vector<1x1x128xf32> to vector<1x128xf32>
    %348 = vector.broadcast %347 : vector<1x128xf32> to vector<8x128xf32>
    %349 = arith.addf %344, %348 : vector<8x128xf32>
    %cst_154 = arith.constant 0.000000e+00 : f32
    %350 = vector.broadcast %cst_154 : f32 to vector<8x128xf32>
    %351 = arith.maximumf %349, %350 : vector<8x128xf32>
    %352 = arith.truncf %351 : vector<8x128xf32> to vector<8x128xbf16>
    %353 = arith.index_cast %c1_i32 : i32 to index
    %c0_155 = arith.constant 0 : index
    %c0_156 = arith.constant 0 : index
    %354 = vector.load %arg22[%353, %c0_155, %c0_156] : memref<2x128x128xbf16, #tpu.memory_space<vmem>>, vector<1x128x128xbf16>
    %355 = vector.shape_cast %354 : vector<1x128x128xbf16> to vector<128x128xbf16>
    %cst_157 = arith.constant dense<0.000000e+00> : vector<8x128xf32>
    %356 = tpu.matmul %352, %355, %cst_157 {dimension_numbers = #tpu.dot_dimension_numbers<[1], [0], [0], [1], [0, 0, 1, 1], [], []>} : vector<8x128xbf16>, vector<128x128xbf16>, vector<8x128xf32> -> vector<8x128xf32>
    %357 = arith.addf %340, %356 : vector<8x128xf32>
    %c2_i32 = arith.constant 2 : i32
    %c0_158 = arith.constant 0 : index
    %c0_159 = arith.constant 0 : index
    %358 = vector.load %arg23[%c0_158, %c0_159] : memref<1x128xf32, #tpu.memory_space<vmem>>, vector<1x128xf32>
    %359 = vector.broadcast %358 : vector<1x128xf32> to vector<8x128xf32>
    %360 = arith.addf %357, %359 : vector<8x128xf32>
    %361 = vector.shape_cast %360 : vector<8x128xf32> to vector<1x8x128xf32>
    %362 = vector.broadcast %295 : vector<1x1x128xf32> to vector<1x8x128xf32>
    %363 = arith.mulf %362, %361 : vector<1x8x128xf32>
    %364 = arith.addf %286, %363 : vector<1x8x128xf32>
    %365 = vector.broadcast %296 : vector<1x1x128xf32> to vector<1x8x128xf32>
    %366 = arith.addf %364, %365 : vector<1x8x128xf32>
    %c0_160 = arith.constant 0 : index
    %c0_161 = arith.constant 0 : index
    %c0_162 = arith.constant 0 : index
    %367 = vector.load %arg42[%c0_160, %c0_161, %c0_162] : memref<1x8x128xf32, #tpu.memory_space<vmem>>, vector<1x8x128xf32>
    tpu.vector_store %arg42[%c0_160, %c0_161, %c0_162], %366 {strides = array<i32>} : memref<1x8x128xf32, #tpu.memory_space<vmem>>, vector<1x8x128xf32>,
    return
  }
  func.func @transform_0(%arg0: i32) -> (i32, i32, i32) {
    %c0_i32 = arith.constant 0 : i32
    %c0_i32_0 = arith.constant 0 : i32
    %c0_i32_1 = arith.constant 0 : i32
    return %arg0, %c0_i32, %c0_i32_0 : i32, i32, i32
  }
  func.func @transform_1(%arg0: i32) -> (i32, i32, i32) {
    %c0_i32 = arith.constant 0 : i32
    %c0_i32_0 = arith.constant 0 : i32
    %c0_i32_1 = arith.constant 0 : i32
    return %arg0, %c0_i32, %c0_i32_0 : i32, i32, i32
  }
  func.func @transform_2(%arg0: i32) -> (i32, i32, i32) {
    %c0_i32 = arith.constant 0 : i32
    %c0_i32_0 = arith.constant 0 : i32
    %c0_i32_1 = arith.constant 0 : i32
    return %arg0, %c0_i32, %c0_i32_0 : i32, i32, i32
  }
  func.func @transform_3(%arg0: i32) -> (i32, i32) {
    %c0_i32 = arith.constant 0 : i32
    %c0_i32_0 = arith.constant 0 : i32
    %c0_i32_1 = arith.constant 0 : i32
    return %c0_i32, %c0_i32_0 : i32, i32
  }
  func.func @transform_4(%arg0: i32) -> (i32, i32) {
    %c0_i32 = arith.constant 0 : i32
    %c0_i32_0 = arith.constant 0 : i32
    %c0_i32_1 = arith.constant 0 : i32
    return %c0_i32, %c0_i32_0 : i32, i32
  }
  func.func @transform_5(%arg0: i32) -> (i32, i32) {
    %c0_i32 = arith.constant 0 : i32
    %c0_i32_0 = arith.constant 0 : i32
    %c0_i32_1 = arith.constant 0 : i32
    return %c0_i32, %c0_i32_0 : i32, i32
  }
  func.func @transform_6(%arg0: i32) -> (i32, i32) {
    %c0_i32 = arith.constant 0 : i32
    %c0_i32_0 = arith.constant 0 : i32
    %c0_i32_1 = arith.constant 0 : i32
    return %c0_i32, %c0_i32_0 : i32, i32
  }
  func.func @transform_7(%arg0: i32) -> (i32, i32) {
    %c0_i32 = arith.constant 0 : i32
    %c0_i32_0 = arith.constant 0 : i32
    %c0_i32_1 = arith.constant 0 : i32
    return %c0_i32, %c0_i32_0 : i32, i32
  }
  func.func @transform_8(%arg0: i32) -> (i32, i32) {
    %c0_i32 = arith.constant 0 : i32
    %c0_i32_0 = arith.constant 0 : i32
    %c0_i32_1 = arith.constant 0 : i32
    return %c0_i32, %c0_i32_0 : i32, i32
  }
  func.func @transform_9(%arg0: i32) -> (i32, i32) {
    %c0_i32 = arith.constant 0 : i32
    %c0_i32_0 = arith.constant 0 : i32
    %c0_i32_1 = arith.constant 0 : i32
    return %c0_i32, %c0_i32_0 : i32, i32
  }
  func.func @transform_10(%arg0: i32) -> (i32, i32) {
    %c0_i32 = arith.constant 0 : i32
    %c0_i32_0 = arith.constant 0 : i32
    %c0_i32_1 = arith.constant 0 : i32
    return %c0_i32, %c0_i32_0 : i32, i32
  }
  func.func @transform_11(%arg0: i32) -> (i32, i32) {
    %c0_i32 = arith.constant 0 : i32
    %c0_i32_0 = arith.constant 0 : i32
    %c0_i32_1 = arith.constant 0 : i32
    return %c0_i32, %c0_i32_0 : i32, i32
  }
  func.func @transform_12(%arg0: i32) -> (i32, i32) {
    %c0_i32 = arith.constant 0 : i32
    %c0_i32_0 = arith.constant 0 : i32
    %c0_i32_1 = arith.constant 0 : i32
    return %c0_i32, %c0_i32_0 : i32, i32
  }
  func.func @transform_13(%arg0: i32) -> (i32, i32) {
    %c0_i32 = arith.constant 0 : i32
    %c0_i32_0 = arith.constant 0 : i32
    %c0_i32_1 = arith.constant 0 : i32
    return %c0_i32, %c0_i32_0 : i32, i32
  }
  func.func @transform_14(%arg0: i32) -> (i32, i32) {
    %c0_i32 = arith.constant 0 : i32
    %c0_i32_0 = arith.constant 0 : i32
    %c0_i32_1 = arith.constant 0 : i32
    return %c0_i32, %c0_i32_0 : i32, i32
  }
  func.func @transform_15(%arg0: i32) -> (i32, i32) {
    %c0_i32 = arith.constant 0 : i32
    %c0_i32_0 = arith.constant 0 : i32
    %c0_i32_1 = arith.constant 0 : i32
    return %c0_i32, %c0_i32_0 : i32, i32
  }
  func.func @transform_16(%arg0: i32) -> (i32, i32) {
    %c0_i32 = arith.constant 0 : i32
    %c0_i32_0 = arith.constant 0 : i32
    %c0_i32_1 = arith.constant 0 : i32
    return %c0_i32, %c0_i32_0 : i32, i32
  }
  func.func @transform_17(%arg0: i32) -> (i32, i32) {
    %c0_i32 = arith.constant 0 : i32
    %c0_i32_0 = arith.constant 0 : i32
    %c0_i32_1 = arith.constant 0 : i32
    return %c0_i32, %c0_i32_0 : i32, i32
  }
  func.func @transform_18(%arg0: i32) -> (i32, i32) {
    %c0_i32 = arith.constant 0 : i32
    %c0_i32_0 = arith.constant 0 : i32
    %c0_i32_1 = arith.constant 0 : i32
    return %c0_i32, %c0_i32_0 : i32, i32
  }
  func.func @transform_19(%arg0: i32) -> (i32, i32, i32) {
    %c0_i32 = arith.constant 0 : i32
    %c0_i32_0 = arith.constant 0 : i32
    %c0_i32_1 = arith.constant 0 : i32
    %c0_i32_2 = arith.constant 0 : i32
    return %c0_i32, %c0_i32_0, %c0_i32_1 : i32, i32, i32
  }
  func.func @transform_20(%arg0: i32) -> (i32, i32, i32) {
    %c0_i32 = arith.constant 0 : i32
    %c0_i32_0 = arith.constant 0 : i32
    %c0_i32_1 = arith.constant 0 : i32
    %c0_i32_2 = arith.constant 0 : i32
    return %c0_i32, %c0_i32_0, %c0_i32_1 : i32, i32, i32
  }
  func.func @transform_21(%arg0: i32) -> (i32, i32, i32) {
    %c0_i32 = arith.constant 0 : i32
    %c0_i32_0 = arith.constant 0 : i32
    %c0_i32_1 = arith.constant 0 : i32
    %c0_i32_2 = arith.constant 0 : i32
    return %c0_i32, %c0_i32_0, %c0_i32_1 : i32, i32, i32
  }
  func.func @transform_22(%arg0: i32) -> (i32, i32) {
    %c0_i32 = arith.constant 0 : i32
    %c0_i32_0 = arith.constant 0 : i32
    %c0_i32_1 = arith.constant 0 : i32
    return %c0_i32, %c0_i32_0 : i32, i32
  }
  func.func @transform_23(%arg0: i32) -> (i32, i32) {
    %c0_i32 = arith.constant 0 : i32
    %c0_i32_0 = arith.constant 0 : i32
    %c0_i32_1 = arith.constant 0 : i32
    return %c0_i32, %c0_i32_0 : i32, i32
  }
  func.func @transform_24(%arg0: i32) -> (i32, i32) {
    %c0_i32 = arith.constant 0 : i32
    %c0_i32_0 = arith.constant 0 : i32
    %c0_i32_1 = arith.constant 0 : i32
    return %c0_i32, %c0_i32_0 : i32, i32
  }
  func.func @transform_25(%arg0: i32) -> (i32, i32) {
    %c0_i32 = arith.constant 0 : i32
    %c0_i32_0 = arith.constant 0 : i32
    %c0_i32_1 = arith.constant 0 : i32
    return %c0_i32, %c0_i32_0 : i32, i32
  }
  func.func @transform_26(%arg0: i32) -> (i32, i32) {
    %c0_i32 = arith.constant 0 : i32
    %c0_i32_0 = arith.constant 0 : i32
    %c0_i32_1 = arith.constant 0 : i32
    return %c0_i32, %c0_i32_0 : i32, i32
  }
  func.func @transform_27(%arg0: i32) -> (i32, i32) {
    %c0_i32 = arith.constant 0 : i32
    %c0_i32_0 = arith.constant 0 : i32
    %c0_i32_1 = arith.constant 0 : i32
    return %c0_i32, %c0_i32_0 : i32, i32
  }
  func.func @transform_28(%arg0: i32) -> (i32, i32) {
    %c0_i32 = arith.constant 0 : i32
    %c0_i32_0 = arith.constant 0 : i32
    %c0_i32_1 = arith.constant 0 : i32
    return %c0_i32, %c0_i32_0 : i32, i32
  }
  func.func @transform_29(%arg0: i32) -> (i32, i32) {
    %c0_i32 = arith.constant 0 : i32
    %c0_i32_0 = arith.constant 0 : i32
    %c0_i32_1 = arith.constant 0 : i32
    return %c0_i32, %c0_i32_0 : i32, i32
  }
  func.func @transform_30(%arg0: i32) -> (i32, i32) {
    %c0_i32 = arith.constant 0 : i32
    %c0_i32_0 = arith.constant 0 : i32
    %c0_i32_1 = arith.constant 0 : i32
    return %c0_i32, %c0_i32_0 : i32, i32
  }
  func.func @transform_31(%arg0: i32) -> (i32, i32) {
    %c0_i32 = arith.constant 0 : i32
    %c0_i32_0 = arith.constant 0 : i32
    %c0_i32_1 = arith.constant 0 : i32
    return %c0_i32, %c0_i32_0 : i32, i32
  }
  func.func @transform_32(%arg0: i32) -> (i32, i32) {
    %c0_i32 = arith.constant 0 : i32
    %c0_i32_0 = arith.constant 0 : i32
    %c0_i32_1 = arith.constant 0 : i32
    return %c0_i32, %c0_i32_0 : i32, i32
  }
  func.func @transform_33(%arg0: i32) -> (i32, i32) {
    %c0_i32 = arith.constant 0 : i32
    %c0_i32_0 = arith.constant 0 : i32
    %c0_i32_1 = arith.constant 0 : i32
    return %c0_i32, %c0_i32_0 : i32, i32
  }
  func.func @transform_34(%arg0: i32) -> (i32, i32) {
    %c0_i32 = arith.constant 0 : i32
    %c0_i32_0 = arith.constant 0 : i32
    %c0_i32_1 = arith.constant 0 : i32
    return %c0_i32, %c0_i32_0 : i32, i32
  }
  func.func @transform_35(%arg0: i32) -> (i32, i32) {
    %c0_i32 = arith.constant 0 : i32
    %c0_i32_0 = arith.constant 0 : i32
    %c0_i32_1 = arith.constant 0 : i32
    return %c0_i32, %c0_i32_0 : i32, i32
  }
  func.func @transform_36(%arg0: i32) -> (i32, i32) {
    %c0_i32 = arith.constant 0 : i32
    %c0_i32_0 = arith.constant 0 : i32
    %c0_i32_1 = arith.constant 0 : i32
    return %c0_i32, %c0_i32_0 : i32, i32
  }
  func.func @transform_37(%arg0: i32) -> (i32, i32) {
    %c0_i32 = arith.constant 0 : i32
    %c0_i32_0 = arith.constant 0 : i32
    %c0_i32_1 = arith.constant 0 : i32
    return %c0_i32, %c0_i32_0 : i32, i32
  }
  func.func @transform_38(%arg0: i32) -> (i32, i32) {
    %c0_i32 = arith.constant 0 : i32
    %c0_i32_0 = arith.constant 0 : i32
    %c0_i32_1 = arith.constant 0 : i32
    return %c0_i32, %c0_i32_0 : i32, i32
  }
  func.func @transform_39(%arg0: i32) -> (i32, i32) {
    %c0_i32 = arith.constant 0 : i32
    %c0_i32_0 = arith.constant 0 : i32
    %c0_i32_1 = arith.constant 0 : i32
    return %c0_i32, %c0_i32_0 : i32, i32
  }
  func.func @transform_40(%arg0: i32) -> (i32, i32) {
    %c0_i32 = arith.constant 0 : i32
    %c0_i32_0 = arith.constant 0 : i32
    %c0_i32_1 = arith.constant 0 : i32
    return %c0_i32, %c0_i32_0 : i32, i32
  }
  func.func @transform_41(%arg0: i32) -> (i32, i32, i32) {
    %c0_i32 = arith.constant 0 : i32
    %c0_i32_0 = arith.constant 0 : i32
    %c0_i32_1 = arith.constant 0 : i32
    return %arg0, %c0_i32, %c0_i32_0 : i32, i32, i32
  }
}

</mosaic_0001>

<llo_original>
// kernel: tpu_custom_call.1
$region0: #{tpu_custom_call.1}
  #allocation0 [shape = 'u32[]', space=smem, size = 0x4, offset = 0x4, fixed_abs, tag = 'smem constant byte address 0x4 - core index']
  #allocation1 [shape = 'u32[144,128]{1,0:T(1,128)}', space=vmem, size = 0x12000, scoped, tag = 'internal scratch']
  %s0 = inlined_call_operand.smem [shape: u32[42], index: -1, kind: input, shape index: {}]
  %s1 = sld [smem:[%s0]]
  %s2 = scalar_lea.smem %s0, 1
  %s3 = sld [smem:[%s2]]
  %s4 = scalar_lea.smem %s0, 2
  %s5 = sld [smem:[%s4]]
  %s6 = scalar_lea.smem %s0, 3
  %s7 = sld [smem:[%s6]]
  %s8 = scalar_lea.smem %s0, 4
  %s9 = sld [smem:[%s8]]
  %s10 = scalar_lea.smem %s0, 5
  %s11 = sld [smem:[%s10]]
  %s12 = scalar_lea.smem %s0, 6
  %s13 = sld [smem:[%s12]]
  %s14 = scalar_lea.smem %s0, 7
  %s15 = sld [smem:[%s14]]
  %s16 = scalar_lea.smem %s0, 8
  %s17 = sld [smem:[%s16]]
  %s18 = scalar_lea.smem %s0, 9
  %s19 = sld [smem:[%s18]]
  %s20 = scalar_lea.smem %s0, 10
  %s21 = sld [smem:[%s20]]
  %s22 = scalar_lea.smem %s0, 11
  %s23 = sld [smem:[%s22]]
  %s24 = scalar_lea.smem %s0, 12
  %s25 = sld [smem:[%s24]]
  %s26 = scalar_lea.smem %s0, 13
  %s27 = sld [smem:[%s26]]
  %s28 = scalar_lea.smem %s0, 14
  %s29 = sld [smem:[%s28]]
  %s30 = scalar_lea.smem %s0, 15
  %s31 = sld [smem:[%s30]]
  %s32 = scalar_lea.smem %s0, 16
  %s33 = sld [smem:[%s32]]
  %s34 = scalar_lea.smem %s0, 17
  %s35 = sld [smem:[%s34]]
  %s36 = scalar_lea.smem %s0, 18
  %s37 = sld [smem:[%s36]]
  %s38 = scalar_lea.smem %s0, 19
  %s39 = sld [smem:[%s38]]
  %s40 = scalar_lea.smem %s0, 20
  %s41 = sld [smem:[%s40]]
  %s42 = scalar_lea.smem %s0, 21
  %s43 = sld [smem:[%s42]]
  %s44 = scalar_lea.smem %s0, 22
  %s45 = sld [smem:[%s44]]
  %s46 = scalar_lea.smem %s0, 23
  %s47 = sld [smem:[%s46]]
  %s48 = scalar_lea.smem %s0, 24
  %s49 = sld [smem:[%s48]]
  %s50 = scalar_lea.smem %s0, 25
  %s51 = sld [smem:[%s50]]
  %s52 = scalar_lea.smem %s0, 26
  %s53 = sld [smem:[%s52]]
  %s54 = scalar_lea.smem %s0, 27
  %s55 = sld [smem:[%s54]]
  %s56 = scalar_lea.smem %s0, 28
  %s57 = sld [smem:[%s56]]
  %s58 = scalar_lea.smem %s0, 29
  %s59 = sld [smem:[%s58]]
  %s60 = scalar_lea.smem %s0, 30
  %s61 = sld [smem:[%s60]]
  %s62 = scalar_lea.smem %s0, 31
  %s63 = sld [smem:[%s62]]
  %s64 = scalar_lea.smem %s0, 32
  %s65 = sld [smem:[%s64]]
  %s66 = scalar_lea.smem %s0, 33
  %s67 = sld [smem:[%s66]]
  %s68 = scalar_lea.smem %s0, 34
  %s69 = sld [smem:[%s68]]
  %s70 = scalar_lea.smem %s0, 35
  %s71 = sld [smem:[%s70]]
  %s72 = scalar_lea.smem %s0, 36
  %s73 = sld [smem:[%s72]]
  %s74 = scalar_lea.smem %s0, 37
  %s75 = sld [smem:[%s74]]
  %s76 = scalar_lea.smem %s0, 38
  %s77 = sld [smem:[%s76]]
  %s78 = scalar_lea.smem %s0, 39
  %s79 = sld [smem:[%s78]]
  %s80 = scalar_lea.smem %s0, 40
  %s81 = sld [smem:[%s80]]
  %s82 = scalar_lea.smem %s0, 41
  %s83 = sld [smem:[%s82]]
  %s84 = sld [smem:[#allocation0]]
  $region341: #{tpu_custom_call.1} parent=0
    _
  %s86 = ssub.s32 1, %s84
  %s87 = scalar_select 0, %s86, %s84
  $region1: #{tpu_custom_call.1} parent=0
    #allocation2 [shape = 'u8[8192]{0}', space=vmem, size = 0x2000, scoped, tag = 'input window, operand 0']
    #allocation3 [shape = 's32[2]{0}', space=sflag, size = 0x8, scoped, tag = 'scoped memory for tpu_custom_call.1']
    #allocation4 [shape = 's32[2]{0}', space=sflag, size = 0x8, scoped, tag = 'scoped memory for tpu_custom_call.1']
    #allocation5 [shape = 'u8[8192]{0}', space=vmem, size = 0x2000, scoped, tag = 'input window, operand 1']
    #allocation6 [shape = 's32[2]{0}', space=sflag, size = 0x8, scoped, tag = 'scoped memory for tpu_custom_call.1']
    #allocation7 [shape = 'u8[32768]{0}', space=vmem, size = 0x8000, scoped, tag = 'input window, operand 3, single buffered']
    #allocation8 [shape = 'u8[32768]{0}', space=vmem, size = 0x8000, scoped, tag = 'input window, operand 5, single buffered']
    #allocation9 [shape = 's32[1]{0}', space=sflag, size = 0x4, scoped, tag = 'scoped memory for tpu_custom_call.1']
    #allocation10 [shape = 'u8[512]{0}', space=vmem, size = 0x400, scoped, tag = 'input window, operand 6, single buffered']
    #allocation11 [shape = 'u8[32768]{0}', space=vmem, size = 0x8000, scoped, tag = 'input window, operand 7, single buffered']
    #allocation12 [shape = 's32[1]{0}', space=sflag, size = 0x4, scoped, tag = 'scoped memory for tpu_custom_call.1']
    #allocation13 [shape = 'u8[512]{0}', space=vmem, size = 0x400, scoped, tag = 'input window, operand 8, single buffered']
    #allocation14 [shape = 'u8[32768]{0}', space=vmem, size = 0x8000, scoped, tag = 'input window, operand 9, single buffered']
    #allocation15 [shape = 's32[1]{0}', space=sflag, size = 0x4, scoped, tag = 'scoped memory for tpu_custom_call.1']
    #allocation16 [shape = 'u8[512]{0}', space=vmem, size = 0x400, scoped, tag = 'input window, operand 10, single buffered']
    #allocation17 [shape = 'u8[32768]{0}', space=vmem, size = 0x8000, scoped, tag = 'input window, operand 11, single buffered']
    #allocation18 [shape = 's32[1]{0}', space=sflag, size = 0x4, scoped, tag = 'scoped memory for tpu_custom_call.1']
    #allocation19 [shape = 'u8[512]{0}', space=vmem, size = 0x400, scoped, tag = 'input window, operand 12, single buffered']
    #allocation20 [shape = 'u8[32768]{0}', space=vmem, size = 0x8000, scoped, tag = 'input window, operand 13, single buffered']
    #allocation21 [shape = 's32[1]{0}', space=sflag, size = 0x4, scoped, tag = 'scoped memory for tpu_custom_call.1']
    #allocation22 [shape = 'u8[512]{0}', space=vmem, size = 0x400, scoped, tag = 'input window, operand 14, single buffered']
    #allocation23 [shape = 'u8[32768]{0}', space=vmem, size = 0x8000, scoped, tag = 'input window, operand 15, single buffered']
    #allocation24 [shape = 's32[1]{0}', space=sflag, size = 0x4, scoped, tag = 'scoped memory for tpu_custom_call.1']
    #allocation25 [shape = 'u8[512]{0}', space=vmem, size = 0x400, scoped, tag = 'input window, operand 16, single buffered']
    #allocation26 [shape = 'u8[32768]{0}', space=vmem, size = 0x8000, scoped, tag = 'input window, operand 17, single buffered']
    #allocation27 [shape = 's32[1]{0}', space=sflag, size = 0x4, scoped, tag = 'scoped memory for tpu_custom_call.1']
    #allocation28 [shape = 'u8[512]{0}', space=vmem, size = 0x400, scoped, tag = 'input window, operand 18, single buffered']
    #allocation29 [shape = 'u8[65536]{0}', space=vmem, size = 0x10000, scoped, tag = 'input window, operand 19, single buffered']
    #allocation30 [shape = 's32[1]{0}', space=sflag, size = 0x4, scoped, tag = 'scoped memory for tpu_custom_call.1']
    #allocation31 [shape = 'u8[1024]{0}', space=vmem, size = 0x400, scoped, tag = 'input window, operand 20, single buffered']
    #allocation32 [shape = 'u8[65536]{0}', space=vmem, size = 0x10000, scoped, tag = 'input window, operand 21, single buffered']
    #allocation33 [shape = 's32[1]{0}', space=sflag, size = 0x4, scoped, tag = 'scoped memory for tpu_custom_call.1']
    #allocation34 [shape = 'u8[512]{0}', space=vmem, size = 0x400, scoped, tag = 'input window, operand 22, single buffered']
    #allocation35 [shape = 'u8[512]{0}', space=vmem, size = 0x400, scoped, tag = 'input window, operand 23, single buffered']
    #allocation36 [shape = 's32[1]{0}', space=sflag, size = 0x4, scoped, tag = 'scoped memory for tpu_custom_call.1']
    #allocation37 [shape = 'u8[512]{0}', space=vmem, size = 0x400, scoped, tag = 'input window, operand 24, single buffered']
    #allocation38 [shape = 'u8[512]{0}', space=vmem, size = 0x400, scoped, tag = 'input window, operand 25, single buffered']
    #allocation39 [shape = 's32[1]{0}', space=sflag, size = 0x4, scoped, tag = 'scoped memory for tpu_custom_call.1']
    #allocation40 [shape = 'u8[512]{0}', space=vmem, size = 0x400, scoped, tag = 'input window, operand 26, single buffered']
    #allocation41 [shape = 'u8[512]{0}', space=vmem, size = 0x400, scoped, tag = 'input window, operand 27, single buffered']
    #allocation42 [shape = 's32[1]{0}', space=sflag, size = 0x4, scoped, tag = 'scoped memory for tpu_custom_call.1']
    #allocation43 [shape = 'u8[512]{0}', space=vmem, size = 0x400, scoped, tag = 'input window, operand 28, single buffered']
    #allocation44 [shape = 'u8[32768]{0}', space=vmem, size = 0x8000, scoped, tag = 'input window, operand 29, single buffered']
    #allocation45 [shape = 's32[1]{0}', space=sflag, size = 0x4, scoped, tag = 'scoped memory for tpu_custom_call.1']
    #allocation46 [shape = 'u8[512]{0}', space=vmem, size = 0x400, scoped, tag = 'input window, operand 30, single buffered']
    #allocation47 [shape = 'u8[32768]{0}', space=vmem, size = 0x8000, scoped, tag = 'input window, operand 31, single buffered']
    #allocation48 [shape = 's32[1]{0}', space=sflag, size = 0x4, scoped, tag = 'scoped memory for tpu_custom_call.1']
    #allocation49 [shape = 'u8[512]{0}', space=vmem, size = 0x400, scoped, tag = 'input window, operand 32, single buffered']
    #allocation50 [shape = 'u8[32768]{0}', space=vmem, size = 0x8000, scoped, tag = 'input window, operand 33, single buffered']
    #allocation51 [shape = 's32[1]{0}', space=sflag, size = 0x4, scoped, tag = 'scoped memory for tpu_custom_call.1']
    #allocation52 [shape = 'u8[512]{0}', space=vmem, size = 0x400, scoped, tag = 'input window, operand 34, single buffered']
    #allocation53 [shape = 'u8[32768]{0}', space=vmem, size = 0x8000, scoped, tag = 'input window, operand 35, single buffered']
    #allocation54 [shape = 's32[1]{0}', space=sflag, size = 0x4, scoped, tag = 'scoped memory for tpu_custom_call.1']
    #allocation55 [shape = 'u8[512]{0}', space=vmem, size = 0x400, scoped, tag = 'input window, operand 36, single buffered']
    #allocation56 [shape = 'u8[32768]{0}', space=vmem, size = 0x8000, scoped, tag = 'input window, operand 39, single buffered']
    #allocation57 [shape = 's32[1]{0}', space=sflag, size = 0x4, scoped, tag = 'scoped memory for tpu_custom_call.1']
    #allocation58 [shape = 'u8[8192]{0}', space=vmem, size = 0x2000, scoped, tag = 'output window, operand 0']
    %88 = vsyncpa [#allocation3], 0
    %s89 = scalar_lea.sflag [#allocation3], 1
    %90 = vsyncpa %s89, 0
    %91 = vsyncpa [#allocation6], 0
    %s92 = scalar_lea.sflag [#allocation6], 1
    %93 = vsyncpa %s92, 0
    %94 = vsyncpa [#allocation9], 0
    %95 = vsyncpa [#allocation12], 0
    %96 = vsyncpa [#allocation15], 0
    %97 = vsyncpa [#allocation18], 0
    %98 = vsyncpa [#allocation21], 0
    %99 = vsyncpa [#allocation24], 0
    %100 = vsyncpa [#allocation27], 0
    %101 = vsyncpa [#allocation30], 0
    %102 = vsyncpa [#allocation33], 0
    %103 = vsyncpa [#allocation36], 0
    %104 = vsyncpa [#allocation39], 0
    %105 = vsyncpa [#allocation42], 0
    %106 = vsyncpa [#allocation45], 0
    %107 = vsyncpa [#allocation48], 0
    %108 = vsyncpa [#allocation51], 0
    %109 = vsyncpa [#allocation54], 0
    %110 = vsyncpa [#allocation57], 0
    %111 = vsyncpa [#allocation4], 0
    %s112 = scalar_lea.sflag [#allocation4], 1
    %113 = vsyncpa %s112, 0
    loop: start=0, step=1, limit=4
    $region2: #{tpu_custom_call.1} parent=1 // loop_pre_header
      _
    $region3: #{tpu_custom_call.1} parent=1 // loop_header
      %s115 = sphi 0, %s119
      %p116 = scmp.ge.s32.totalorder %s115, 4
      %s125 = sphi 0, %s127
      %s128 = sphi 0, %s125
      %s129 = sphi 0, %s128
      %s145 = sphi 0, %s129
      %s151 = sphi 0, %s153
      %s154 = sphi 0, %s151
      %s155 = sphi 0, %s154
      %s171 = sphi 0, %s155
      %s177 = sphi 0, %s179
      %s180 = sphi 0, %s177
      %s181 = sphi 0, %s180
      %s197 = sphi 0, %s181
      %s201 = sphi 0, %s201
      %s203 = sphi 0, %s201
      %s204 = sphi 0, %s203
      %s218 = sphi 0, %s204
      %s222 = sphi 0, %s222
      %s224 = sphi 0, %s222
      %s225 = sphi 0, %s224
      %s239 = sphi 0, %s225
      %s243 = sphi 0, %s243
      %s245 = sphi 0, %s243
      %s246 = sphi 0, %s245
      %s260 = sphi 0, %s246
      %s264 = sphi 0, %s264
      %s266 = sphi 0, %s264
      %s267 = sphi 0, %s266
      %s281 = sphi 0, %s267
      %s285 = sphi 0, %s285
      %s287 = sphi 0, %s285
      %s288 = sphi 0, %s287
      %s302 = sphi 0, %s288
      %s306 = sphi 0, %s306
      %s308 = sphi 0, %s306
      %s309 = sphi 0, %s308
      %s323 = sphi 0, %s309
      %s327 = sphi 0, %s327
      %s329 = sphi 0, %s327
      %s330 = sphi 0, %s329
      %s344 = sphi 0, %s330
      %s348 = sphi 0, %s348
      %s350 = sphi 0, %s348
      %s351 = sphi 0, %s350
      %s365 = sphi 0, %s351
      %s369 = sphi 0, %s369
      %s371 = sphi 0, %s369
      %s372 = sphi 0, %s371
      %s386 = sphi 0, %s372
      %s390 = sphi 0, %s390
      %s392 = sphi 0, %s390
      %s393 = sphi 0, %s392
      %s407 = sphi 0, %s393
      %s411 = sphi 0, %s411
      %s413 = sphi 0, %s411
      %s414 = sphi 0, %s413
      %s428 = sphi 0, %s414
      %s432 = sphi 0, %s432
      %s434 = sphi 0, %s432
      %s435 = sphi 0, %s434
      %s449 = sphi 0, %s435
      %s453 = sphi 0, %s453
      %s455 = sphi 0, %s453
      %s456 = sphi 0, %s455
      %s470 = sphi 0, %s456
      %s474 = sphi 0, %s474
      %s476 = sphi 0, %s474
      %s477 = sphi 0, %s476
      %s491 = sphi 0, %s477
      %s495 = sphi 0, %s495
      %s497 = sphi 0, %s495
      %s498 = sphi 0, %s497
      %s512 = sphi 0, %s498
      %s516 = sphi 0, %s516
      %s518 = sphi 0, %s516
      %s519 = sphi 0, %s518
      %s533 = sphi 0, %s519
      %s537 = sphi 0, %s537
      %s539 = sphi 0, %s537
      %s540 = sphi 0, %s539
      %s554 = sphi 0, %s540
      %s558 = sphi 0, %s558
      %s560 = sphi 0, %s558
      %s561 = sphi 0, %s560
      %s575 = sphi 0, %s561
      %s579 = sphi 0, %s579
      %s581 = sphi 0, %s579
      %s582 = sphi 0, %s581
      %s596 = sphi 0, %s582
      %s600 = sphi 0, %s600
      %s602 = sphi 0, %s600
      %s603 = sphi 0, %s602
      %s617 = sphi 0, %s603
      %s621 = sphi 0, %s621
      %s623 = sphi 0, %s621
      %s624 = sphi 0, %s623
      %s638 = sphi 0, %s624
      %s642 = sphi 0, %s642
      %s644 = sphi 0, %s642
      %s645 = sphi 0, %s644
      %s659 = sphi 0, %s645
      %s663 = sphi 0, %s663
      %s665 = sphi 0, %s663
      %s666 = sphi 0, %s665
      %s680 = sphi 0, %s666
      %s684 = sphi 0, %s684
      %s686 = sphi 0, %s684
      %s687 = sphi 0, %s686
      %s701 = sphi 0, %s687
      %s705 = sphi 0, %s705
      %s707 = sphi 0, %s705
      %s708 = sphi 0, %s707
      %s722 = sphi 0, %s708
      %s726 = sphi 0, %s726
      %s728 = sphi 0, %s726
      %s729 = sphi 0, %s728
      %s743 = sphi 0, %s729
      %s747 = sphi 0, %s747
      %s749 = sphi 0, %s747
      %s750 = sphi 0, %s749
      %s764 = sphi 0, %s750
      %s768 = sphi 0, %s768
      %s770 = sphi 0, %s768
      %s771 = sphi 0, %s770
      %s785 = sphi 0, %s771
      %s789 = sphi 0, %s789
      %s791 = sphi 0, %s789
      %s792 = sphi 0, %s791
      %s806 = sphi 0, %s792
      %s810 = sphi 0, %s810
      %s812 = sphi 0, %s810
      %s813 = sphi 0, %s812
      %s827 = sphi 0, %s813
      %s831 = sphi 0, %s831
      %s833 = sphi 0, %s831
      %s834 = sphi 0, %s833
      %s848 = sphi 0, %s834
      %s852 = sphi 0, %s852
      %s854 = sphi 0, %s852
      %s855 = sphi 0, %s854
      %s869 = sphi 0, %s855
      %s873 = sphi 0, %s873
      %s875 = sphi 0, %s873
      %s876 = sphi 0, %s875
      %s890 = sphi 0, %s876
      %s894 = sphi 0, %s894
      %s896 = sphi 0, %s894
      %s897 = sphi 0, %s896
      %s911 = sphi 0, %s897
      %s915 = sphi 0, %s915
      %s917 = sphi 0, %s915
      %s918 = sphi 0, %s917
      %s932 = sphi 0, %s918
      %s936 = sphi 0, %s936
      %s938 = sphi 0, %s936
      %s939 = sphi 0, %s938
      %s953 = sphi 0, %s939
      %s957 = sphi 0, %s957
      %s959 = sphi 0, %s957
      %s960 = sphi 0, %s959
      %s974 = sphi 0, %s960
      %s978 = sphi 0, %s978
      %s980 = sphi 0, %s978
      %s981 = sphi 0, %s980
      %s995 = sphi 0, %s981
      %s1001 = sphi 0, %s1003
      %s1004 = sphi 0, %s1001
      %s1005 = sphi 0, %s1004
      %s1021 = sphi 0, %s1005
    $region4: #{tpu_custom_call.1} parent=1 // loop_header_branch
      %118 = sbr.rel (%p116) target = $region8
    $region5: #{tpu_custom_call.1} parent=1 // loop_body
      %s120 = ssub.s32 %s115, 1
      %s121 = ssub.s32 %s115, 2
      %s122 = sadd.s32 %s115, 1
      %s123 = ssub.s32 %s115, %s122
      %p124 = scmp.eq.s32.totalorder %s123, 0
      %s126 = sadd.s32 %s125, 1
      %s127 = scalar_select %p124, %s125, %s126
      %p130 = pneg %p124
      %p131 = scmp.eq.s32.totalorder %s115, 1
      %p132 = por %p130, %p131
      %p133 = scmp.ne.s32.totalorder %s125, %s128
      %p134 = scmp.eq.s32.totalorder %s115, 0
      %p135 = por %p133, %p134
      %p136 = scmp.ne.s32.totalorder %s125, %s128
      %p137 = scmp.eq.s32.totalorder %s120, 1
      %p138 = por %p136, %p137
      %p139 = scmp.ne.s32.totalorder %s128, %s129
      %p140 = scmp.eq.s32.totalorder %s120, 0
      %p141 = por %p139, %p140
      %p142 = scmp.ne.s32.totalorder %s128, %s129
      %p143 = scmp.eq.s32.totalorder %s121, 1
      %p144 = por %p142, %p143
      %p146 = scmp.ne.s32.totalorder %s129, %s145
      %p147 = scmp.eq.s32.totalorder %s121, 0
      %p148 = por %p146, %p147
      %s149 = ssub.s32 %s115, %s122
      %p150 = scmp.eq.s32.totalorder %s149, 0
      %s152 = sadd.s32 %s151, 1
      %s153 = scalar_select %p150, %s151, %s152
      %p156 = pneg %p150
      %p157 = scmp.eq.s32.totalorder %s115, 1
      %p158 = por %p156, %p157
      %p159 = scmp.ne.s32.totalorder %s151, %s154
      %p160 = scmp.eq.s32.totalorder %s115, 0
      %p161 = por %p159, %p160
      %p162 = scmp.ne.s32.totalorder %s151, %s154
      %p163 = scmp.eq.s32.totalorder %s120, 1
      %p164 = por %p162, %p163
      %p165 = scmp.ne.s32.totalorder %s154, %s155
      %p166 = scmp.eq.s32.totalorder %s120, 0
      %p167 = por %p165, %p166
      %p168 = scmp.ne.s32.totalorder %s154, %s155
      %p169 = scmp.eq.s32.totalorder %s121, 1
      %p170 = por %p168, %p169
      %p172 = scmp.ne.s32.totalorder %s155, %s171
      %p173 = scmp.eq.s32.totalorder %s121, 0
      %p174 = por %p172, %p173
      %s175 = ssub.s32 %s115, %s122
      %p176 = scmp.eq.s32.totalorder %s175, 0
      %s178 = sadd.s32 %s177, 1
      %s179 = scalar_select %p176, %s177, %s178
      %p182 = pneg %p176
      %p183 = scmp.eq.s32.totalorder %s115, 1
      %p184 = por %p182, %p183
      %p185 = scmp.ne.s32.totalorder %s177, %s180
      %p186 = scmp.eq.s32.totalorder %s115, 0
      %p187 = por %p185, %p186
      %p188 = scmp.ne.s32.totalorder %s177, %s180
      %p189 = scmp.eq.s32.totalorder %s120, 1
      %p190 = por %p188, %p189
      %p191 = scmp.ne.s32.totalorder %s180, %s181
      %p192 = scmp.eq.s32.totalorder %s120, 0
      %p193 = por %p191, %p192
      %p194 = scmp.ne.s32.totalorder %s180, %s181
      %p195 = scmp.eq.s32.totalorder %s121, 1
      %p196 = por %p194, %p195
      %p198 = scmp.ne.s32.totalorder %s181, %s197
      %p199 = scmp.eq.s32.totalorder %s121, 0
      %p200 = por %p198, %p199
      %s202 = sadd.s32 %s201, 1
      %p205 = scmp.eq.s32.totalorder %s115, 1
      %p206 = scmp.ne.s32.totalorder %s201, %s203
      %p207 = scmp.eq.s32.totalorder %s115, 0
      %p208 = por %p206, %p207
      %p209 = scmp.ne.s32.totalorder %s201, %s203
      %p210 = scmp.eq.s32.totalorder %s120, 1
      %p211 = por %p209, %p210
      %p212 = scmp.ne.s32.totalorder %s203, %s204
      %p213 = scmp.eq.s32.totalorder %s120, 0
      %p214 = por %p212, %p213
      %p215 = scmp.ne.s32.totalorder %s203, %s204
      %p216 = scmp.eq.s32.totalorder %s121, 1
      %p217 = por %p215, %p216
      %p219 = scmp.ne.s32.totalorder %s204, %s218
      %p220 = scmp.eq.s32.totalorder %s121, 0
      %p221 = por %p219, %p220
      %s223 = sadd.s32 %s222, 1
      %p226 = scmp.eq.s32.totalorder %s115, 1
      %p227 = scmp.ne.s32.totalorder %s222, %s224
      %p228 = scmp.eq.s32.totalorder %s115, 0
      %p229 = por %p227, %p228
      %p230 = scmp.ne.s32.totalorder %s222, %s224
      %p231 = scmp.eq.s32.totalorder %s120, 1
      %p232 = por %p230, %p231
      %p233 = scmp.ne.s32.totalorder %s224, %s225
      %p234 = scmp.eq.s32.totalorder %s120, 0
      %p235 = por %p233, %p234
      %p236 = scmp.ne.s32.totalorder %s224, %s225
      %p237 = scmp.eq.s32.totalorder %s121, 1
      %p238 = por %p236, %p237
      %p240 = scmp.ne.s32.totalorder %s225, %s239
      %p241 = scmp.eq.s32.totalorder %s121, 0
      %p242 = por %p240, %p241
      %s244 = sadd.s32 %s243, 1
      %p247 = scmp.eq.s32.totalorder %s115, 1
      %p248 = scmp.ne.s32.totalorder %s243, %s245
      %p249 = scmp.eq.s32.totalorder %s115, 0
      %p250 = por %p248, %p249
      %p251 = scmp.ne.s32.totalorder %s243, %s245
      %p252 = scmp.eq.s32.totalorder %s120, 1
      %p253 = por %p251, %p252
      %p254 = scmp.ne.s32.totalorder %s245, %s246
      %p255 = scmp.eq.s32.totalorder %s120, 0
      %p256 = por %p254, %p255
      %p257 = scmp.ne.s32.totalorder %s245, %s246
      %p258 = scmp.eq.s32.totalorder %s121, 1
      %p259 = por %p257, %p258
      %p261 = scmp.ne.s32.totalorder %s246, %s260
      %p262 = scmp.eq.s32.totalorder %s121, 0
      %p263 = por %p261, %p262
      %s265 = sadd.s32 %s264, 1
      %p268 = scmp.eq.s32.totalorder %s115, 1
      %p269 = scmp.ne.s32.totalorder %s264, %s266
      %p270 = scmp.eq.s32.totalorder %s115, 0
      %p271 = por %p269, %p270
      %p272 = scmp.ne.s32.totalorder %s264, %s266
      %p273 = scmp.eq.s32.totalorder %s120, 1
      %p274 = por %p272, %p273
      %p275 = scmp.ne.s32.totalorder %s266, %s267
      %p276 = scmp.eq.s32.totalorder %s120, 0
      %p277 = por %p275, %p276
      %p278 = scmp.ne.s32.totalorder %s266, %s267
      %p279 = scmp.eq.s32.totalorder %s121, 1
      %p280 = por %p278, %p279
      %p282 = scmp.ne.s32.totalorder %s267, %s281
      %p283 = scmp.eq.s32.totalorder %s121, 0
      %p284 = por %p282, %p283
      %s286 = sadd.s32 %s285, 1
      %p289 = scmp.eq.s32.totalorder %s115, 1
      %p290 = scmp.ne.s32.totalorder %s285, %s287
      %p291 = scmp.eq.s32.totalorder %s115, 0
      %p292 = por %p290, %p291
      %p293 = scmp.ne.s32.totalorder %s285, %s287
      %p294 = scmp.eq.s32.totalorder %s120, 1
      %p295 = por %p293, %p294
      %p296 = scmp.ne.s32.totalorder %s287, %s288
      %p297 = scmp.eq.s32.totalorder %s120, 0
      %p298 = por %p296, %p297
      %p299 = scmp.ne.s32.totalorder %s287, %s288
      %p300 = scmp.eq.s32.totalorder %s121, 1
      %p301 = por %p299, %p300
      %p303 = scmp.ne.s32.totalorder %s288, %s302
      %p304 = scmp.eq.s32.totalorder %s121, 0
      %p305 = por %p303, %p304
      %s307 = sadd.s32 %s306, 1
      %p310 = scmp.eq.s32.totalorder %s115, 1
      %p311 = scmp.ne.s32.totalorder %s306, %s308
      %p312 = scmp.eq.s32.totalorder %s115, 0
      %p313 = por %p311, %p312
      %p314 = scmp.ne.s32.totalorder %s306, %s308
      %p315 = scmp.eq.s32.totalorder %s120, 1
      %p316 = por %p314, %p315
      %p317 = scmp.ne.s32.totalorder %s308, %s309
      %p318 = scmp.eq.s32.totalorder %s120, 0
      %p319 = por %p317, %p318
      %p320 = scmp.ne.s32.totalorder %s308, %s309
      %p321 = scmp.eq.s32.totalorder %s121, 1
      %p322 = por %p320, %p321
      %p324 = scmp.ne.s32.totalorder %s309, %s323
      %p325 = scmp.eq.s32.totalorder %s121, 0
      %p326 = por %p324, %p325
      %s328 = sadd.s32 %s327, 1
      %p331 = scmp.eq.s32.totalorder %s115, 1
      %p332 = scmp.ne.s32.totalorder %s327, %s329
      %p333 = scmp.eq.s32.totalorder %s115, 0
      %p334 = por %p332, %p333
      %p335 = scmp.ne.s32.totalorder %s327, %s329
      %p336 = scmp.eq.s32.totalorder %s120, 1
      %p337 = por %p335, %p336
      %p338 = scmp.ne.s32.totalorder %s329, %s330
      %p339 = scmp.eq.s32.totalorder %s120, 0
      %p340 = por %p338, %p339
      %p341 = scmp.ne.s32.totalorder %s329, %s330
      %p342 = scmp.eq.s32.totalorder %s121, 1
      %p343 = por %p341, %p342
      %p345 = scmp.ne.s32.totalorder %s330, %s344
      %p346 = scmp.eq.s32.totalorder %s121, 0
      %p347 = por %p345, %p346
      %s349 = sadd.s32 %s348, 1
      %p352 = scmp.eq.s32.totalorder %s115, 1
      %p353 = scmp.ne.s32.totalorder %s348, %s350
      %p354 = scmp.eq.s32.totalorder %s115, 0
      %p355 = por %p353, %p354
      %p356 = scmp.ne.s32.totalorder %s348, %s350
      %p357 = scmp.eq.s32.totalorder %s120, 1
      %p358 = por %p356, %p357
      %p359 = scmp.ne.s32.totalorder %s350, %s351
      %p360 = scmp.eq.s32.totalorder %s120, 0
      %p361 = por %p359, %p360
      %p362 = scmp.ne.s32.totalorder %s350, %s351
      %p363 = scmp.eq.s32.totalorder %s121, 1
      %p364 = por %p362, %p363
      %p366 = scmp.ne.s32.totalorder %s351, %s365
      %p367 = scmp.eq.s32.totalorder %s121, 0
      %p368 = por %p366, %p367
      %s370 = sadd.s32 %s369, 1
      %p373 = scmp.eq.s32.totalorder %s115, 1
      %p374 = scmp.ne.s32.totalorder %s369, %s371
      %p375 = scmp.eq.s32.totalorder %s115, 0
      %p376 = por %p374, %p375
      %p377 = scmp.ne.s32.totalorder %s369, %s371
      %p378 = scmp.eq.s32.totalorder %s120, 1
      %p379 = por %p377, %p378
      %p380 = scmp.ne.s32.totalorder %s371, %s372
      %p381 = scmp.eq.s32.totalorder %s120, 0
      %p382 = por %p380, %p381
      %p383 = scmp.ne.s32.totalorder %s371, %s372
      %p384 = scmp.eq.s32.totalorder %s121, 1
      %p385 = por %p383, %p384
      %p387 = scmp.ne.s32.totalorder %s372, %s386
      %p388 = scmp.eq.s32.totalorder %s121, 0
      %p389 = por %p387, %p388
      %s391 = sadd.s32 %s390, 1
      %p394 = scmp.eq.s32.totalorder %s115, 1
      %p395 = scmp.ne.s32.totalorder %s390, %s392
      %p396 = scmp.eq.s32.totalorder %s115, 0
      %p397 = por %p395, %p396
      %p398 = scmp.ne.s32.totalorder %s390, %s392
      %p399 = scmp.eq.s32.totalorder %s120, 1
      %p400 = por %p398, %p399
      %p401 = scmp.ne.s32.totalorder %s392, %s393
      %p402 = scmp.eq.s32.totalorder %s120, 0
      %p403 = por %p401, %p402
      %p404 = scmp.ne.s32.totalorder %s392, %s393
      %p405 = scmp.eq.s32.totalorder %s121, 1
      %p406 = por %p404, %p405
      %p408 = scmp.ne.s32.totalorder %s393, %s407
      %p409 = scmp.eq.s32.totalorder %s121, 0
      %p410 = por %p408, %p409
      %s412 = sadd.s32 %s411, 1
      %p415 = scmp.eq.s32.totalorder %s115, 1
      %p416 = scmp.ne.s32.totalorder %s411, %s413
      %p417 = scmp.eq.s32.totalorder %s115, 0
      %p418 = por %p416, %p417
      %p419 = scmp.ne.s32.totalorder %s411, %s413
      %p420 = scmp.eq.s32.totalorder %s120, 1
      %p421 = por %p419, %p420
      %p422 = scmp.ne.s32.totalorder %s413, %s414
      %p423 = scmp.eq.s32.totalorder %s120, 0
      %p424 = por %p422, %p423
      %p425 = scmp.ne.s32.totalorder %s413, %s414
      %p426 = scmp.eq.s32.totalorder %s121, 1
      %p427 = por %p425, %p426
      %p429 = scmp.ne.s32.totalorder %s414, %s428
      %p430 = scmp.eq.s32.totalorder %s121, 0
      %p431 = por %p429, %p430
      %s433 = sadd.s32 %s432, 1
      %p436 = scmp.eq.s32.totalorder %s115, 1
      %p437 = scmp.ne.s32.totalorder %s432, %s434
      %p438 = scmp.eq.s32.totalorder %s115, 0
      %p439 = por %p437, %p438
      %p440 = scmp.ne.s32.totalorder %s432, %s434
      %p441 = scmp.eq.s32.totalorder %s120, 1
      %p442 = por %p440, %p441
      %p443 = scmp.ne.s32.totalorder %s434, %s435
      %p444 = scmp.eq.s32.totalorder %s120, 0
      %p445 = por %p443, %p444
      %p446 = scmp.ne.s32.totalorder %s434, %s435
      %p447 = scmp.eq.s32.totalorder %s121, 1
      %p448 = por %p446, %p447
      %p450 = scmp.ne.s32.totalorder %s435, %s449
      %p451 = scmp.eq.s32.totalorder %s121, 0
      %p452 = por %p450, %p451
      %s454 = sadd.s32 %s453, 1
      %p457 = scmp.eq.s32.totalorder %s115, 1
      %p458 = scmp.ne.s32.totalorder %s453, %s455
      %p459 = scmp.eq.s32.totalorder %s115, 0
      %p460 = por %p458, %p459
      %p461 = scmp.ne.s32.totalorder %s453, %s455
      %p462 = scmp.eq.s32.totalorder %s120, 1
      %p463 = por %p461, %p462
      %p464 = scmp.ne.s32.totalorder %s455, %s456
      %p465 = scmp.eq.s32.totalorder %s120, 0
      %p466 = por %p464, %p465
      %p467 = scmp.ne.s32.totalorder %s455, %s456
      %p468 = scmp.eq.s32.totalorder %s121, 1
      %p469 = por %p467, %p468
      %p471 = scmp.ne.s32.totalorder %s456, %s470
      %p472 = scmp.eq.s32.totalorder %s121, 0
      %p473 = por %p471, %p472
      %s475 = sadd.s32 %s474, 1
      %p478 = scmp.eq.s32.totalorder %s115, 1
      %p479 = scmp.ne.s32.totalorder %s474, %s476
      %p480 = scmp.eq.s32.totalorder %s115, 0
      %p481 = por %p479, %p480
      %p482 = scmp.ne.s32.totalorder %s474, %s476
      %p483 = scmp.eq.s32.totalorder %s120, 1
      %p484 = por %p482, %p483
      %p485 = scmp.ne.s32.totalorder %s476, %s477
      %p486 = scmp.eq.s32.totalorder %s120, 0
      %p487 = por %p485, %p486
      %p488 = scmp.ne.s32.totalorder %s476, %s477
      %p489 = scmp.eq.s32.totalorder %s121, 1
      %p490 = por %p488, %p489
      %p492 = scmp.ne.s32.totalorder %s477, %s491
      %p493 = scmp.eq.s32.totalorder %s121, 0
      %p494 = por %p492, %p493
      %s496 = sadd.s32 %s495, 1
      %p499 = scmp.eq.s32.totalorder %s115, 1
      %p500 = scmp.ne.s32.totalorder %s495, %s497
      %p501 = scmp.eq.s32.totalorder %s115, 0
      %p502 = por %p500, %p501
      %p503 = scmp.ne.s32.totalorder %s495, %s497
      %p504 = scmp.eq.s32.totalorder %s120, 1
      %p505 = por %p503, %p504
      %p506 = scmp.ne.s32.totalorder %s497, %s498
      %p507 = scmp.eq.s32.totalorder %s120, 0
      %p508 = por %p506, %p507
      %p509 = scmp.ne.s32.totalorder %s497, %s498
      %p510 = scmp.eq.s32.totalorder %s121, 1
      %p511 = por %p509, %p510
      %p513 = scmp.ne.s32.totalorder %s498, %s512
      %p514 = scmp.eq.s32.totalorder %s121, 0
      %p515 = por %p513, %p514
      %s517 = sadd.s32 %s516, 1
      %p520 = scmp.eq.s32.totalorder %s115, 1
      %p521 = scmp.ne.s32.totalorder %s516, %s518
      %p522 = scmp.eq.s32.totalorder %s115, 0
      %p523 = por %p521, %p522
      %p524 = scmp.ne.s32.totalorder %s516, %s518
      %p525 = scmp.eq.s32.totalorder %s120, 1
      %p526 = por %p524, %p525
      %p527 = scmp.ne.s32.totalorder %s518, %s519
      %p528 = scmp.eq.s32.totalorder %s120, 0
      %p529 = por %p527, %p528
      %p530 = scmp.ne.s32.totalorder %s518, %s519
      %p531 = scmp.eq.s32.totalorder %s121, 1
      %p532 = por %p530, %p531
      %p534 = scmp.ne.s32.totalorder %s519, %s533
      %p535 = scmp.eq.s32.totalorder %s121, 0
      %p536 = por %p534, %p535
      %s538 = sadd.s32 %s537, 1
      %p541 = scmp.eq.s32.totalorder %s115, 1
      %p542 = scmp.ne.s32.totalorder %s537, %s539
      %p543 = scmp.eq.s32.totalorder %s115, 0
      %p544 = por %p542, %p543
      %p545 = scmp.ne.s32.totalorder %s537, %s539
      %p546 = scmp.eq.s32.totalorder %s120, 1
      %p547 = por %p545, %p546
      %p548 = scmp.ne.s32.totalorder %s539, %s540
      %p549 = scmp.eq.s32.totalorder %s120, 0
      %p550 = por %p548, %p549
      %p551 = scmp.ne.s32.totalorder %s539, %s540
      %p552 = scmp.eq.s32.totalorder %s121, 1
      %p553 = por %p551, %p552
      %p555 = scmp.ne.s32.totalorder %s540, %s554
      %p556 = scmp.eq.s32.totalorder %s121, 0
      %p557 = por %p555, %p556
      %s559 = sadd.s32 %s558, 1
      %p562 = scmp.eq.s32.totalorder %s115, 1
      %p563 = scmp.ne.s32.totalorder %s558, %s560
      %p564 = scmp.eq.s32.totalorder %s115, 0
      %p565 = por %p563, %p564
      %p566 = scmp.ne.s32.totalorder %s558, %s560
      %p567 = scmp.eq.s32.totalorder %s120, 1
      %p568 = por %p566, %p567
      %p569 = scmp.ne.s32.totalorder %s560, %s561
      %p570 = scmp.eq.s32.totalorder %s120, 0
      %p571 = por %p569, %p570
      %p572 = scmp.ne.s32.totalorder %s560, %s561
      %p573 = scmp.eq.s32.totalorder %s121, 1
      %p574 = por %p572, %p573
      %p576 = scmp.ne.s32.totalorder %s561, %s575
      %p577 = scmp.eq.s32.totalorder %s121, 0
      %p578 = por %p576, %p577
      %s580 = sadd.s32 %s579, 1
      %p583 = scmp.eq.s32.totalorder %s115, 1
      %p584 = scmp.ne.s32.totalorder %s579, %s581
      %p585 = scmp.eq.s32.totalorder %s115, 0
      %p586 = por %p584, %p585
      %p587 = scmp.ne.s32.totalorder %s579, %s581
      %p588 = scmp.eq.s32.totalorder %s120, 1
      %p589 = por %p587, %p588
      %p590 = scmp.ne.s32.totalorder %s581, %s582
      %p591 = scmp.eq.s32.totalorder %s120, 0
      %p592 = por %p590, %p591
      %p593 = scmp.ne.s32.totalorder %s581, %s582
      %p594 = scmp.eq.s32.totalorder %s121, 1
      %p595 = por %p593, %p594
      %p597 = scmp.ne.s32.totalorder %s582, %s596
      %p598 = scmp.eq.s32.totalorder %s121, 0
      %p599 = por %p597, %p598
      %s601 = sadd.s32 %s600, 1
      %p604 = scmp.eq.s32.totalorder %s115, 1
      %p605 = scmp.ne.s32.totalorder %s600, %s602
      %p606 = scmp.eq.s32.totalorder %s115, 0
      %p607 = por %p605, %p606
      %p608 = scmp.ne.s32.totalorder %s600, %s602
      %p609 = scmp.eq.s32.totalorder %s120, 1
      %p610 = por %p608, %p609
      %p611 = scmp.ne.s32.totalorder %s602, %s603
      %p612 = scmp.eq.s32.totalorder %s120, 0
      %p613 = por %p611, %p612
      %p614 = scmp.ne.s32.totalorder %s602, %s603
      %p615 = scmp.eq.s32.totalorder %s121, 1
      %p616 = por %p614, %p615
      %p618 = scmp.ne.s32.totalorder %s603, %s617
      %p619 = scmp.eq.s32.totalorder %s121, 0
      %p620 = por %p618, %p619
      %s622 = sadd.s32 %s621, 1
      %p625 = scmp.eq.s32.totalorder %s115, 1
      %p626 = scmp.ne.s32.totalorder %s621, %s623
      %p627 = scmp.eq.s32.totalorder %s115, 0
      %p628 = por %p626, %p627
      %p629 = scmp.ne.s32.totalorder %s621, %s623
      %p630 = scmp.eq.s32.totalorder %s120, 1
      %p631 = por %p629, %p630
      %p632 = scmp.ne.s32.totalorder %s623, %s624
      %p633 = scmp.eq.s32.totalorder %s120, 0
      %p634 = por %p632, %p633
      %p635 = scmp.ne.s32.totalorder %s623, %s624
      %p636 = scmp.eq.s32.totalorder %s121, 1
      %p637 = por %p635, %p636
      %p639 = scmp.ne.s32.totalorder %s624, %s638
      %p640 = scmp.eq.s32.totalorder %s121, 0
      %p641 = por %p639, %p640
      %s643 = sadd.s32 %s642, 1
      %p646 = scmp.eq.s32.totalorder %s115, 1
      %p647 = scmp.ne.s32.totalorder %s642, %s644
      %p648 = scmp.eq.s32.totalorder %s115, 0
      %p649 = por %p647, %p648
      %p650 = scmp.ne.s32.totalorder %s642, %s644
      %p651 = scmp.eq.s32.totalorder %s120, 1
      %p652 = por %p650, %p651
      %p653 = scmp.ne.s32.totalorder %s644, %s645
      %p654 = scmp.eq.s32.totalorder %s120, 0
      %p655 = por %p653, %p654
      %p656 = scmp.ne.s32.totalorder %s644, %s645
      %p657 = scmp.eq.s32.totalorder %s121, 1
      %p658 = por %p656, %p657
      %p660 = scmp.ne.s32.totalorder %s645, %s659
      %p661 = scmp.eq.s32.totalorder %s121, 0
      %p662 = por %p660, %p661
      %s664 = sadd.s32 %s663, 1
      %p667 = scmp.eq.s32.totalorder %s115, 1
      %p668 = scmp.ne.s32.totalorder %s663, %s665
      %p669 = scmp.eq.s32.totalorder %s115, 0
      %p670 = por %p668, %p669
      %p671 = scmp.ne.s32.totalorder %s663, %s665
      %p672 = scmp.eq.s32.totalorder %s120, 1
      %p673 = por %p671, %p672
      %p674 = scmp.ne.s32.totalorder %s665, %s666
      %p675 = scmp.eq.s32.totalorder %s120, 0
      %p676 = por %p674, %p675
      %p677 = scmp.ne.s32.totalorder %s665, %s666
      %p678 = scmp.eq.s32.totalorder %s121, 1
      %p679 = por %p677, %p678
      %p681 = scmp.ne.s32.totalorder %s666, %s680
      %p682 = scmp.eq.s32.totalorder %s121, 0
      %p683 = por %p681, %p682
      %s685 = sadd.s32 %s684, 1
      %p688 = scmp.eq.s32.totalorder %s115, 1
      %p689 = scmp.ne.s32.totalorder %s684, %s686
      %p690 = scmp.eq.s32.totalorder %s115, 0
      %p691 = por %p689, %p690
      %p692 = scmp.ne.s32.totalorder %s684, %s686
      %p693 = scmp.eq.s32.totalorder %s120, 1
      %p694 = por %p692, %p693
      %p695 = scmp.ne.s32.totalorder %s686, %s687
      %p696 = scmp.eq.s32.totalorder %s120, 0
      %p697 = por %p695, %p696
      %p698 = scmp.ne.s32.totalorder %s686, %s687
      %p699 = scmp.eq.s32.totalorder %s121, 1
      %p700 = por %p698, %p699
      %p702 = scmp.ne.s32.totalorder %s687, %s701
      %p703 = scmp.eq.s32.totalorder %s121, 0
      %p704 = por %p702, %p703
      %s706 = sadd.s32 %s705, 1
      %p709 = scmp.eq.s32.totalorder %s115, 1
      %p710 = scmp.ne.s32.totalorder %s705, %s707
      %p711 = scmp.eq.s32.totalorder %s115, 0
      %p712 = por %p710, %p711
      %p713 = scmp.ne.s32.totalorder %s705, %s707
      %p714 = scmp.eq.s32.totalorder %s120, 1
      %p715 = por %p713, %p714
      %p716 = scmp.ne.s32.totalorder %s707, %s708
      %p717 = scmp.eq.s32.totalorder %s120, 0
      %p718 = por %p716, %p717
      %p719 = scmp.ne.s32.totalorder %s707, %s708
      %p720 = scmp.eq.s32.totalorder %s121, 1
      %p721 = por %p719, %p720
      %p723 = scmp.ne.s32.totalorder %s708, %s722
      %p724 = scmp.eq.s32.totalorder %s121, 0
      %p725 = por %p723, %p724
      %s727 = sadd.s32 %s726, 1
      %p730 = scmp.eq.s32.totalorder %s115, 1
      %p731 = scmp.ne.s32.totalorder %s726, %s728
      %p732 = scmp.eq.s32.totalorder %s115, 0
      %p733 = por %p731, %p732
      %p734 = scmp.ne.s32.totalorder %s726, %s728
      %p735 = scmp.eq.s32.totalorder %s120, 1
      %p736 = por %p734, %p735
      %p737 = scmp.ne.s32.totalorder %s728, %s729
      %p738 = scmp.eq.s32.totalorder %s120, 0
      %p739 = por %p737, %p738
      %p740 = scmp.ne.s32.totalorder %s728, %s729
      %p741 = scmp.eq.s32.totalorder %s121, 1
      %p742 = por %p740, %p741
      %p744 = scmp.ne.s32.totalorder %s729, %s743
      %p745 = scmp.eq.s32.totalorder %s121, 0
      %p746 = por %p744, %p745
      %s748 = sadd.s32 %s747, 1
      %p751 = scmp.eq.s32.totalorder %s115, 1
      %p752 = scmp.ne.s32.totalorder %s747, %s749
      %p753 = scmp.eq.s32.totalorder %s115, 0
      %p754 = por %p752, %p753
      %p755 = scmp.ne.s32.totalorder %s747, %s749
      %p756 = scmp.eq.s32.totalorder %s120, 1
      %p757 = por %p755, %p756
      %p758 = scmp.ne.s32.totalorder %s749, %s750
      %p759 = scmp.eq.s32.totalorder %s120, 0
      %p760 = por %p758, %p759
      %p761 = scmp.ne.s32.totalorder %s749, %s750
      %p762 = scmp.eq.s32.totalorder %s121, 1
      %p763 = por %p761, %p762
      %p765 = scmp.ne.s32.totalorder %s750, %s764
      %p766 = scmp.eq.s32.totalorder %s121, 0
      %p767 = por %p765, %p766
      %s769 = sadd.s32 %s768, 1
      %p772 = scmp.eq.s32.totalorder %s115, 1
      %p773 = scmp.ne.s32.totalorder %s768, %s770
      %p774 = scmp.eq.s32.totalorder %s115, 0
      %p775 = por %p773, %p774
      %p776 = scmp.ne.s32.totalorder %s768, %s770
      %p777 = scmp.eq.s32.totalorder %s120, 1
      %p778 = por %p776, %p777
      %p779 = scmp.ne.s32.totalorder %s770, %s771
      %p780 = scmp.eq.s32.totalorder %s120, 0
      %p781 = por %p779, %p780
      %p782 = scmp.ne.s32.totalorder %s770, %s771
      %p783 = scmp.eq.s32.totalorder %s121, 1
      %p784 = por %p782, %p783
      %p786 = scmp.ne.s32.totalorder %s771, %s785
      %p787 = scmp.eq.s32.totalorder %s121, 0
      %p788 = por %p786, %p787
      %s790 = sadd.s32 %s789, 1
      %p793 = scmp.eq.s32.totalorder %s115, 1
      %p794 = scmp.ne.s32.totalorder %s789, %s791
      %p795 = scmp.eq.s32.totalorder %s115, 0
      %p796 = por %p794, %p795
      %p797 = scmp.ne.s32.totalorder %s789, %s791
      %p798 = scmp.eq.s32.totalorder %s120, 1
      %p799 = por %p797, %p798
      %p800 = scmp.ne.s32.totalorder %s791, %s792
      %p801 = scmp.eq.s32.totalorder %s120, 0
      %p802 = por %p800, %p801
      %p803 = scmp.ne.s32.totalorder %s791, %s792
      %p804 = scmp.eq.s32.totalorder %s121, 1
      %p805 = por %p803, %p804
      %p807 = scmp.ne.s32.totalorder %s792, %s806
      %p808 = scmp.eq.s32.totalorder %s121, 0
      %p809 = por %p807, %p808
      %s811 = sadd.s32 %s810, 1
      %p814 = scmp.eq.s32.totalorder %s115, 1
      %p815 = scmp.ne.s32.totalorder %s810, %s812
      %p816 = scmp.eq.s32.totalorder %s115, 0
      %p817 = por %p815, %p816
      %p818 = scmp.ne.s32.totalorder %s810, %s812
      %p819 = scmp.eq.s32.totalorder %s120, 1
      %p820 = por %p818, %p819
      %p821 = scmp.ne.s32.totalorder %s812, %s813
      %p822 = scmp.eq.s32.totalorder %s120, 0
      %p823 = por %p821, %p822
      %p824 = scmp.ne.s32.totalorder %s812, %s813
      %p825 = scmp.eq.s32.totalorder %s121, 1
      %p826 = por %p824, %p825
      %p828 = scmp.ne.s32.totalorder %s813, %s827
      %p829 = scmp.eq.s32.totalorder %s121, 0
      %p830 = por %p828, %p829
      %s832 = sadd.s32 %s831, 1
      %p835 = scmp.eq.s32.totalorder %s115, 1
      %p836 = scmp.ne.s32.totalorder %s831, %s833
      %p837 = scmp.eq.s32.totalorder %s115, 0
      %p838 = por %p836, %p837
      %p839 = scmp.ne.s32.totalorder %s831, %s833
      %p840 = scmp.eq.s32.totalorder %s120, 1
      %p841 = por %p839, %p840
      %p842 = scmp.ne.s32.totalorder %s833, %s834
      %p843 = scmp.eq.s32.totalorder %s120, 0
      %p844 = por %p842, %p843
      %p845 = scmp.ne.s32.totalorder %s833, %s834
      %p846 = scmp.eq.s32.totalorder %s121, 1
      %p847 = por %p845, %p846
      %p849 = scmp.ne.s32.totalorder %s834, %s848
      %p850 = scmp.eq.s32.totalorder %s121, 0
      %p851 = por %p849, %p850
      %s853 = sadd.s32 %s852, 1
      %p856 = scmp.eq.s32.totalorder %s115, 1
      %p857 = scmp.ne.s32.totalorder %s852, %s854
      %p858 = scmp.eq.s32.totalorder %s115, 0
      %p859 = por %p857, %p858
      %p860 = scmp.ne.s32.totalorder %s852, %s854
      %p861 = scmp.eq.s32.totalorder %s120, 1
      %p862 = por %p860, %p861
      %p863 = scmp.ne.s32.totalorder %s854, %s855
      %p864 = scmp.eq.s32.totalorder %s120, 0
      %p865 = por %p863, %p864
      %p866 = scmp.ne.s32.totalorder %s854, %s855
      %p867 = scmp.eq.s32.totalorder %s121, 1
      %p868 = por %p866, %p867
      %p870 = scmp.ne.s32.totalorder %s855, %s869
      %p871 = scmp.eq.s32.totalorder %s121, 0
      %p872 = por %p870, %p871
      %s874 = sadd.s32 %s873, 1
      %p877 = scmp.eq.s32.totalorder %s115, 1
      %p878 = scmp.ne.s32.totalorder %s873, %s875
      %p879 = scmp.eq.s32.totalorder %s115, 0
      %p880 = por %p878, %p879
      %p881 = scmp.ne.s32.totalorder %s873, %s875
      %p882 = scmp.eq.s32.totalorder %s120, 1
      %p883 = por %p881, %p882
      %p884 = scmp.ne.s32.totalorder %s875, %s876
      %p885 = scmp.eq.s32.totalorder %s120, 0
      %p886 = por %p884, %p885
      %p887 = scmp.ne.s32.totalorder %s875, %s876
      %p888 = scmp.eq.s32.totalorder %s121, 1
      %p889 = por %p887, %p888
      %p891 = scmp.ne.s32.totalorder %s876, %s890
      %p892 = scmp.eq.s32.totalorder %s121, 0
      %p893 = por %p891, %p892
      %s895 = sadd.s32 %s894, 1
      %p898 = scmp.eq.s32.totalorder %s115, 1
      %p899 = scmp.ne.s32.totalorder %s894, %s896
      %p900 = scmp.eq.s32.totalorder %s115, 0
      %p901 = por %p899, %p900
      %p902 = scmp.ne.s32.totalorder %s894, %s896
      %p903 = scmp.eq.s32.totalorder %s120, 1
      %p904 = por %p902, %p903
      %p905 = scmp.ne.s32.totalorder %s896, %s897
      %p906 = scmp.eq.s32.totalorder %s120, 0
      %p907 = por %p905, %p906
      %p908 = scmp.ne.s32.totalorder %s896, %s897
      %p909 = scmp.eq.s32.totalorder %s121, 1
      %p910 = por %p908, %p909
      %p912 = scmp.ne.s32.totalorder %s897, %s911
      %p913 = scmp.eq.s32.totalorder %s121, 0
      %p914 = por %p912, %p913
      %s916 = sadd.s32 %s915, 1
      %p919 = scmp.eq.s32.totalorder %s115, 1
      %p920 = scmp.ne.s32.totalorder %s915, %s917
      %p921 = scmp.eq.s32.totalorder %s115, 0
      %p922 = por %p920, %p921
      %p923 = scmp.ne.s32.totalorder %s915, %s917
      %p924 = scmp.eq.s32.totalorder %s120, 1
      %p925 = por %p923, %p924
      %p926 = scmp.ne.s32.totalorder %s917, %s918
      %p927 = scmp.eq.s32.totalorder %s120, 0
      %p928 = por %p926, %p927
      %p929 = scmp.ne.s32.totalorder %s917, %s918
      %p930 = scmp.eq.s32.totalorder %s121, 1
      %p931 = por %p929, %p930
      %p933 = scmp.ne.s32.totalorder %s918, %s932
      %p934 = scmp.eq.s32.totalorder %s121, 0
      %p935 = por %p933, %p934
      %s937 = sadd.s32 %s936, 1
      %p940 = scmp.eq.s32.totalorder %s115, 1
      %p941 = scmp.ne.s32.totalorder %s936, %s938
      %p942 = scmp.eq.s32.totalorder %s115, 0
      %p943 = por %p941, %p942
      %p944 = scmp.ne.s32.totalorder %s936, %s938
      %p945 = scmp.eq.s32.totalorder %s120, 1
      %p946 = por %p944, %p945
      %p947 = scmp.ne.s32.totalorder %s938, %s939
      %p948 = scmp.eq.s32.totalorder %s120, 0
      %p949 = por %p947, %p948
      %p950 = scmp.ne.s32.totalorder %s938, %s939
      %p951 = scmp.eq.s32.totalorder %s121, 1
      %p952 = por %p950, %p951
      %p954 = scmp.ne.s32.totalorder %s939, %s953
      %p955 = scmp.eq.s32.totalorder %s121, 0
      %p956 = por %p954, %p955
      %s958 = sadd.s32 %s957, 1
      %p961 = scmp.eq.s32.totalorder %s115, 1
      %p962 = scmp.ne.s32.totalorder %s957, %s959
      %p963 = scmp.eq.s32.totalorder %s115, 0
      %p964 = por %p962, %p963
      %p965 = scmp.ne.s32.totalorder %s957, %s959
      %p966 = scmp.eq.s32.totalorder %s120, 1
      %p967 = por %p965, %p966
      %p968 = scmp.ne.s32.totalorder %s959, %s960
      %p969 = scmp.eq.s32.totalorder %s120, 0
      %p970 = por %p968, %p969
      %p971 = scmp.ne.s32.totalorder %s959, %s960
      %p972 = scmp.eq.s32.totalorder %s121, 1
      %p973 = por %p971, %p972
      %p975 = scmp.ne.s32.totalorder %s960, %s974
      %p976 = scmp.eq.s32.totalorder %s121, 0
      %p977 = por %p975, %p976
      %s979 = sadd.s32 %s978, 1
      %p982 = scmp.eq.s32.totalorder %s115, 1
      %p983 = scmp.ne.s32.totalorder %s978, %s980
      %p984 = scmp.eq.s32.totalorder %s115, 0
      %p985 = por %p983, %p984
      %p986 = scmp.ne.s32.totalorder %s978, %s980
      %p987 = scmp.eq.s32.totalorder %s120, 1
      %p988 = por %p986, %p987
      %p989 = scmp.ne.s32.totalorder %s980, %s981
      %p990 = scmp.eq.s32.totalorder %s120, 0
      %p991 = por %p989, %p990
      %p992 = scmp.ne.s32.totalorder %s980, %s981
      %p993 = scmp.eq.s32.totalorder %s121, 1
      %p994 = por %p992, %p993
      %p996 = scmp.ne.s32.totalorder %s981, %s995
      %p997 = scmp.eq.s32.totalorder %s121, 0
      %p998 = por %p996, %p997
      %s999 = ssub.s32 %s115, %s122
      %p1000 = scmp.eq.s32.totalorder %s999, 0
      %s1002 = sadd.s32 %s1001, 1
      %s1003 = scalar_select %p1000, %s1001, %s1002
      %p1006 = pneg %p1000
      %p1007 = scmp.eq.s32.totalorder %s115, 1
      %p1008 = por %p1006, %p1007
      %p1009 = scmp.ne.s32.totalorder %s1001, %s1004
      %p1010 = scmp.eq.s32.totalorder %s115, 0
      %p1011 = por %p1009, %p1010
      %p1012 = scmp.ne.s32.totalorder %s1001, %s1004
      %p1013 = scmp.eq.s32.totalorder %s120, 1
      %p1014 = por %p1012, %p1013
      %p1015 = scmp.ne.s32.totalorder %s1004, %s1005
      %p1016 = scmp.eq.s32.totalorder %s120, 0
      %p1017 = por %p1015, %p1016
      %p1018 = scmp.ne.s32.totalorder %s1004, %s1005
      %p1019 = scmp.eq.s32.totalorder %s121, 1
      %p1020 = por %p1018, %p1019
      %p1022 = scmp.ne.s32.totalorder %s1005, %s1021
      %p1023 = scmp.eq.s32.totalorder %s121, 0
      %p1024 = por %p1022, %p1023
      %p1025 = scmp.le.s32.totalorder 1, %s115
      %p1026 = scmp.lt.s32.totalorder %s115, 3
      %p1027 = pnand %p1025, %p1026
      %p1028 = pneg %p1027
      // Predicated region
      $region9: #{tpu_custom_call.1} parent=5 // pred_check
        _
      $region10: #{tpu_custom_call.1} parent=5 // pred_check_branch
        %1030 = sbr.rel (%p1027) target = $region12
      $region11: #{tpu_custom_call.1} parent=5 // pred_region
        %s1031 = ssub.s32 %s115, 1
        // Predicated region
        $region13: #{tpu_custom_call.1} parent=11 // pred_check
          %p1032 = pneg %p214
        $region14: #{tpu_custom_call.1} parent=11 // pred_check_branch
          %1034 = sbr.rel (%p1032) target = $region16
        $region15: #{tpu_custom_call.1} parent=11 // pred_region
          %s1036 = ssub.s32 1024, 1024
          %1037 = vsyncadd [#allocation6], %s1036
          %s1038 = sshll.u32 [#allocation7], 4
          %s1039 = int_to_ptr.vmem [resolvable:$true] %s1038
          %1044 = dma.hbm_to_vmem [thread:$0]  %s7, 1024, %s1039, [#allocation6], 64, 64, 4
        $region16: #{tpu_custom_call.1} parent=11 // pred_fallthru
          _
        // Predicated region
        $region17: #{tpu_custom_call.1} parent=11 // pred_check
          %p1045 = pneg %p235
        $region18: #{tpu_custom_call.1} parent=11 // pred_check_branch
          %1047 = sbr.rel (%p1045) target = $region20
        $region19: #{tpu_custom_call.1} parent=11 // pred_region
          _
        $region20: #{tpu_custom_call.1} parent=11 // pred_fallthru
          _
        // Predicated region
        $region21: #{tpu_custom_call.1} parent=11 // pred_check
          %p1048 = pneg %p256
        $region22: #{tpu_custom_call.1} parent=11 // pred_check_branch
          %1050 = sbr.rel (%p1048) target = $region24
        $region23: #{tpu_custom_call.1} parent=11 // pred_region
          %s1052 = ssub.s32 1024, 1024
          %1053 = vsyncadd [#allocation9], %s1052
          %s1054 = sshll.u32 [#allocation8], 4
          %s1055 = int_to_ptr.vmem [resolvable:$true] %s1054
          %1060 = dma.hbm_to_vmem [thread:$0]  %s11, 1024, %s1055, [#allocation9], 64, 64, 4
        $region24: #{tpu_custom_call.1} parent=11 // pred_fallthru
          _
        // Predicated region
        $region25: #{tpu_custom_call.1} parent=11 // pred_check
          %p1061 = pneg %p277
        $region26: #{tpu_custom_call.1} parent=11 // pred_check_branch
          %1063 = sbr.rel (%p1061) target = $region28
        $region27: #{tpu_custom_call.1} parent=11 // pred_region
          %s1065 = ssub.s32 16, 16
          %1066 = vsyncadd [#allocation9], %s1065
          %s1068 = sshll.u32 [#allocation10], 4
          %s1069 = int_to_ptr.vmem [resolvable:$true] %s1068
          %1071 = dma.hbm_to_vmem [thread:$0]  %s13, 16, %s1069, [#allocation9]
        $region28: #{tpu_custom_call.1} parent=11 // pred_fallthru
          _
        // Predicated region
        $region29: #{tpu_custom_call.1} parent=11 // pred_check
          %p1072 = pneg %p298
        $region30: #{tpu_custom_call.1} parent=11 // pred_check_branch
          %1074 = sbr.rel (%p1072) target = $region32
        $region31: #{tpu_custom_call.1} parent=11 // pred_region
          %s1076 = ssub.s32 1024, 1024
          %1077 = vsyncadd [#allocation12], %s1076
          %s1078 = sshll.u32 [#allocation11], 4
          %s1079 = int_to_ptr.vmem [resolvable:$true] %s1078
          %1084 = dma.hbm_to_vmem [thread:$0]  %s15, 1024, %s1079, [#allocation12], 64, 64, 4
        $region32: #{tpu_custom_call.1} parent=11 // pred_fallthru
          _
        // Predicated region
        $region33: #{tpu_custom_call.1} parent=11 // pred_check
          %p1085 = pneg %p319
        $region34: #{tpu_custom_call.1} parent=11 // pred_check_branch
          %1087 = sbr.rel (%p1085) target = $region36
        $region35: #{tpu_custom_call.1} parent=11 // pred_region
          %s1089 = ssub.s32 16, 16
          %1090 = vsyncadd [#allocation12], %s1089
          %s1092 = sshll.u32 [#allocation13], 4
          %s1093 = int_to_ptr.vmem [resolvable:$true] %s1092
          %1095 = dma.hbm_to_vmem [thread:$0]  %s17, 16, %s1093, [#allocation12]
        $region36: #{tpu_custom_call.1} parent=11 // pred_fallthru
          _
        // Predicated region
        $region37: #{tpu_custom_call.1} parent=11 // pred_check
          %p1096 = pneg %p340
        $region38: #{tpu_custom_call.1} parent=11 // pred_check_branch
          %1098 = sbr.rel (%p1096) target = $region40
        $region39: #{tpu_custom_call.1} parent=11 // pred_region
          %s1100 = ssub.s32 1024, 1024
          %1101 = vsyncadd [#allocation15], %s1100
          %s1102 = sshll.u32 [#allocation14], 4
          %s1103 = int_to_ptr.vmem [resolvable:$true] %s1102
          %1108 = dma.hbm_to_vmem [thread:$0]  %s19, 1024, %s1103, [#allocation15], 64, 64, 4
        $region40: #{tpu_custom_call.1} parent=11 // pred_fallthru
          _
        // Predicated region
        $region41: #{tpu_custom_call.1} parent=11 // pred_check
          %p1109 = pneg %p361
        $region42: #{tpu_custom_call.1} parent=11 // pred_check_branch
          %1111 = sbr.rel (%p1109) target = $region44
        $region43: #{tpu_custom_call.1} parent=11 // pred_region
          %s1113 = ssub.s32 16, 16
          %1114 = vsyncadd [#allocation15], %s1113
          %s1116 = sshll.u32 [#allocation16], 4
          %s1117 = int_to_ptr.vmem [resolvable:$true] %s1116
          %1119 = dma.hbm_to_vmem [thread:$0]  %s21, 16, %s1117, [#allocation15]
        $region44: #{tpu_custom_call.1} parent=11 // pred_fallthru
          _
        // Predicated region
        $region45: #{tpu_custom_call.1} parent=11 // pred_check
          %p1120 = pneg %p382
        $region46: #{tpu_custom_call.1} parent=11 // pred_check_branch
          %1122 = sbr.rel (%p1120) target = $region48
        $region47: #{tpu_custom_call.1} parent=11 // pred_region
          %s1124 = ssub.s32 1024, 1024
          %1125 = vsyncadd [#allocation18], %s1124
          %s1126 = sshll.u32 [#allocation17], 4
          %s1127 = int_to_ptr.vmem [resolvable:$true] %s1126
          %1132 = dma.hbm_to_vmem [thread:$0]  %s23, 1024, %s1127, [#allocation18], 64, 64, 4
        $region48: #{tpu_custom_call.1} parent=11 // pred_fallthru
          _
        // Predicated region
        $region49: #{tpu_custom_call.1} parent=11 // pred_check
          %p1133 = pneg %p403
        $region50: #{tpu_custom_call.1} parent=11 // pred_check_branch
          %1135 = sbr.rel (%p1133) target = $region52
        $region51: #{tpu_custom_call.1} parent=11 // pred_region
          %s1137 = ssub.s32 16, 16
          %1138 = vsyncadd [#allocation18], %s1137
          %s1140 = sshll.u32 [#allocation19], 4
          %s1141 = int_to_ptr.vmem [resolvable:$true] %s1140
          %1143 = dma.hbm_to_vmem [thread:$0]  %s25, 16, %s1141, [#allocation18]
        $region52: #{tpu_custom_call.1} parent=11 // pred_fallthru
          _
        // Predicated region
        $region53: #{tpu_custom_call.1} parent=11 // pred_check
          %p1144 = pneg %p424
        $region54: #{tpu_custom_call.1} parent=11 // pred_check_branch
          %1146 = sbr.rel (%p1144) target = $region56
        $region55: #{tpu_custom_call.1} parent=11 // pred_region
          %s1148 = ssub.s32 1024, 1024
          %1149 = vsyncadd [#allocation21], %s1148
          %s1150 = sshll.u32 [#allocation20], 4
          %s1151 = int_to_ptr.vmem [resolvable:$true] %s1150
          %1156 = dma.hbm_to_vmem [thread:$0]  %s27, 1024, %s1151, [#allocation21], 64, 64, 4
        $region56: #{tpu_custom_call.1} parent=11 // pred_fallthru
          _
        // Predicated region
        $region57: #{tpu_custom_call.1} parent=11 // pred_check
          %p1157 = pneg %p445
        $region58: #{tpu_custom_call.1} parent=11 // pred_check_branch
          %1159 = sbr.rel (%p1157) target = $region60
        $region59: #{tpu_custom_call.1} parent=11 // pred_region
          %s1161 = ssub.s32 16, 16
          %1162 = vsyncadd [#allocation21], %s1161
          %s1164 = sshll.u32 [#allocation22], 4
          %s1165 = int_to_ptr.vmem [resolvable:$true] %s1164
          %1167 = dma.hbm_to_vmem [thread:$0]  %s29, 16, %s1165, [#allocation21]
        $region60: #{tpu_custom_call.1} parent=11 // pred_fallthru
          _
        // Predicated region
        $region61: #{tpu_custom_call.1} parent=11 // pred_check
          %p1168 = pneg %p466
        $region62: #{tpu_custom_call.1} parent=11 // pred_check_branch
          %1170 = sbr.rel (%p1168) target = $region64
        $region63: #{tpu_custom_call.1} parent=11 // pred_region
          %s1172 = ssub.s32 1024, 1024
          %1173 = vsyncadd [#allocation24], %s1172
          %s1174 = sshll.u32 [#allocation23], 4
          %s1175 = int_to_ptr.vmem [resolvable:$true] %s1174
          %1180 = dma.hbm_to_vmem [thread:$0]  %s31, 1024, %s1175, [#allocation24], 64, 64, 4
        $region64: #{tpu_custom_call.1} parent=11 // pred_fallthru
          _
        // Predicated region
        $region65: #{tpu_custom_call.1} parent=11 // pred_check
          %p1181 = pneg %p487
        $region66: #{tpu_custom_call.1} parent=11 // pred_check_branch
          %1183 = sbr.rel (%p1181) target = $region68
        $region67: #{tpu_custom_call.1} parent=11 // pred_region
          %s1185 = ssub.s32 16, 16
          %1186 = vsyncadd [#allocation24], %s1185
          %s1188 = sshll.u32 [#allocation25], 4
          %s1189 = int_to_ptr.vmem [resolvable:$true] %s1188
          %1191 = dma.hbm_to_vmem [thread:$0]  %s33, 16, %s1189, [#allocation24]
        $region68: #{tpu_custom_call.1} parent=11 // pred_fallthru
          _
        // Predicated region
        $region69: #{tpu_custom_call.1} parent=11 // pred_check
          %p1192 = pneg %p508
        $region70: #{tpu_custom_call.1} parent=11 // pred_check_branch
          %1194 = sbr.rel (%p1192) target = $region72
        $region71: #{tpu_custom_call.1} parent=11 // pred_region
          %s1196 = ssub.s32 1024, 1024
          %1197 = vsyncadd [#allocation27], %s1196
          %s1198 = sshll.u32 [#allocation26], 4
          %s1199 = int_to_ptr.vmem [resolvable:$true] %s1198
          %1204 = dma.hbm_to_vmem [thread:$0]  %s35, 1024, %s1199, [#allocation27], 64, 64, 4
        $region72: #{tpu_custom_call.1} parent=11 // pred_fallthru
          _
        // Predicated region
        $region73: #{tpu_custom_call.1} parent=11 // pred_check
          %p1205 = pneg %p529
        $region74: #{tpu_custom_call.1} parent=11 // pred_check_branch
          %1207 = sbr.rel (%p1205) target = $region76
        $region75: #{tpu_custom_call.1} parent=11 // pred_region
          %s1209 = ssub.s32 16, 16
          %1210 = vsyncadd [#allocation27], %s1209
          %s1212 = sshll.u32 [#allocation28], 4
          %s1213 = int_to_ptr.vmem [resolvable:$true] %s1212
          %1215 = dma.hbm_to_vmem [thread:$0]  %s37, 16, %s1213, [#allocation27]
        $region76: #{tpu_custom_call.1} parent=11 // pred_fallthru
          _
        // Predicated region
        $region77: #{tpu_custom_call.1} parent=11 // pred_check
          %p1216 = pneg %p550
        $region78: #{tpu_custom_call.1} parent=11 // pred_check_branch
          %1218 = sbr.rel (%p1216) target = $region80
        $region79: #{tpu_custom_call.1} parent=11 // pred_region
          %s1220 = ssub.s32 2048, 2048
          %1221 = vsyncadd [#allocation30], %s1220
          %s1222 = sshll.u32 [#allocation29], 4
          %s1223 = int_to_ptr.vmem [resolvable:$true] %s1222
          %1228 = dma.hbm_to_vmem [thread:$0]  %s39, 2048, %s1223, [#allocation30], 64, 64, 4
        $region80: #{tpu_custom_call.1} parent=11 // pred_fallthru
          _
        // Predicated region
        $region81: #{tpu_custom_call.1} parent=11 // pred_check
          %p1229 = pneg %p571
        $region82: #{tpu_custom_call.1} parent=11 // pred_check_branch
          %1231 = sbr.rel (%p1229) target = $region84
        $region83: #{tpu_custom_call.1} parent=11 // pred_region
          %s1233 = ssub.s32 32, 32
          %1234 = vsyncadd [#allocation30], %s1233
          %s1235 = sshll.u32 [#allocation31], 4
          %s1236 = int_to_ptr.vmem [resolvable:$true] %s1235
          %1241 = dma.hbm_to_vmem [thread:$0]  %s41, 32, %s1236, [#allocation30], 16, 16, 1
        $region84: #{tpu_custom_call.1} parent=11 // pred_fallthru
          _
        // Predicated region
        $region85: #{tpu_custom_call.1} parent=11 // pred_check
          %p1242 = pneg %p592
        $region86: #{tpu_custom_call.1} parent=11 // pred_check_branch
          %1244 = sbr.rel (%p1242) target = $region88
        $region87: #{tpu_custom_call.1} parent=11 // pred_region
          %s1246 = ssub.s32 2048, 2048
          %1247 = vsyncadd [#allocation33], %s1246
          %s1248 = sshll.u32 [#allocation32], 4
          %s1249 = int_to_ptr.vmem [resolvable:$true] %s1248
          %1254 = dma.hbm_to_vmem [thread:$0]  %s43, 2048, %s1249, [#allocation33], 64, 64, 4
        $region88: #{tpu_custom_call.1} parent=11 // pred_fallthru
          _
        // Predicated region
        $region89: #{tpu_custom_call.1} parent=11 // pred_check
          %p1255 = pneg %p613
        $region90: #{tpu_custom_call.1} parent=11 // pred_check_branch
          %1257 = sbr.rel (%p1255) target = $region92
        $region91: #{tpu_custom_call.1} parent=11 // pred_region
          %s1259 = ssub.s32 16, 16
          %1260 = vsyncadd [#allocation33], %s1259
          %s1262 = sshll.u32 [#allocation34], 4
          %s1263 = int_to_ptr.vmem [resolvable:$true] %s1262
          %1265 = dma.hbm_to_vmem [thread:$0]  %s45, 16, %s1263, [#allocation33]
        $region92: #{tpu_custom_call.1} parent=11 // pred_fallthru
          _
        // Predicated region
        $region93: #{tpu_custom_call.1} parent=11 // pred_check
          %p1266 = pneg %p634
        $region94: #{tpu_custom_call.1} parent=11 // pred_check_branch
          %1268 = sbr.rel (%p1266) target = $region96
        $region95: #{tpu_custom_call.1} parent=11 // pred_region
          %s1270 = ssub.s32 16, 16
          %1271 = vsyncadd [#allocation36], %s1270
          %s1273 = sshll.u32 [#allocation35], 4
          %s1274 = int_to_ptr.vmem [resolvable:$true] %s1273
          %1276 = dma.hbm_to_vmem [thread:$0]  %s47, 16, %s1274, [#allocation36]
        $region96: #{tpu_custom_call.1} parent=11 // pred_fallthru
          _
        // Predicated region
        $region97: #{tpu_custom_call.1} parent=11 // pred_check
          %p1277 = pneg %p655
        $region98: #{tpu_custom_call.1} parent=11 // pred_check_branch
          %1279 = sbr.rel (%p1277) target = $region100
        $region99: #{tpu_custom_call.1} parent=11 // pred_region
          %s1281 = ssub.s32 16, 16
          %1282 = vsyncadd [#allocation36], %s1281
          %s1284 = sshll.u32 [#allocation37], 4
          %s1285 = int_to_ptr.vmem [resolvable:$true] %s1284
          %1287 = dma.hbm_to_vmem [thread:$0]  %s49, 16, %s1285, [#allocation36]
        $region100: #{tpu_custom_call.1} parent=11 // pred_fallthru
          _
        // Predicated region
        $region101: #{tpu_custom_call.1} parent=11 // pred_check
          %p1288 = pneg %p676
        $region102: #{tpu_custom_call.1} parent=11 // pred_check_branch
          %1290 = sbr.rel (%p1288) target = $region104
        $region103: #{tpu_custom_call.1} parent=11 // pred_region
          %s1292 = ssub.s32 16, 16
          %1293 = vsyncadd [#allocation39], %s1292
          %s1295 = sshll.u32 [#allocation38], 4
          %s1296 = int_to_ptr.vmem [resolvable:$true] %s1295
          %1298 = dma.hbm_to_vmem [thread:$0]  %s51, 16, %s1296, [#allocation39]
        $region104: #{tpu_custom_call.1} parent=11 // pred_fallthru
          _
        // Predicated region
        $region105: #{tpu_custom_call.1} parent=11 // pred_check
          %p1299 = pneg %p697
        $region106: #{tpu_custom_call.1} parent=11 // pred_check_branch
          %1301 = sbr.rel (%p1299) target = $region108
        $region107: #{tpu_custom_call.1} parent=11 // pred_region
          %s1303 = ssub.s32 16, 16
          %1304 = vsyncadd [#allocation39], %s1303
          %s1306 = sshll.u32 [#allocation40], 4
          %s1307 = int_to_ptr.vmem [resolvable:$true] %s1306
          %1309 = dma.hbm_to_vmem [thread:$0]  %s53, 16, %s1307, [#allocation39]
        $region108: #{tpu_custom_call.1} parent=11 // pred_fallthru
          _
        // Predicated region
        $region109: #{tpu_custom_call.1} parent=11 // pred_check
          %p1310 = pneg %p718
        $region110: #{tpu_custom_call.1} parent=11 // pred_check_branch
          %1312 = sbr.rel (%p1310) target = $region112
        $region111: #{tpu_custom_call.1} parent=11 // pred_region
          %s1314 = ssub.s32 16, 16
          %1315 = vsyncadd [#allocation42], %s1314
          %s1317 = sshll.u32 [#allocation41], 4
          %s1318 = int_to_ptr.vmem [resolvable:$true] %s1317
          %1320 = dma.hbm_to_vmem [thread:$0]  %s55, 16, %s1318, [#allocation42]
        $region112: #{tpu_custom_call.1} parent=11 // pred_fallthru
          _
        // Predicated region
        $region113: #{tpu_custom_call.1} parent=11 // pred_check
          %p1321 = pneg %p739
        $region114: #{tpu_custom_call.1} parent=11 // pred_check_branch
          %1323 = sbr.rel (%p1321) target = $region116
        $region115: #{tpu_custom_call.1} parent=11 // pred_region
          %s1325 = ssub.s32 16, 16
          %1326 = vsyncadd [#allocation42], %s1325
          %s1328 = sshll.u32 [#allocation43], 4
          %s1329 = int_to_ptr.vmem [resolvable:$true] %s1328
          %1331 = dma.hbm_to_vmem [thread:$0]  %s57, 16, %s1329, [#allocation42]
        $region116: #{tpu_custom_call.1} parent=11 // pred_fallthru
          _
        // Predicated region
        $region117: #{tpu_custom_call.1} parent=11 // pred_check
          %p1332 = pneg %p760
        $region118: #{tpu_custom_call.1} parent=11 // pred_check_branch
          %1334 = sbr.rel (%p1332) target = $region120
        $region119: #{tpu_custom_call.1} parent=11 // pred_region
          %s1336 = ssub.s32 1024, 1024
          %1337 = vsyncadd [#allocation45], %s1336
          %s1338 = sshll.u32 [#allocation44], 4
          %s1339 = int_to_ptr.vmem [resolvable:$true] %s1338
          %1344 = dma.hbm_to_vmem [thread:$0]  %s59, 1024, %s1339, [#allocation45], 64, 64, 4
        $region120: #{tpu_custom_call.1} parent=11 // pred_fallthru
          _
        // Predicated region
        $region121: #{tpu_custom_call.1} parent=11 // pred_check
          %p1345 = pneg %p781
        $region122: #{tpu_custom_call.1} parent=11 // pred_check_branch
          %1347 = sbr.rel (%p1345) target = $region124
        $region123: #{tpu_custom_call.1} parent=11 // pred_region
          %s1349 = ssub.s32 16, 16
          %1350 = vsyncadd [#allocation45], %s1349
          %s1352 = sshll.u32 [#allocation46], 4
          %s1353 = int_to_ptr.vmem [resolvable:$true] %s1352
          %1355 = dma.hbm_to_vmem [thread:$0]  %s61, 16, %s1353, [#allocation45]
        $region124: #{tpu_custom_call.1} parent=11 // pred_fallthru
          _
        // Predicated region
        $region125: #{tpu_custom_call.1} parent=11 // pred_check
          %p1356 = pneg %p802
        $region126: #{tpu_custom_call.1} parent=11 // pred_check_branch
          %1358 = sbr.rel (%p1356) target = $region128
        $region127: #{tpu_custom_call.1} parent=11 // pred_region
          %s1360 = ssub.s32 1024, 1024
          %1361 = vsyncadd [#allocation48], %s1360
          %s1362 = sshll.u32 [#allocation47], 4
          %s1363 = int_to_ptr.vmem [resolvable:$true] %s1362
          %1368 = dma.hbm_to_vmem [thread:$0]  %s63, 1024, %s1363, [#allocation48], 64, 64, 4
        $region128: #{tpu_custom_call.1} parent=11 // pred_fallthru
          _
        // Predicated region
        $region129: #{tpu_custom_call.1} parent=11 // pred_check
          %p1369 = pneg %p823
        $region130: #{tpu_custom_call.1} parent=11 // pred_check_branch
          %1371 = sbr.rel (%p1369) target = $region132
        $region131: #{tpu_custom_call.1} parent=11 // pred_region
          %s1373 = ssub.s32 16, 16
          %1374 = vsyncadd [#allocation48], %s1373
          %s1376 = sshll.u32 [#allocation49], 4
          %s1377 = int_to_ptr.vmem [resolvable:$true] %s1376
          %1379 = dma.hbm_to_vmem [thread:$0]  %s65, 16, %s1377, [#allocation48]
        $region132: #{tpu_custom_call.1} parent=11 // pred_fallthru
          _
        // Predicated region
        $region133: #{tpu_custom_call.1} parent=11 // pred_check
          %p1380 = pneg %p844
        $region134: #{tpu_custom_call.1} parent=11 // pred_check_branch
          %1382 = sbr.rel (%p1380) target = $region136
        $region135: #{tpu_custom_call.1} parent=11 // pred_region
          %s1384 = ssub.s32 1024, 1024
          %1385 = vsyncadd [#allocation51], %s1384
          %s1386 = sshll.u32 [#allocation50], 4
          %s1387 = int_to_ptr.vmem [resolvable:$true] %s1386
          %1392 = dma.hbm_to_vmem [thread:$0]  %s67, 1024, %s1387, [#allocation51], 64, 64, 4
        $region136: #{tpu_custom_call.1} parent=11 // pred_fallthru
          _
        // Predicated region
        $region137: #{tpu_custom_call.1} parent=11 // pred_check
          %p1393 = pneg %p865
        $region138: #{tpu_custom_call.1} parent=11 // pred_check_branch
          %1395 = sbr.rel (%p1393) target = $region140
        $region139: #{tpu_custom_call.1} parent=11 // pred_region
          %s1397 = ssub.s32 16, 16
          %1398 = vsyncadd [#allocation51], %s1397
          %s1400 = sshll.u32 [#allocation52], 4
          %s1401 = int_to_ptr.vmem [resolvable:$true] %s1400
          %1403 = dma.hbm_to_vmem [thread:$0]  %s69, 16, %s1401, [#allocation51]
        $region140: #{tpu_custom_call.1} parent=11 // pred_fallthru
          _
        // Predicated region
        $region141: #{tpu_custom_call.1} parent=11 // pred_check
          %p1404 = pneg %p886
        $region142: #{tpu_custom_call.1} parent=11 // pred_check_branch
          %1406 = sbr.rel (%p1404) target = $region144
        $region143: #{tpu_custom_call.1} parent=11 // pred_region
          %s1408 = ssub.s32 1024, 1024
          %1409 = vsyncadd [#allocation54], %s1408
          %s1410 = sshll.u32 [#allocation53], 4
          %s1411 = int_to_ptr.vmem [resolvable:$true] %s1410
          %1416 = dma.hbm_to_vmem [thread:$0]  %s71, 1024, %s1411, [#allocation54], 64, 64, 4
        $region144: #{tpu_custom_call.1} parent=11 // pred_fallthru
          _
        // Predicated region
        $region145: #{tpu_custom_call.1} parent=11 // pred_check
          %p1417 = pneg %p907
        $region146: #{tpu_custom_call.1} parent=11 // pred_check_branch
          %1419 = sbr.rel (%p1417) target = $region148
        $region147: #{tpu_custom_call.1} parent=11 // pred_region
          %s1421 = ssub.s32 16, 16
          %1422 = vsyncadd [#allocation54], %s1421
          %s1424 = sshll.u32 [#allocation55], 4
          %s1425 = int_to_ptr.vmem [resolvable:$true] %s1424
          %1427 = dma.hbm_to_vmem [thread:$0]  %s73, 16, %s1425, [#allocation54]
        $region148: #{tpu_custom_call.1} parent=11 // pred_fallthru
          _
        // Predicated region
        $region149: #{tpu_custom_call.1} parent=11 // pred_check
          %p1428 = pneg %p928
        $region150: #{tpu_custom_call.1} parent=11 // pred_check_branch
          %1430 = sbr.rel (%p1428) target = $region152
        $region151: #{tpu_custom_call.1} parent=11 // pred_region
          _
        $region152: #{tpu_custom_call.1} parent=11 // pred_fallthru
          _
        // Predicated region
        $region153: #{tpu_custom_call.1} parent=11 // pred_check
          %p1431 = pneg %p949
        $region154: #{tpu_custom_call.1} parent=11 // pred_check_branch
          %1433 = sbr.rel (%p1431) target = $region156
        $region155: #{tpu_custom_call.1} parent=11 // pred_region
          _
        $region156: #{tpu_custom_call.1} parent=11 // pred_fallthru
          _
        // Predicated region
        $region157: #{tpu_custom_call.1} parent=11 // pred_check
          %p1434 = pneg %p970
        $region158: #{tpu_custom_call.1} parent=11 // pred_check_branch
          %1436 = sbr.rel (%p1434) target = $region160
        $region159: #{tpu_custom_call.1} parent=11 // pred_region
          %s1438 = ssub.s32 1024, 1024
          %1439 = vsyncadd [#allocation57], %s1438
          %s1440 = sshll.u32 [#allocation56], 4
          %s1441 = int_to_ptr.vmem [resolvable:$true] %s1440
          %1446 = dma.hbm_to_vmem [thread:$0]  %s79, 1024, %s1441, [#allocation57], 64, 64, 4
        $region160: #{tpu_custom_call.1} parent=11 // pred_fallthru
          _
        // Predicated region
        $region161: #{tpu_custom_call.1} parent=11 // pred_check
          %p1447 = pneg %p991
        $region162: #{tpu_custom_call.1} parent=11 // pred_check_branch
          %1449 = sbr.rel (%p1447) target = $region164
        $region163: #{tpu_custom_call.1} parent=11 // pred_region
          _
        $region164: #{tpu_custom_call.1} parent=11 // pred_fallthru
          _
      $region12: #{tpu_custom_call.1} parent=5 // pred_fallthru
        _
      %p1450 = scmp.lt.s32.totalorder %s115, 2
      // Predicated region
      $region165: #{tpu_custom_call.1} parent=5 // pred_check
        %p1451 = pneg %p1450
      $region166: #{tpu_custom_call.1} parent=5 // pred_check_branch
        %1453 = sbr.rel (%p1451) target = $region168
      $region167: #{tpu_custom_call.1} parent=5 // pred_region
        // Predicated region
        $region169: #{tpu_custom_call.1} parent=167 // pred_check
          %p1454 = pneg %p135
        $region170: #{tpu_custom_call.1} parent=167 // pred_check_branch
          %1456 = sbr.rel (%p1454) target = $region172
        $region171: #{tpu_custom_call.1} parent=167 // pred_region
          %s1457 = sand.u32 %s125, 1
          %s1458 = scalar_lea.sflag [#allocation3], %s1457
          %s1459 = sand.u32 %s125, 1
          %s1460 = smul.addr %s1459, 8
          %s1461 = scalar_lea.vmem [#allocation2], %s1460
          %s1463 = ssub.s32 128, 128
          %1464 = vsyncadd %s1458, %s1463
          %s1465 = smul.addr %s115, 128
          %s1466 = scalar_lea.hbm %s1, %s1465
          %s1468 = sshll.u32 %s1461, 4
          %s1469 = int_to_ptr.vmem [resolvable:$true] %s1468
          %1471 = dma.hbm_to_vmem [thread:$0]  %s1466, 128, %s1469, %s1458
        $region172: #{tpu_custom_call.1} parent=167 // pred_fallthru
          _
        // Predicated region
        $region173: #{tpu_custom_call.1} parent=167 // pred_check
          %p1472 = pneg %p161
        $region174: #{tpu_custom_call.1} parent=167 // pred_check_branch
          %1474 = sbr.rel (%p1472) target = $region176
        $region175: #{tpu_custom_call.1} parent=167 // pred_region
          %s1475 = sand.u32 %s115, 1
          %s1476 = scalar_lea.sflag [#allocation6], %s1475
          %s1477 = sand.u32 %s151, 1
          %s1478 = smul.addr %s1477, 8
          %s1479 = scalar_lea.vmem [#allocation5], %s1478
          %s1481 = ssub.s32 128, 128
          %1482 = vsyncadd %s1476, %s1481
          %s1483 = smul.addr %s115, 2
          %s1484 = smul.addr %s1483, 64
          %s1485 = scalar_lea.hbm %s3, %s1484
          %s1486 = sshll.u32 %s1479, 4
          %s1487 = int_to_ptr.vmem [resolvable:$true] %s1486
          %1492 = dma.hbm_to_vmem [thread:$0]  %s1485, 128, %s1487, %s1476, 64, 64, 4
        $region176: #{tpu_custom_call.1} parent=167 // pred_fallthru
          _
        // Predicated region
        $region177: #{tpu_custom_call.1} parent=167 // pred_check
          %p1493 = pneg %p187
        $region178: #{tpu_custom_call.1} parent=167 // pred_check_branch
          %1495 = sbr.rel (%p1493) target = $region180
        $region179: #{tpu_custom_call.1} parent=167 // pred_region
          %p1496 = scmp.lt.s32.totalorder %s115, 1
          %s1497 = scalar_select %p1496, %s115, 1
          %s1498 = scalar_lea.vmem %s5, %s1497
        $region180: #{tpu_custom_call.1} parent=167 // pred_fallthru
          _
      $region168: #{tpu_custom_call.1} parent=5 // pred_fallthru
        _
      %p1499 = scmp.le.s32.totalorder 1, %s115
      %p1500 = scmp.lt.s32.totalorder %s115, 3
      %p1501 = pnand %p1499, %p1500
      %p1502 = pneg %p1501
      // Predicated region
      $region181: #{tpu_custom_call.1} parent=5 // pred_check
        _
      $region182: #{tpu_custom_call.1} parent=5 // pred_check_branch
        %1504 = sbr.rel (%p1501) target = $region184
      $region183: #{tpu_custom_call.1} parent=5 // pred_region
        %s1505 = ssub.s32 %s115, 1
        %s1506 = sand.u32 %s128, 1
        %s1507 = scalar_lea.sflag [#allocation3], %s1506
        %s1508 = sand.u32 %s128, 1
        %s1509 = smul.addr %s1508, 8
        %s1510 = scalar_lea.vmem [#allocation2], %s1509
        // Predicated region
        $region185: #{tpu_custom_call.1} parent=183 // pred_check
          %p1511 = pneg %p141
        $region186: #{tpu_custom_call.1} parent=183 // pred_check_branch
          %1513 = sbr.rel (%p1511) target = $region188
        $region187: #{tpu_custom_call.1} parent=183 // pred_region
          %1514 = dma.done %s1507, 128
        $region188: #{tpu_custom_call.1} parent=183 // pred_fallthru
          _
        %s1515 = sand.u32 %s120, 1
        %s1516 = scalar_lea.sflag [#allocation6], %s1515
        %s1517 = sand.u32 %s154, 1
        %s1518 = smul.addr %s1517, 8
        %s1519 = scalar_lea.vmem [#allocation5], %s1518
        // Predicated region
        $region189: #{tpu_custom_call.1} parent=183 // pred_check
          %p1520 = pneg %p167
        $region190: #{tpu_custom_call.1} parent=183 // pred_check_branch
          %1522 = sbr.rel (%p1520) target = $region192
        $region191: #{tpu_custom_call.1} parent=183 // pred_region
          %1523 = dma.done %s1516, 128
        $region192: #{tpu_custom_call.1} parent=183 // pred_fallthru
          _
        // Predicated region
        $region193: #{tpu_custom_call.1} parent=183 // pred_check
          %p1524 = pneg %p214
        $region194: #{tpu_custom_call.1} parent=183 // pred_check_branch
          %1526 = sbr.rel (%p1524) target = $region196
        $region195: #{tpu_custom_call.1} parent=183 // pred_region
          %1527 = dma.done [#allocation6], 1024
        $region196: #{tpu_custom_call.1} parent=183 // pred_fallthru
          _
        // Predicated region
        $region197: #{tpu_custom_call.1} parent=183 // pred_check
          %p1528 = pneg %p256
        $region198: #{tpu_custom_call.1} parent=183 // pred_check_branch
          %1530 = sbr.rel (%p1528) target = $region200
        $region199: #{tpu_custom_call.1} parent=183 // pred_region
          %1531 = dma.done [#allocation9], 1024
        $region200: #{tpu_custom_call.1} parent=183 // pred_fallthru
          _
        // Predicated region
        $region201: #{tpu_custom_call.1} parent=183 // pred_check
          %p1532 = pneg %p277
        $region202: #{tpu_custom_call.1} parent=183 // pred_check_branch
          %1534 = sbr.rel (%p1532) target = $region204
        $region203: #{tpu_custom_call.1} parent=183 // pred_region
          %1535 = dma.done [#allocation9], 16
        $region204: #{tpu_custom_call.1} parent=183 // pred_fallthru
          _
        // Predicated region
        $region205: #{tpu_custom_call.1} parent=183 // pred_check
          %p1536 = pneg %p298
        $region206: #{tpu_custom_call.1} parent=183 // pred_check_branch
          %1538 = sbr.rel (%p1536) target = $region208
        $region207: #{tpu_custom_call.1} parent=183 // pred_region
          %1539 = dma.done [#allocation12], 1024
        $region208: #{tpu_custom_call.1} parent=183 // pred_fallthru
          _
        // Predicated region
        $region209: #{tpu_custom_call.1} parent=183 // pred_check
          %p1540 = pneg %p319
        $region210: #{tpu_custom_call.1} parent=183 // pred_check_branch
          %1542 = sbr.rel (%p1540) target = $region212
        $region211: #{tpu_custom_call.1} parent=183 // pred_region
          %1543 = dma.done [#allocation12], 16
        $region212: #{tpu_custom_call.1} parent=183 // pred_fallthru
          _
        // Predicated region
        $region213: #{tpu_custom_call.1} parent=183 // pred_check
          %p1544 = pneg %p340
        $region214: #{tpu_custom_call.1} parent=183 // pred_check_branch
          %1546 = sbr.rel (%p1544) target = $region216
        $region215: #{tpu_custom_call.1} parent=183 // pred_region
          %1547 = dma.done [#allocation15], 1024
        $region216: #{tpu_custom_call.1} parent=183 // pred_fallthru
          _
        // Predicated region
        $region217: #{tpu_custom_call.1} parent=183 // pred_check
          %p1548 = pneg %p361
        $region218: #{tpu_custom_call.1} parent=183 // pred_check_branch
          %1550 = sbr.rel (%p1548) target = $region220
        $region219: #{tpu_custom_call.1} parent=183 // pred_region
          %1551 = dma.done [#allocation15], 16
        $region220: #{tpu_custom_call.1} parent=183 // pred_fallthru
          _
        // Predicated region
        $region221: #{tpu_custom_call.1} parent=183 // pred_check
          %p1552 = pneg %p382
        $region222: #{tpu_custom_call.1} parent=183 // pred_check_branch
          %1554 = sbr.rel (%p1552) target = $region224
        $region223: #{tpu_custom_call.1} parent=183 // pred_region
          %1555 = dma.done [#allocation18], 1024
        $region224: #{tpu_custom_call.1} parent=183 // pred_fallthru
          _
        // Predicated region
        $region225: #{tpu_custom_call.1} parent=183 // pred_check
          %p1556 = pneg %p403
        $region226: #{tpu_custom_call.1} parent=183 // pred_check_branch
          %1558 = sbr.rel (%p1556) target = $region228
        $region227: #{tpu_custom_call.1} parent=183 // pred_region
          %1559 = dma.done [#allocation18], 16
        $region228: #{tpu_custom_call.1} parent=183 // pred_fallthru
          _
        // Predicated region
        $region229: #{tpu_custom_call.1} parent=183 // pred_check
          %p1560 = pneg %p424
        $region230: #{tpu_custom_call.1} parent=183 // pred_check_branch
          %1562 = sbr.rel (%p1560) target = $region232
        $region231: #{tpu_custom_call.1} parent=183 // pred_region
          %1563 = dma.done [#allocation21], 1024
        $region232: #{tpu_custom_call.1} parent=183 // pred_fallthru
          _
        // Predicated region
        $region233: #{tpu_custom_call.1} parent=183 // pred_check
          %p1564 = pneg %p445
        $region234: #{tpu_custom_call.1} parent=183 // pred_check_branch
          %1566 = sbr.rel (%p1564) target = $region236
        $region235: #{tpu_custom_call.1} parent=183 // pred_region
          %1567 = dma.done [#allocation21], 16
        $region236: #{tpu_custom_call.1} parent=183 // pred_fallthru
          _
        // Predicated region
        $region237: #{tpu_custom_call.1} parent=183 // pred_check
          %p1568 = pneg %p466
        $region238: #{tpu_custom_call.1} parent=183 // pred_check_branch
          %1570 = sbr.rel (%p1568) target = $region240
        $region239: #{tpu_custom_call.1} parent=183 // pred_region
          %1571 = dma.done [#allocation24], 1024
        $region240: #{tpu_custom_call.1} parent=183 // pred_fallthru
          _
        // Predicated region
        $region241: #{tpu_custom_call.1} parent=183 // pred_check
          %p1572 = pneg %p487
        $region242: #{tpu_custom_call.1} parent=183 // pred_check_branch
          %1574 = sbr.rel (%p1572) target = $region244
        $region243: #{tpu_custom_call.1} parent=183 // pred_region
          %1575 = dma.done [#allocation24], 16
        $region244: #{tpu_custom_call.1} parent=183 // pred_fallthru
          _
        // Predicated region
        $region245: #{tpu_custom_call.1} parent=183 // pred_check
          %p1576 = pneg %p508
        $region246: #{tpu_custom_call.1} parent=183 // pred_check_branch
          %1578 = sbr.rel (%p1576) target = $region248
        $region247: #{tpu_custom_call.1} parent=183 // pred_region
          %1579 = dma.done [#allocation27], 1024
        $region248: #{tpu_custom_call.1} parent=183 // pred_fallthru
          _
        // Predicated region
        $region249: #{tpu_custom_call.1} parent=183 // pred_check
          %p1580 = pneg %p529
        $region250: #{tpu_custom_call.1} parent=183 // pred_check_branch
          %1582 = sbr.rel (%p1580) target = $region252
        $region251: #{tpu_custom_call.1} parent=183 // pred_region
          %1583 = dma.done [#allocation27], 16
        $region252: #{tpu_custom_call.1} parent=183 // pred_fallthru
          _
        // Predicated region
        $region253: #{tpu_custom_call.1} parent=183 // pred_check
          %p1584 = pneg %p550
        $region254: #{tpu_custom_call.1} parent=183 // pred_check_branch
          %1586 = sbr.rel (%p1584) target = $region256
        $region255: #{tpu_custom_call.1} parent=183 // pred_region
          %1587 = dma.done [#allocation30], 2048
        $region256: #{tpu_custom_call.1} parent=183 // pred_fallthru
          _
        // Predicated region
        $region257: #{tpu_custom_call.1} parent=183 // pred_check
          %p1588 = pneg %p571
        $region258: #{tpu_custom_call.1} parent=183 // pred_check_branch
          %1590 = sbr.rel (%p1588) target = $region260
        $region259: #{tpu_custom_call.1} parent=183 // pred_region
          %1591 = dma.done [#allocation30], 32
        $region260: #{tpu_custom_call.1} parent=183 // pred_fallthru
          _
        // Predicated region
        $region261: #{tpu_custom_call.1} parent=183 // pred_check
          %p1592 = pneg %p592
        $region262: #{tpu_custom_call.1} parent=183 // pred_check_branch
          %1594 = sbr.rel (%p1592) target = $region264
        $region263: #{tpu_custom_call.1} parent=183 // pred_region
          %1595 = dma.done [#allocation33], 2048
        $region264: #{tpu_custom_call.1} parent=183 // pred_fallthru
          _
        // Predicated region
        $region265: #{tpu_custom_call.1} parent=183 // pred_check
          %p1596 = pneg %p613
        $region266: #{tpu_custom_call.1} parent=183 // pred_check_branch
          %1598 = sbr.rel (%p1596) target = $region268
        $region267: #{tpu_custom_call.1} parent=183 // pred_region
          %1599 = dma.done [#allocation33], 16
        $region268: #{tpu_custom_call.1} parent=183 // pred_fallthru
          _
        // Predicated region
        $region269: #{tpu_custom_call.1} parent=183 // pred_check
          %p1600 = pneg %p634
        $region270: #{tpu_custom_call.1} parent=183 // pred_check_branch
          %1602 = sbr.rel (%p1600) target = $region272
        $region271: #{tpu_custom_call.1} parent=183 // pred_region
          %1603 = dma.done [#allocation36], 16
        $region272: #{tpu_custom_call.1} parent=183 // pred_fallthru
          _
        // Predicated region
        $region273: #{tpu_custom_call.1} parent=183 // pred_check
          %p1604 = pneg %p655
        $region274: #{tpu_custom_call.1} parent=183 // pred_check_branch
          %1606 = sbr.rel (%p1604) target = $region276
        $region275: #{tpu_custom_call.1} parent=183 // pred_region
          %1607 = dma.done [#allocation36], 16
        $region276: #{tpu_custom_call.1} parent=183 // pred_fallthru
          _
        // Predicated region
        $region277: #{tpu_custom_call.1} parent=183 // pred_check
          %p1608 = pneg %p676
        $region278: #{tpu_custom_call.1} parent=183 // pred_check_branch
          %1610 = sbr.rel (%p1608) target = $region280
        $region279: #{tpu_custom_call.1} parent=183 // pred_region
          %1611 = dma.done [#allocation39], 16
        $region280: #{tpu_custom_call.1} parent=183 // pred_fallthru
          _
        // Predicated region
        $region281: #{tpu_custom_call.1} parent=183 // pred_check
          %p1612 = pneg %p697
        $region282: #{tpu_custom_call.1} parent=183 // pred_check_branch
          %1614 = sbr.rel (%p1612) target = $region284
        $region283: #{tpu_custom_call.1} parent=183 // pred_region
          %1615 = dma.done [#allocation39], 16
        $region284: #{tpu_custom_call.1} parent=183 // pred_fallthru
          _
        // Predicated region
        $region285: #{tpu_custom_call.1} parent=183 // pred_check
          %p1616 = pneg %p718
        $region286: #{tpu_custom_call.1} parent=183 // pred_check_branch
          %1618 = sbr.rel (%p1616) target = $region288
        $region287: #{tpu_custom_call.1} parent=183 // pred_region
          %1619 = dma.done [#allocation42], 16
        $region288: #{tpu_custom_call.1} parent=183 // pred_fallthru
          _
        // Predicated region
        $region289: #{tpu_custom_call.1} parent=183 // pred_check
          %p1620 = pneg %p739
        $region290: #{tpu_custom_call.1} parent=183 // pred_check_branch
          %1622 = sbr.rel (%p1620) target = $region292
        $region291: #{tpu_custom_call.1} parent=183 // pred_region
          %1623 = dma.done [#allocation42], 16
        $region292: #{tpu_custom_call.1} parent=183 // pred_fallthru
          _
        // Predicated region
        $region293: #{tpu_custom_call.1} parent=183 // pred_check
          %p1624 = pneg %p760
        $region294: #{tpu_custom_call.1} parent=183 // pred_check_branch
          %1626 = sbr.rel (%p1624) target = $region296
        $region295: #{tpu_custom_call.1} parent=183 // pred_region
          %1627 = dma.done [#allocation45], 1024
        $region296: #{tpu_custom_call.1} parent=183 // pred_fallthru
          _
        // Predicated region
        $region297: #{tpu_custom_call.1} parent=183 // pred_check
          %p1628 = pneg %p781
        $region298: #{tpu_custom_call.1} parent=183 // pred_check_branch
          %1630 = sbr.rel (%p1628) target = $region300
        $region299: #{tpu_custom_call.1} parent=183 // pred_region
          %1631 = dma.done [#allocation45], 16
        $region300: #{tpu_custom_call.1} parent=183 // pred_fallthru
          _
        // Predicated region
        $region301: #{tpu_custom_call.1} parent=183 // pred_check
          %p1632 = pneg %p802
        $region302: #{tpu_custom_call.1} parent=183 // pred_check_branch
          %1634 = sbr.rel (%p1632) target = $region304
        $region303: #{tpu_custom_call.1} parent=183 // pred_region
          %1635 = dma.done [#allocation48], 1024
        $region304: #{tpu_custom_call.1} parent=183 // pred_fallthru
          _
        // Predicated region
        $region305: #{tpu_custom_call.1} parent=183 // pred_check
          %p1636 = pneg %p823
        $region306: #{tpu_custom_call.1} parent=183 // pred_check_branch
          %1638 = sbr.rel (%p1636) target = $region308
        $region307: #{tpu_custom_call.1} parent=183 // pred_region
          %1639 = dma.done [#allocation48], 16
        $region308: #{tpu_custom_call.1} parent=183 // pred_fallthru
          _
        // Predicated region
        $region309: #{tpu_custom_call.1} parent=183 // pred_check
          %p1640 = pneg %p844
        $region310: #{tpu_custom_call.1} parent=183 // pred_check_branch
          %1642 = sbr.rel (%p1640) target = $region312
        $region311: #{tpu_custom_call.1} parent=183 // pred_region
          %1643 = dma.done [#allocation51], 1024
        $region312: #{tpu_custom_call.1} parent=183 // pred_fallthru
          _
        // Predicated region
        $region313: #{tpu_custom_call.1} parent=183 // pred_check
          %p1644 = pneg %p865
        $region314: #{tpu_custom_call.1} parent=183 // pred_check_branch
          %1646 = sbr.rel (%p1644) target = $region316
        $region315: #{tpu_custom_call.1} parent=183 // pred_region
          %1647 = dma.done [#allocation51], 16
        $region316: #{tpu_custom_call.1} parent=183 // pred_fallthru
          _
        // Predicated region
        $region317: #{tpu_custom_call.1} parent=183 // pred_check
          %p1648 = pneg %p886
        $region318: #{tpu_custom_call.1} parent=183 // pred_check_branch
          %1650 = sbr.rel (%p1648) target = $region320
        $region319: #{tpu_custom_call.1} parent=183 // pred_region
          %1651 = dma.done [#allocation54], 1024
        $region320: #{tpu_custom_call.1} parent=183 // pred_fallthru
          _
        // Predicated region
        $region321: #{tpu_custom_call.1} parent=183 // pred_check
          %p1652 = pneg %p907
        $region322: #{tpu_custom_call.1} parent=183 // pred_check_branch
          %1654 = sbr.rel (%p1652) target = $region324
        $region323: #{tpu_custom_call.1} parent=183 // pred_region
          %1655 = dma.done [#allocation54], 16
        $region324: #{tpu_custom_call.1} parent=183 // pred_fallthru
          _
        // Predicated region
        $region325: #{tpu_custom_call.1} parent=183 // pred_check
          %p1656 = pneg %p970
        $region326: #{tpu_custom_call.1} parent=183 // pred_check_branch
          %1658 = sbr.rel (%p1656) target = $region328
        $region327: #{tpu_custom_call.1} parent=183 // pred_region
          %1659 = dma.done [#allocation57], 1024
        $region328: #{tpu_custom_call.1} parent=183 // pred_fallthru
          _
        %s1660 = sand.u32 %s128, 1
        %s1661 = scalar_lea.sflag [#allocation3], %s1660
        %s1662 = sand.u32 %s128, 1
        %s1663 = smul.addr %s1662, 8
        %s1664 = scalar_lea.vmem [#allocation2], %s1663
        %p1665 = pneg %p141
        %p1666 = pneg %p138
        %s1667 = sand.u32 %s120, 1
        %s1668 = scalar_lea.sflag [#allocation6], %s1667
        %s1669 = sand.u32 %s154, 1
        %s1670 = smul.addr %s1669, 8
        %s1671 = scalar_lea.vmem [#allocation5], %s1670
        %p1672 = pneg %p167
        %p1673 = pneg %p164
        %p1674 = scmp.lt.s32.totalorder %s120, 1
        %s1675 = scalar_select %p1674, %s120, 1
        %s1676 = scalar_lea.vmem %s5, %s1675
        %p1677 = pneg %p193
        %p1678 = pneg %p190
        %p1679 = pneg %p214
        %p1680 = pneg %p211
        %p1681 = pneg %p235
        %p1682 = pneg %p232
        %p1683 = pneg %p256
        %p1684 = pneg %p253
        %p1685 = pneg %p277
        %p1686 = pneg %p274
        %p1687 = pneg %p298
        %p1688 = pneg %p295
        %p1689 = pneg %p319
        %p1690 = pneg %p316
        %p1691 = pneg %p340
        %p1692 = pneg %p337
        %p1693 = pneg %p361
        %p1694 = pneg %p358
        %p1695 = pneg %p382
        %p1696 = pneg %p379
        %p1697 = pneg %p403
        %p1698 = pneg %p400
        %p1699 = pneg %p424
        %p1700 = pneg %p421
        %p1701 = pneg %p445
        %p1702 = pneg %p442
        %p1703 = pneg %p466
        %p1704 = pneg %p463
        %p1705 = pneg %p487
        %p1706 = pneg %p484
        %p1707 = pneg %p508
        %p1708 = pneg %p505
        %p1709 = pneg %p529
        %p1710 = pneg %p526
        %p1711 = pneg %p550
        %p1712 = pneg %p547
        %p1713 = pneg %p571
        %p1714 = pneg %p568
        %p1715 = pneg %p592
        %p1716 = pneg %p589
        %p1717 = pneg %p613
        %p1718 = pneg %p610
        %p1719 = pneg %p634
        %p1720 = pneg %p631
        %p1721 = pneg %p655
        %p1722 = pneg %p652
        %p1723 = pneg %p676
        %p1724 = pneg %p673
        %p1725 = pneg %p697
        %p1726 = pneg %p694
        %p1727 = pneg %p718
        %p1728 = pneg %p715
        %p1729 = pneg %p739
        %p1730 = pneg %p736
        %p1731 = pneg %p760
        %p1732 = pneg %p757
        %p1733 = pneg %p781
        %p1734 = pneg %p778
        %p1735 = pneg %p802
        %p1736 = pneg %p799
        %p1737 = pneg %p823
        %p1738 = pneg %p820
        %p1739 = pneg %p844
        %p1740 = pneg %p841
        %p1741 = pneg %p865
        %p1742 = pneg %p862
        %p1743 = pneg %p886
        %p1744 = pneg %p883
        %p1745 = pneg %p907
        %p1746 = pneg %p904
        %p1747 = pneg %p928
        %p1748 = pneg %p925
        %p1749 = pneg %p949
        %p1750 = pneg %p946
        %p1751 = pneg %p970
        %p1752 = pneg %p967
        %p1753 = pneg %p991
        %p1754 = pneg %p988
        %p1755 = pneg %p1017
        %p1756 = pneg %p1014
        %s1757 = sand.u32 %s1004, 1
        %s1758 = scalar_lea.sflag [#allocation4], %s1757
        %s1759 = sand.u32 %s1004, 1
        %s1760 = smul.addr %s1759, 8
        %s1761 = scalar_lea.vmem [#allocation58], %s1760
        %p1762 = scmp.lt.s32.totalorder %s120, 1
        %s1763 = scalar_select %p1762, %s120, 1
        %s1764 = scalar_lea.vmem %s5, %s1763
        %v1766 = vld [vmem:[%s1510] sm:$0xff]
        %v1767 = vld [vmem:[%s1519] sm:$0xf]
        %v1768 = vld [vmem:[%s1519 + $0x4] sm:$0xf]
        %v1769 = vld [vmem:[%s1764] sm:$0x1]
        %vm1770 = vcmp.gt.f32.partialorder %v1769, 20.0
        %v1771 = vmin.f32 %v1769, 20.0
        %v1772 = vmul.f32 %v1771, 1.442695
        %v1773 = vpow.pop %v1772
        %v1774 = vadd.f32 %v1773, 1.0
        %v1775 = vlog2.pop %v1774
        %v1776 = vmul.f32 %v1775, 0.6931472
        %v1777 = vsel %vm1770, %v1769, %v1776
        %v1778 = vtanh.pop %v1777
        %v1779 = vmul.f32 %v1769, %v1778
        %v1780 = vpack.c.bf16 %v1779, %v1779
        %v1781 = vld [vmem:[#allocation44] sm:$0xf]
        %v1782 = vld [vmem:[#allocation44 + $0x4] sm:$0xf]
        %v1783 = vld [vmem:[#allocation44 + $0x8] sm:$0xf]
        %v1784 = vld [vmem:[#allocation44 + $0xc] sm:$0xf]
        %v1785 = vld [vmem:[#allocation44 + $0x10] sm:$0xf]
        %v1786 = vld [vmem:[#allocation44 + $0x14] sm:$0xf]
        %v1787 = vld [vmem:[#allocation44 + $0x18] sm:$0xf]
        %v1788 = vld [vmem:[#allocation44 + $0x1c] sm:$0xf]
        %v1789 = vld [vmem:[#allocation44 + $0x20] sm:$0xf]
        %v1790 = vld [vmem:[#allocation44 + $0x24] sm:$0xf]
        %v1791 = vld [vmem:[#allocation44 + $0x28] sm:$0xf]
        %v1792 = vld [vmem:[#allocation44 + $0x2c] sm:$0xf]
        %v1793 = vld [vmem:[#allocation44 + $0x30] sm:$0xf]
        %v1794 = vld [vmem:[#allocation44 + $0x34] sm:$0xf]
        %v1795 = vld [vmem:[#allocation44 + $0x38] sm:$0xf]
        %v1796 = vld [vmem:[#allocation44 + $0x3c] sm:$0xf]
        %v1797 = vld [vmem:[#allocation46] sm:$0x1]
        %v1814 = vunpack.c.l.b16 %v1781
        %v1815 = vunpack.c.l.b16 %v1782
        %v1816 = vunpack.c.l.b16 %v1783
        %v1817 = vunpack.c.l.b16 %v1784
        %v1818 = vunpack.c.l.b16 %v1785
        %v1819 = vunpack.c.l.b16 %v1786
        %v1820 = vunpack.c.l.b16 %v1787
        %v1821 = vunpack.c.l.b16 %v1788
        %v1822 = vunpack.c.l.b16 %v1789
        %v1823 = vunpack.c.l.b16 %v1790
        %v1824 = vunpack.c.l.b16 %v1791
        %v1825 = vunpack.c.l.b16 %v1792
        %v1826 = vunpack.c.l.b16 %v1793
        %v1827 = vunpack.c.l.b16 %v1794
        %v1828 = vunpack.c.l.b16 %v1795
        %v1829 = vunpack.c.l.b16 %v1796
        %v1830 = vpack.c.b16 %v1815, %v1814
        %v1831 = vpack.c.b16 %v1817, %v1816
        %v1832 = vpack.c.b16 %v1819, %v1818
        %v1833 = vpack.c.b16 %v1821, %v1820
        %v1834 = vpack.c.b16 %v1823, %v1822
        %v1835 = vpack.c.b16 %v1825, %v1824
        %v1836 = vpack.c.b16 %v1827, %v1826
        %v1837 = vpack.c.b16 %v1829, %v1828
        %1846 = vmatprep.subr.bf16.mxu0 0
        %1847 = vmatpush1.bf16.msra.mxu0 %v1837
        %1848 = vmatprep.subr.bf16.mxu0 0
        %1849 = vmatpush1.bf16.msra.mxu0 %v1836
        %1850 = vmatprep.subr.bf16.mxu0 0
        %1851 = vmatpush1.bf16.msra.mxu0 %v1835
        %1852 = vmatprep.subr.bf16.mxu0 0
        %1853 = vmatpush1.bf16.msra.mxu0 %v1834
        %1854 = vmatprep.subr.bf16.mxu0 0
        %1855 = vmatpush1.bf16.msra.mxu0 %v1833
        %1856 = vmatprep.subr.bf16.mxu0 0
        %1857 = vmatpush1.bf16.msra.mxu0 %v1832
        %1858 = vmatprep.subr.bf16.mxu0 0
        %1859 = vmatpush1.bf16.msra.mxu0 %v1831
        %1860 = vmatprep.subr.bf16.mxu0 0
        %1861 = vmatpush1.bf16.msra.mxu0 %v1830
        %1862 = vmatprep.subr.bf16.mxu0 0
        %1863 = vmatpush2.bf16.msra.mxu0 0
        %1864 = vmatprep.subr.bf16.mxu0 0
        %1865 = vmatpush2.bf16.msra.mxu0 0
        %1866 = vmatprep.subr.bf16.mxu0 0
        %1867 = vmatpush2.bf16.msra.mxu0 0
        %1868 = vmatprep.subr.bf16.mxu0 0
        %1869 = vmatpush2.bf16.msra.mxu0 0
        %1870 = vmatprep.subr.bf16.mxu0 0
        %1871 = vmatpush2.bf16.msra.mxu0 0
        %1872 = vmatprep.subr.bf16.mxu0 0
        %1873 = vmatpush2.bf16.msra.mxu0 0
        %1874 = vmatprep.subr.bf16.mxu0 0
        %1875 = vmatpush2.bf16.msra.mxu0 0
        %1876 = vmatprep.subr.bf16.mxu0 0
        %1877 = vmatpush2.bf16.msra.mxu0 0
        %1878 = vmatprep.mubr.bf16.mxu0 0
        %1879 = vmatmul.mubr.bf16.gmra.mxu0 %v1780
        %v1880 = vpop.f32.mrf.mxu0
        %v1881 = vadd.f32 %v1797, %v1880
        %v1882 = vpop.f32.mrf.mxu0
        %v1883 = vpop.f32.mrf.mxu0
        %v1884 = vpop.f32.mrf.mxu0
        %1885 = vdwg.mxu0
        %v1886 = vld [vmem:[#allocation47] sm:$0xf]
        %v1887 = vld [vmem:[#allocation47 + $0x4] sm:$0xf]
        %v1888 = vld [vmem:[#allocation47 + $0x8] sm:$0xf]
        %v1889 = vld [vmem:[#allocation47 + $0xc] sm:$0xf]
        %v1890 = vld [vmem:[#allocation47 + $0x10] sm:$0xf]
        %v1891 = vld [vmem:[#allocation47 + $0x14] sm:$0xf]
        %v1892 = vld [vmem:[#allocation47 + $0x18] sm:$0xf]
        %v1893 = vld [vmem:[#allocation47 + $0x1c] sm:$0xf]
        %v1894 = vld [vmem:[#allocation47 + $0x20] sm:$0xf]
        %v1895 = vld [vmem:[#allocation47 + $0x24] sm:$0xf]
        %v1896 = vld [vmem:[#allocation47 + $0x28] sm:$0xf]
        %v1897 = vld [vmem:[#allocation47 + $0x2c] sm:$0xf]
        %v1898 = vld [vmem:[#allocation47 + $0x30] sm:$0xf]
        %v1899 = vld [vmem:[#allocation47 + $0x34] sm:$0xf]
        %v1900 = vld [vmem:[#allocation47 + $0x38] sm:$0xf]
        %v1901 = vld [vmem:[#allocation47 + $0x3c] sm:$0xf]
        %v1902 = vld [vmem:[#allocation49] sm:$0x1]
        %v1919 = vunpack.c.l.b16 %v1886
        %v1920 = vunpack.c.l.b16 %v1887
        %v1921 = vunpack.c.l.b16 %v1888
        %v1922 = vunpack.c.l.b16 %v1889
        %v1923 = vunpack.c.l.b16 %v1890
        %v1924 = vunpack.c.l.b16 %v1891
        %v1925 = vunpack.c.l.b16 %v1892
        %v1926 = vunpack.c.l.b16 %v1893
        %v1927 = vunpack.c.l.b16 %v1894
        %v1928 = vunpack.c.l.b16 %v1895
        %v1929 = vunpack.c.l.b16 %v1896
        %v1930 = vunpack.c.l.b16 %v1897
        %v1931 = vunpack.c.l.b16 %v1898
        %v1932 = vunpack.c.l.b16 %v1899
        %v1933 = vunpack.c.l.b16 %v1900
        %v1934 = vunpack.c.l.b16 %v1901
        %v1935 = vpack.c.b16 %v1920, %v1919
        %v1936 = vpack.c.b16 %v1922, %v1921
        %v1937 = vpack.c.b16 %v1924, %v1923
        %v1938 = vpack.c.b16 %v1926, %v1925
        %v1939 = vpack.c.b16 %v1928, %v1927
        %v1940 = vpack.c.b16 %v1930, %v1929
        %v1941 = vpack.c.b16 %v1932, %v1931
        %v1942 = vpack.c.b16 %v1934, %v1933
        %1951 = vmatprep.subr.bf16.mxu0 0
        %1952 = vmatpush1.bf16.msra.mxu0 %v1942
        %1953 = vmatprep.subr.bf16.mxu0 0
        %1954 = vmatpush1.bf16.msra.mxu0 %v1941
        %1955 = vmatprep.subr.bf16.mxu0 0
        %1956 = vmatpush1.bf16.msra.mxu0 %v1940
        %1957 = vmatprep.subr.bf16.mxu0 0
        %1958 = vmatpush1.bf16.msra.mxu0 %v1939
        %1959 = vmatprep.subr.bf16.mxu0 0
        %1960 = vmatpush1.bf16.msra.mxu0 %v1938
        %1961 = vmatprep.subr.bf16.mxu0 0
        %1962 = vmatpush1.bf16.msra.mxu0 %v1937
        %1963 = vmatprep.subr.bf16.mxu0 0
        %1964 = vmatpush1.bf16.msra.mxu0 %v1936
        %1965 = vmatprep.subr.bf16.mxu0 0
        %1966 = vmatpush1.bf16.msra.mxu0 %v1935
        %1967 = vmatprep.subr.bf16.mxu0 0
        %1968 = vmatpush2.bf16.msra.mxu0 0
        %1969 = vmatprep.subr.bf16.mxu0 0
        %1970 = vmatpush2.bf16.msra.mxu0 0
        %1971 = vmatprep.subr.bf16.mxu0 0
        %1972 = vmatpush2.bf16.msra.mxu0 0
        %1973 = vmatprep.subr.bf16.mxu0 0
        %1974 = vmatpush2.bf16.msra.mxu0 0
        %1975 = vmatprep.subr.bf16.mxu0 0
        %1976 = vmatpush2.bf16.msra.mxu0 0
        %1977 = vmatprep.subr.bf16.mxu0 0
        %1978 = vmatpush2.bf16.msra.mxu0 0
        %1979 = vmatprep.subr.bf16.mxu0 0
        %1980 = vmatpush2.bf16.msra.mxu0 0
        %1981 = vmatprep.subr.bf16.mxu0 0
        %1982 = vmatpush2.bf16.msra.mxu0 0
        %1983 = vmatprep.mubr.bf16.mxu0 0
        %1984 = vmatmul.mubr.bf16.gmra.mxu0 %v1780
        %v1985 = vpop.f32.mrf.mxu0
        %v1986 = vadd.f32 %v1902, %v1985
        %v1987 = vpop.f32.mrf.mxu0
        %v1988 = vpop.f32.mrf.mxu0
        %v1989 = vpop.f32.mrf.mxu0
        %1990 = vdwg.mxu0
        %v1991 = vld [vmem:[#allocation35] sm:$0x1]
        %v1992 = vld [vmem:[#allocation37] sm:$0x1]
        %1993 = vadd.xlane.f32.xlu0 %v1766
        %v1994 = vpop.xlane.xlu0 %1993
        %v1995 = vrcp.pop 128.0
        %v1996 = vmul.f32 %v1994, %v1995
        %v1997 = vsub.f32 %v1766, %v1996
        %v1998 = vmul.f32 %v1997, %v1997
        %1999 = vadd.xlane.f32.xlu0 %v1998
        %v2000 = vpop.xlane.xlu0 %1999
        %v2001 = vmul.f32 %v2000, %v1995
        %v2002 = vadd.f32 %v2001, 1e-05
        %v2003 = vrsqrt.pop %v2002
        %v2004 = vmul.f32 %v1997, %v2003
        %v2006 = vlaneseq
        %v2007 = vshrl.u32 %v2006, 7
        %v2008 = vsub.s32 0, %v2007
        %v2009 = vrot.slane %v1991, %v2008
        %v2011 = vmul.f32 %v2004, %v2009
        %v2013 = vlaneseq
        %v2014 = vshrl.u32 %v2013, 7
        %v2015 = vsub.s32 0, %v2014
        %v2016 = vrot.slane %v1992, %v2015
        %v2018 = vadd.f32 %v2011, %v2016
        %v2019 = vpack.c.bf16 %v2018, %v2018
        %v2020 = vld [vmem:[#allocation7] sm:$0xf]
        %v2021 = vld [vmem:[#allocation7 + $0x4] sm:$0xf]
        %v2022 = vld [vmem:[#allocation7 + $0x8] sm:$0xf]
        %v2023 = vld [vmem:[#allocation7 + $0xc] sm:$0xf]
        %v2024 = vld [vmem:[#allocation7 + $0x10] sm:$0xf]
        %v2025 = vld [vmem:[#allocation7 + $0x14] sm:$0xf]
        %v2026 = vld [vmem:[#allocation7 + $0x18] sm:$0xf]
        %v2027 = vld [vmem:[#allocation7 + $0x1c] sm:$0xf]
        %v2028 = vld [vmem:[#allocation7 + $0x20] sm:$0xf]
        %v2029 = vld [vmem:[#allocation7 + $0x24] sm:$0xf]
        %v2030 = vld [vmem:[#allocation7 + $0x28] sm:$0xf]
        %v2031 = vld [vmem:[#allocation7 + $0x2c] sm:$0xf]
        %v2032 = vld [vmem:[#allocation7 + $0x30] sm:$0xf]
        %v2033 = vld [vmem:[#allocation7 + $0x34] sm:$0xf]
        %v2034 = vld [vmem:[#allocation7 + $0x38] sm:$0xf]
        %v2035 = vld [vmem:[#allocation7 + $0x3c] sm:$0xf]
        %v2036 = vld [vmem:[%s9] sm:$0x1]
        %v2038 = vlaneseq
        %v2039 = vshrl.u32 %v2038, 7
        %v2040 = vsub.s32 0, %v2039
        %v2041 = vrot.slane %v2036, %v2040
        %v2059 = vunpack.c.l.b16 %v2020
        %v2060 = vunpack.c.l.b16 %v2021
        %v2061 = vunpack.c.l.b16 %v2022
        %v2062 = vunpack.c.l.b16 %v2023
        %v2063 = vunpack.c.l.b16 %v2024
        %v2064 = vunpack.c.l.b16 %v2025
        %v2065 = vunpack.c.l.b16 %v2026
        %v2066 = vunpack.c.l.b16 %v2027
        %v2067 = vunpack.c.l.b16 %v2028
        %v2068 = vunpack.c.l.b16 %v2029
        %v2069 = vunpack.c.l.b16 %v2030
        %v2070 = vunpack.c.l.b16 %v2031
        %v2071 = vunpack.c.l.b16 %v2032
        %v2072 = vunpack.c.l.b16 %v2033
        %v2073 = vunpack.c.l.b16 %v2034
        %v2074 = vunpack.c.l.b16 %v2035
        %v2075 = vpack.c.b16 %v2060, %v2059
        %v2076 = vpack.c.b16 %v2062, %v2061
        %v2077 = vpack.c.b16 %v2064, %v2063
        %v2078 = vpack.c.b16 %v2066, %v2065
        %v2079 = vpack.c.b16 %v2068, %v2067
        %v2080 = vpack.c.b16 %v2070, %v2069
        %v2081 = vpack.c.b16 %v2072, %v2071
        %v2082 = vpack.c.b16 %v2074, %v2073
        %2091 = vmatprep.subr.bf16.mxu0 0
        %2092 = vmatpush1.bf16.msra.mxu0 %v2082
        %2093 = vmatprep.subr.bf16.mxu0 0
        %2094 = vmatpush1.bf16.msra.mxu0 %v2081
        %2095 = vmatprep.subr.bf16.mxu0 0
        %2096 = vmatpush1.bf16.msra.mxu0 %v2080
        %2097 = vmatprep.subr.bf16.mxu0 0
        %2098 = vmatpush1.bf16.msra.mxu0 %v2079
        %2099 = vmatprep.subr.bf16.mxu0 0
        %2100 = vmatpush1.bf16.msra.mxu0 %v2078
        %2101 = vmatprep.subr.bf16.mxu0 0
        %2102 = vmatpush1.bf16.msra.mxu0 %v2077
        %2103 = vmatprep.subr.bf16.mxu0 0
        %2104 = vmatpush1.bf16.msra.mxu0 %v2076
        %2105 = vmatprep.subr.bf16.mxu0 0
        %2106 = vmatpush1.bf16.msra.mxu0 %v2075
        %2107 = vmatprep.subr.bf16.mxu0 0
        %2108 = vmatpush2.bf16.msra.mxu0 0
        %2109 = vmatprep.subr.bf16.mxu0 0
        %2110 = vmatpush2.bf16.msra.mxu0 0
        %2111 = vmatprep.subr.bf16.mxu0 0
        %2112 = vmatpush2.bf16.msra.mxu0 0
        %2113 = vmatprep.subr.bf16.mxu0 0
        %2114 = vmatpush2.bf16.msra.mxu0 0
        %2115 = vmatprep.subr.bf16.mxu0 0
        %2116 = vmatpush2.bf16.msra.mxu0 0
        %2117 = vmatprep.subr.bf16.mxu0 0
        %2118 = vmatpush2.bf16.msra.mxu0 0
        %2119 = vmatprep.subr.bf16.mxu0 0
        %2120 = vmatpush2.bf16.msra.mxu0 0
        %2121 = vmatprep.subr.bf16.mxu0 0
        %2122 = vmatpush2.bf16.msra.mxu0 0
        %2123 = vmatprep.mubr.bf16.mxu0 0
        %2124 = vmatmul.mubr.bf16.gmra.mxu0 %v2019
        %v2125 = vpop.f32.mrf.mxu0
        %v2126 = vadd.f32 %v2041, %v2125
        %v2127 = vpop.f32.mrf.mxu0
        %v2128 = vpop.f32.mrf.mxu0
        %v2129 = vpop.f32.mrf.mxu0
        %2130 = vdwg.mxu0
        %v2131 = vld [vmem:[#allocation8] sm:$0xf]
        %v2132 = vld [vmem:[#allocation8 + $0x4] sm:$0xf]
        %v2133 = vld [vmem:[#allocation8 + $0x8] sm:$0xf]
        %v2134 = vld [vmem:[#allocation8 + $0xc] sm:$0xf]
        %v2135 = vld [vmem:[#allocation8 + $0x10] sm:$0xf]
        %v2136 = vld [vmem:[#allocation8 + $0x14] sm:$0xf]
        %v2137 = vld [vmem:[#allocation8 + $0x18] sm:$0xf]
        %v2138 = vld [vmem:[#allocation8 + $0x1c] sm:$0xf]
        %v2139 = vld [vmem:[#allocation8 + $0x20] sm:$0xf]
        %v2140 = vld [vmem:[#allocation8 + $0x24] sm:$0xf]
        %v2141 = vld [vmem:[#allocation8 + $0x28] sm:$0xf]
        %v2142 = vld [vmem:[#allocation8 + $0x2c] sm:$0xf]
        %v2143 = vld [vmem:[#allocation8 + $0x30] sm:$0xf]
        %v2144 = vld [vmem:[#allocation8 + $0x34] sm:$0xf]
        %v2145 = vld [vmem:[#allocation8 + $0x38] sm:$0xf]
        %v2146 = vld [vmem:[#allocation8 + $0x3c] sm:$0xf]
        %v2147 = vld [vmem:[#allocation10] sm:$0x1]
        %v2149 = vlaneseq
        %v2150 = vshrl.u32 %v2149, 7
        %v2151 = vsub.s32 0, %v2150
        %v2152 = vrot.slane %v2147, %v2151
        %v2170 = vunpack.c.l.b16 %v2131
        %v2171 = vunpack.c.l.b16 %v2132
        %v2172 = vunpack.c.l.b16 %v2133
        %v2173 = vunpack.c.l.b16 %v2134
        %v2174 = vunpack.c.l.b16 %v2135
        %v2175 = vunpack.c.l.b16 %v2136
        %v2176 = vunpack.c.l.b16 %v2137
        %v2177 = vunpack.c.l.b16 %v2138
        %v2178 = vunpack.c.l.b16 %v2139
        %v2179 = vunpack.c.l.b16 %v2140
        %v2180 = vunpack.c.l.b16 %v2141
        %v2181 = vunpack.c.l.b16 %v2142
        %v2182 = vunpack.c.l.b16 %v2143
        %v2183 = vunpack.c.l.b16 %v2144
        %v2184 = vunpack.c.l.b16 %v2145
        %v2185 = vunpack.c.l.b16 %v2146
        %v2186 = vpack.c.b16 %v2171, %v2170
        %v2187 = vpack.c.b16 %v2173, %v2172
        %v2188 = vpack.c.b16 %v2175, %v2174
        %v2189 = vpack.c.b16 %v2177, %v2176
        %v2190 = vpack.c.b16 %v2179, %v2178
        %v2191 = vpack.c.b16 %v2181, %v2180
        %v2192 = vpack.c.b16 %v2183, %v2182
        %v2193 = vpack.c.b16 %v2185, %v2184
        %2202 = vmatprep.subr.bf16.mxu0 0
        %2203 = vmatpush1.bf16.msra.mxu0 %v2193
        %2204 = vmatprep.subr.bf16.mxu0 0
        %2205 = vmatpush1.bf16.msra.mxu0 %v2192
        %2206 = vmatprep.subr.bf16.mxu0 0
        %2207 = vmatpush1.bf16.msra.mxu0 %v2191
        %2208 = vmatprep.subr.bf16.mxu0 0
        %2209 = vmatpush1.bf16.msra.mxu0 %v2190
        %2210 = vmatprep.subr.bf16.mxu0 0
        %2211 = vmatpush1.bf16.msra.mxu0 %v2189
        %2212 = vmatprep.subr.bf16.mxu0 0
        %2213 = vmatpush1.bf16.msra.mxu0 %v2188
        %2214 = vmatprep.subr.bf16.mxu0 0
        %2215 = vmatpush1.bf16.msra.mxu0 %v2187
        %2216 = vmatprep.subr.bf16.mxu0 0
        %2217 = vmatpush1.bf16.msra.mxu0 %v2186
        %2218 = vmatprep.subr.bf16.mxu0 0
        %2219 = vmatpush2.bf16.msra.mxu0 0
        %2220 = vmatprep.subr.bf16.mxu0 0
        %2221 = vmatpush2.bf16.msra.mxu0 0
        %2222 = vmatprep.subr.bf16.mxu0 0
        %2223 = vmatpush2.bf16.msra.mxu0 0
        %2224 = vmatprep.subr.bf16.mxu0 0
        %2225 = vmatpush2.bf16.msra.mxu0 0
        %2226 = vmatprep.subr.bf16.mxu0 0
        %2227 = vmatpush2.bf16.msra.mxu0 0
        %2228 = vmatprep.subr.bf16.mxu0 0
        %2229 = vmatpush2.bf16.msra.mxu0 0
        %2230 = vmatprep.subr.bf16.mxu0 0
        %2231 = vmatpush2.bf16.msra.mxu0 0
        %2232 = vmatprep.subr.bf16.mxu0 0
        %2233 = vmatpush2.bf16.msra.mxu0 0
        %2234 = vmatprep.mubr.bf16.mxu0 0
        %2235 = vmatmul.mubr.bf16.gmra.mxu0 %v2019
        %v2236 = vpop.f32.mrf.mxu0
        %v2237 = vadd.f32 %v2152, %v2236
        %v2238 = vpop.f32.mrf.mxu0
        %v2239 = vpop.f32.mrf.mxu0
        %v2240 = vpop.f32.mrf.mxu0
        %2241 = vdwg.mxu0
        %v2242 = vld [vmem:[#allocation11] sm:$0xf]
        %v2243 = vld [vmem:[#allocation11 + $0x4] sm:$0xf]
        %v2244 = vld [vmem:[#allocation11 + $0x8] sm:$0xf]
        %v2245 = vld [vmem:[#allocation11 + $0xc] sm:$0xf]
        %v2246 = vld [vmem:[#allocation11 + $0x10] sm:$0xf]
        %v2247 = vld [vmem:[#allocation11 + $0x14] sm:$0xf]
        %v2248 = vld [vmem:[#allocation11 + $0x18] sm:$0xf]
        %v2249 = vld [vmem:[#allocation11 + $0x1c] sm:$0xf]
        %v2250 = vld [vmem:[#allocation11 + $0x20] sm:$0xf]
        %v2251 = vld [vmem:[#allocation11 + $0x24] sm:$0xf]
        %v2252 = vld [vmem:[#allocation11 + $0x28] sm:$0xf]
        %v2253 = vld [vmem:[#allocation11 + $0x2c] sm:$0xf]
        %v2254 = vld [vmem:[#allocation11 + $0x30] sm:$0xf]
        %v2255 = vld [vmem:[#allocation11 + $0x34] sm:$0xf]
        %v2256 = vld [vmem:[#allocation11 + $0x38] sm:$0xf]
        %v2257 = vld [vmem:[#allocation11 + $0x3c] sm:$0xf]
        %v2258 = vld [vmem:[#allocation13] sm:$0x1]
        %v2260 = vlaneseq
        %v2261 = vshrl.u32 %v2260, 7
        %v2262 = vsub.s32 0, %v2261
        %v2263 = vrot.slane %v2258, %v2262
        %v2281 = vunpack.c.l.b16 %v2242
        %v2282 = vunpack.c.l.b16 %v2243
        %v2283 = vunpack.c.l.b16 %v2244
        %v2284 = vunpack.c.l.b16 %v2245
        %v2285 = vunpack.c.l.b16 %v2246
        %v2286 = vunpack.c.l.b16 %v2247
        %v2287 = vunpack.c.l.b16 %v2248
        %v2288 = vunpack.c.l.b16 %v2249
        %v2289 = vunpack.c.l.b16 %v2250
        %v2290 = vunpack.c.l.b16 %v2251
        %v2291 = vunpack.c.l.b16 %v2252
        %v2292 = vunpack.c.l.b16 %v2253
        %v2293 = vunpack.c.l.b16 %v2254
        %v2294 = vunpack.c.l.b16 %v2255
        %v2295 = vunpack.c.l.b16 %v2256
        %v2296 = vunpack.c.l.b16 %v2257
        %v2297 = vpack.c.b16 %v2282, %v2281
        %v2298 = vpack.c.b16 %v2284, %v2283
        %v2299 = vpack.c.b16 %v2286, %v2285
        %v2300 = vpack.c.b16 %v2288, %v2287
        %v2301 = vpack.c.b16 %v2290, %v2289
        %v2302 = vpack.c.b16 %v2292, %v2291
        %v2303 = vpack.c.b16 %v2294, %v2293
        %v2304 = vpack.c.b16 %v2296, %v2295
        %2313 = vmatprep.subr.bf16.mxu0 0
        %2314 = vmatpush1.bf16.msra.mxu0 %v2304
        %2315 = vmatprep.subr.bf16.mxu0 0
        %2316 = vmatpush1.bf16.msra.mxu0 %v2303
        %2317 = vmatprep.subr.bf16.mxu0 0
        %2318 = vmatpush1.bf16.msra.mxu0 %v2302
        %2319 = vmatprep.subr.bf16.mxu0 0
        %2320 = vmatpush1.bf16.msra.mxu0 %v2301
        %2321 = vmatprep.subr.bf16.mxu0 0
        %2322 = vmatpush1.bf16.msra.mxu0 %v2300
        %2323 = vmatprep.subr.bf16.mxu0 0
        %2324 = vmatpush1.bf16.msra.mxu0 %v2299
        %2325 = vmatprep.subr.bf16.mxu0 0
        %2326 = vmatpush1.bf16.msra.mxu0 %v2298
        %2327 = vmatprep.subr.bf16.mxu0 0
        %2328 = vmatpush1.bf16.msra.mxu0 %v2297
        %2329 = vmatprep.subr.bf16.mxu0 0
        %2330 = vmatpush2.bf16.msra.mxu0 0
        %2331 = vmatprep.subr.bf16.mxu0 0
        %2332 = vmatpush2.bf16.msra.mxu0 0
        %2333 = vmatprep.subr.bf16.mxu0 0
        %2334 = vmatpush2.bf16.msra.mxu0 0
        %2335 = vmatprep.subr.bf16.mxu0 0
        %2336 = vmatpush2.bf16.msra.mxu0 0
        %2337 = vmatprep.subr.bf16.mxu0 0
        %2338 = vmatpush2.bf16.msra.mxu0 0
        %2339 = vmatprep.subr.bf16.mxu0 0
        %2340 = vmatpush2.bf16.msra.mxu0 0
        %2341 = vmatprep.subr.bf16.mxu0 0
        %2342 = vmatpush2.bf16.msra.mxu0 0
        %2343 = vmatprep.subr.bf16.mxu0 0
        %2344 = vmatpush2.bf16.msra.mxu0 0
        %2345 = vmatprep.mubr.bf16.mxu0 0
        %2346 = vmatmul.mubr.bf16.gmra.mxu0 %v2019
        %v2347 = vpop.f32.mrf.mxu0
        %v2348 = vadd.f32 %v2263, %v2347
        %v2349 = vpop.f32.mrf.mxu0
        %v2350 = vpop.f32.mrf.mxu0
        %v2351 = vpop.f32.mrf.mxu0
        %2352 = vdwg.mxu0
        %v2353 = vpack.c.bf16 %v2126, %v2126
        %v2354 = vpack.c.bf16 %v2237, %v2237
        %v2355 = vpack.c.bf16 %v2348, %v2348
        %vm2356 = vcmask 261120
        %v2358 = vsel %vm2356, %v2353, 0
        %v2361 = vsel %vm2356, %v2354, 0
        %2363 = vmatprep.subr.bf16.mxu0 0
        %2364 = vmatpush1.bf16.xpose.msra.mxu0 0
        %2365 = vmatprep.subr.bf16.mxu0 0
        %2366 = vmatpush1.bf16.xpose.msra.mxu0 0
        %2367 = vmatprep.subr.bf16.mxu0 0
        %2368 = vmatpush1.bf16.xpose.msra.mxu0 0
        %2369 = vmatprep.subr.bf16.mxu0 0
        %2370 = vmatpush1.bf16.xpose.msra.mxu0 0
        %2371 = vmatprep.subr.bf16.mxu0 0
        %2372 = vmatpush1.bf16.xpose.msra.mxu0 0
        %2373 = vmatprep.subr.bf16.mxu0 0
        %2374 = vmatpush1.bf16.xpose.msra.mxu0 0
        %2375 = vmatprep.subr.bf16.mxu0 0
        %2376 = vmatpush1.bf16.xpose.msra.mxu0 0
        %2377 = vmatprep.subr.bf16.mxu0 0
        %2378 = vmatpush1.bf16.xpose.msra.mxu0 %v2361
        %2379 = vmatprep.subr.bf16.mxu0 0
        %2380 = vmatpush2.bf16.xpose.msra.mxu0 0
        %2381 = vmatprep.subr.bf16.mxu0 0
        %2382 = vmatpush2.bf16.xpose.msra.mxu0 0
        %2383 = vmatprep.subr.bf16.mxu0 0
        %2384 = vmatpush2.bf16.xpose.msra.mxu0 0
        %2385 = vmatprep.subr.bf16.mxu0 0
        %2386 = vmatpush2.bf16.xpose.msra.mxu0 0
        %2387 = vmatprep.subr.bf16.mxu0 0
        %2388 = vmatpush2.bf16.xpose.msra.mxu0 0
        %2389 = vmatprep.subr.bf16.mxu0 0
        %2390 = vmatpush2.bf16.xpose.msra.mxu0 0
        %2391 = vmatprep.subr.bf16.mxu0 0
        %2392 = vmatpush2.bf16.xpose.msra.mxu0 0
        %2393 = vmatprep.subr.bf16.mxu0 0
        %2394 = vmatpush2.bf16.xpose.msra.mxu0 0
        %2395 = vmatprep.mubr.bf16.mxu0 0
        %2396 = vmatmul.mubr.bf16.gmra.mxu0 %v2358
        %v2397 = vpop.f32.mrf.mxu0
        %v2398 = vadd.f32 0.0, %v2397
        %v2399 = vpop.f32.mrf.mxu0
        %v2400 = vpop.f32.mrf.mxu0
        %v2401 = vpop.f32.mrf.mxu0
        %2402 = vdwg.mxu0
        %vm2403 = vcmask 64512
        %v2404 = vsel %vm2403, %v2398, -inf
        %2405 = vmax.xlane.f32.xlu0 %v2404
        %v2406 = vpop.xlane.xlu0 %2405
        %v2407 = vsub.f32 %v2398, %v2406
        %v2408 = vmul.f32 %v2407, 1.442695
        %v2409 = vpow.pop %v2408
        %v2410 = vsel %vm2403, %v2409, 0.0
        %2411 = vadd.xlane.f32.xlu0 %v2410
        %v2412 = vpop.xlane.xlu0 %2411
        %v2413 = vrcp.pop %v2412
        %v2414 = vmul.f32 %v2409, %v2413
        %v2415 = vpack.c.bf16 %v2414, %v2414
        %v2417 = vsel %vm2403, %v2415, 0
        %vm2419 = vcmask 1043456
        %v2421 = vsel %vm2419, %v2355, 0
        %2423 = vmatprep.subr.bf16.mxu0 0
        %2424 = vmatpush1.bf16.msra.mxu0 0
        %2425 = vmatprep.subr.bf16.mxu0 0
        %2426 = vmatpush1.bf16.msra.mxu0 0
        %2427 = vmatprep.subr.bf16.mxu0 0
        %2428 = vmatpush1.bf16.msra.mxu0 0
        %2429 = vmatprep.subr.bf16.mxu0 0
        %2430 = vmatpush1.bf16.msra.mxu0 0
        %2431 = vmatprep.subr.bf16.mxu0 0
        %2432 = vmatpush1.bf16.msra.mxu0 0
        %2433 = vmatprep.subr.bf16.mxu0 0
        %2434 = vmatpush1.bf16.msra.mxu0 0
        %2435 = vmatprep.subr.bf16.mxu0 0
        %2436 = vmatpush1.bf16.msra.mxu0 0
        %2437 = vmatprep.subr.bf16.mxu0 0
        %2438 = vmatpush1.bf16.msra.mxu0 %v2421
        %2439 = vmatprep.subr.bf16.mxu0 0
        %2440 = vmatpush2.bf16.msra.mxu0 0
        %2441 = vmatprep.subr.bf16.mxu0 0
        %2442 = vmatpush2.bf16.msra.mxu0 0
        %2443 = vmatprep.subr.bf16.mxu0 0
        %2444 = vmatpush2.bf16.msra.mxu0 0
        %2445 = vmatprep.subr.bf16.mxu0 0
        %2446 = vmatpush2.bf16.msra.mxu0 0
        %2447 = vmatprep.subr.bf16.mxu0 0
        %2448 = vmatpush2.bf16.msra.mxu0 0
        %2449 = vmatprep.subr.bf16.mxu0 0
        %2450 = vmatpush2.bf16.msra.mxu0 0
        %2451 = vmatprep.subr.bf16.mxu0 0
        %2452 = vmatpush2.bf16.msra.mxu0 0
        %2453 = vmatprep.subr.bf16.mxu0 0
        %2454 = vmatpush2.bf16.msra.mxu0 0
        %2455 = vmatprep.mubr.bf16.mxu0 0
        %2456 = vmatmul.mubr.bf16.gmra.mxu0 %v2417
        %v2457 = vpop.f32.mrf.mxu0
        %v2458 = vadd.f32 0.0, %v2457
        %v2459 = vpop.f32.mrf.mxu0
        %v2460 = vpop.f32.mrf.mxu0
        %v2461 = vpop.f32.mrf.mxu0
        %2462 = vdwg.mxu0
        %2464 = vrot.lane.b32.xlu0 %v2353, 96
        %v2465 = vpop.permute.xlu0 %2464
        %2467 = vrot.lane.b32.xlu0 %v2354, 96
        %v2468 = vpop.permute.xlu0 %2467
        %v2470 = vsel %vm2356, %v2465, 0
        %v2473 = vsel %vm2356, %v2468, 0
        %2475 = vmatprep.subr.bf16.mxu0 0
        %2476 = vmatpush1.bf16.xpose.msra.mxu0 0
        %2477 = vmatprep.subr.bf16.mxu0 0
        %2478 = vmatpush1.bf16.xpose.msra.mxu0 0
        %2479 = vmatprep.subr.bf16.mxu0 0
        %2480 = vmatpush1.bf16.xpose.msra.mxu0 0
        %2481 = vmatprep.subr.bf16.mxu0 0
        %2482 = vmatpush1.bf16.xpose.msra.mxu0 0
        %2483 = vmatprep.subr.bf16.mxu0 0
        %2484 = vmatpush1.bf16.xpose.msra.mxu0 0
        %2485 = vmatprep.subr.bf16.mxu0 0
        %2486 = vmatpush1.bf16.xpose.msra.mxu0 0
        %2487 = vmatprep.subr.bf16.mxu0 0
        %2488 = vmatpush1.bf16.xpose.msra.mxu0 0
        %2489 = vmatprep.subr.bf16.mxu0 0
        %2490 = vmatpush1.bf16.xpose.msra.mxu0 %v2473
        %2491 = vmatprep.subr.bf16.mxu0 0
        %2492 = vmatpush2.bf16.xpose.msra.mxu0 0
        %2493 = vmatprep.subr.bf16.mxu0 0
        %2494 = vmatpush2.bf16.xpose.msra.mxu0 0
        %2495 = vmatprep.subr.bf16.mxu0 0
        %2496 = vmatpush2.bf16.xpose.msra.mxu0 0
        %2497 = vmatprep.subr.bf16.mxu0 0
        %2498 = vmatpush2.bf16.xpose.msra.mxu0 0
        %2499 = vmatprep.subr.bf16.mxu0 0
        %2500 = vmatpush2.bf16.xpose.msra.mxu0 0
        %2501 = vmatprep.subr.bf16.mxu0 0
        %2502 = vmatpush2.bf16.xpose.msra.mxu0 0
        %2503 = vmatprep.subr.bf16.mxu0 0
        %2504 = vmatpush2.bf16.xpose.msra.mxu0 0
        %2505 = vmatprep.subr.bf16.mxu0 0
        %2506 = vmatpush2.bf16.xpose.msra.mxu0 0
        %2507 = vmatprep.mubr.bf16.mxu0 0
        %2508 = vmatmul.mubr.bf16.gmra.mxu0 %v2470
        %v2509 = vpop.f32.mrf.mxu0
        %v2510 = vadd.f32 0.0, %v2509
        %v2511 = vpop.f32.mrf.mxu0
        %v2512 = vpop.f32.mrf.mxu0
        %v2513 = vpop.f32.mrf.mxu0
        %2514 = vdwg.mxu0
        %v2515 = vsel %vm2403, %v2510, -inf
        %2516 = vmax.xlane.f32.xlu0 %v2515
        %v2517 = vpop.xlane.xlu0 %2516
        %v2518 = vsub.f32 %v2510, %v2517
        %v2519 = vmul.f32 %v2518, 1.442695
        %v2520 = vpow.pop %v2519
        %v2521 = vsel %vm2403, %v2520, 0.0
        %2522 = vadd.xlane.f32.xlu0 %v2521
        %v2523 = vpop.xlane.xlu0 %2522
        %v2524 = vrcp.pop %v2523
        %v2525 = vmul.f32 %v2520, %v2524
        %v2526 = vpack.c.bf16 %v2525, %v2525
        %2528 = vrot.lane.b32.xlu0 %v2355, 96
        %v2529 = vpop.permute.xlu0 %2528
        %v2531 = vsel %vm2403, %v2526, 0
        %v2534 = vsel %vm2419, %v2529, 0
        %2536 = vmatprep.subr.bf16.mxu0 0
        %2537 = vmatpush1.bf16.msra.mxu0 0
        %2538 = vmatprep.subr.bf16.mxu0 0
        %2539 = vmatpush1.bf16.msra.mxu0 0
        %2540 = vmatprep.subr.bf16.mxu0 0
        %2541 = vmatpush1.bf16.msra.mxu0 0
        %2542 = vmatprep.subr.bf16.mxu0 0
        %2543 = vmatpush1.bf16.msra.mxu0 0
        %2544 = vmatprep.subr.bf16.mxu0 0
        %2545 = vmatpush1.bf16.msra.mxu0 0
        %2546 = vmatprep.subr.bf16.mxu0 0
        %2547 = vmatpush1.bf16.msra.mxu0 0
        %2548 = vmatprep.subr.bf16.mxu0 0
        %2549 = vmatpush1.bf16.msra.mxu0 0
        %2550 = vmatprep.subr.bf16.mxu0 0
        %2551 = vmatpush1.bf16.msra.mxu0 %v2534
        %2552 = vmatprep.subr.bf16.mxu0 0
        %2553 = vmatpush2.bf16.msra.mxu0 0
        %2554 = vmatprep.subr.bf16.mxu0 0
        %2555 = vmatpush2.bf16.msra.mxu0 0
        %2556 = vmatprep.subr.bf16.mxu0 0
        %2557 = vmatpush2.bf16.msra.mxu0 0
        %2558 = vmatprep.subr.bf16.mxu0 0
        %2559 = vmatpush2.bf16.msra.mxu0 0
        %2560 = vmatprep.subr.bf16.mxu0 0
        %2561 = vmatpush2.bf16.msra.mxu0 0
        %2562 = vmatprep.subr.bf16.mxu0 0
        %2563 = vmatpush2.bf16.msra.mxu0 0
        %2564 = vmatprep.subr.bf16.mxu0 0
        %2565 = vmatpush2.bf16.msra.mxu0 0
        %2566 = vmatprep.subr.bf16.mxu0 0
        %2567 = vmatpush2.bf16.msra.mxu0 0
        %2568 = vmatprep.mubr.bf16.mxu0 0
        %2569 = vmatmul.mubr.bf16.gmra.mxu0 %v2531
        %v2570 = vpop.f32.mrf.mxu0
        %v2571 = vadd.f32 0.0, %v2570
        %v2572 = vpop.f32.mrf.mxu0
        %v2573 = vpop.f32.mrf.mxu0
        %v2574 = vpop.f32.mrf.mxu0
        %2575 = vdwg.mxu0
        %2576 = vrot.lane.b32.xlu0 %v2353, 64
        %v2577 = vpop.permute.xlu0 %2576
        %2578 = vrot.lane.b32.xlu0 %v2354, 64
        %v2579 = vpop.permute.xlu0 %2578
        %v2581 = vsel %vm2356, %v2577, 0
        %v2584 = vsel %vm2356, %v2579, 0
        %2586 = vmatprep.subr.bf16.mxu0 0
        %2587 = vmatpush1.bf16.xpose.msra.mxu0 0
        %2588 = vmatprep.subr.bf16.mxu0 0
        %2589 = vmatpush1.bf16.xpose.msra.mxu0 0
        %2590 = vmatprep.subr.bf16.mxu0 0
        %2591 = vmatpush1.bf16.xpose.msra.mxu0 0
        %2592 = vmatprep.subr.bf16.mxu0 0
        %2593 = vmatpush1.bf16.xpose.msra.mxu0 0
        %2594 = vmatprep.subr.bf16.mxu0 0
        %2595 = vmatpush1.bf16.xpose.msra.mxu0 0
        %2596 = vmatprep.subr.bf16.mxu0 0
        %2597 = vmatpush1.bf16.xpose.msra.mxu0 0
        %2598 = vmatprep.subr.bf16.mxu0 0
        %2599 = vmatpush1.bf16.xpose.msra.mxu0 0
        %2600 = vmatprep.subr.bf16.mxu0 0
        %2601 = vmatpush1.bf16.xpose.msra.mxu0 %v2584
        %2602 = vmatprep.subr.bf16.mxu0 0
        %2603 = vmatpush2.bf16.xpose.msra.mxu0 0
        %2604 = vmatprep.subr.bf16.mxu0 0
        %2605 = vmatpush2.bf16.xpose.msra.mxu0 0
        %2606 = vmatprep.subr.bf16.mxu0 0
        %2607 = vmatpush2.bf16.xpose.msra.mxu0 0
        %2608 = vmatprep.subr.bf16.mxu0 0
        %2609 = vmatpush2.bf16.xpose.msra.mxu0 0
        %2610 = vmatprep.subr.bf16.mxu0 0
        %2611 = vmatpush2.bf16.xpose.msra.mxu0 0
        %2612 = vmatprep.subr.bf16.mxu0 0
        %2613 = vmatpush2.bf16.xpose.msra.mxu0 0
        %2614 = vmatprep.subr.bf16.mxu0 0
        %2615 = vmatpush2.bf16.xpose.msra.mxu0 0
        %2616 = vmatprep.subr.bf16.mxu0 0
        %2617 = vmatpush2.bf16.xpose.msra.mxu0 0
        %2618 = vmatprep.mubr.bf16.mxu0 0
        %2619 = vmatmul.mubr.bf16.gmra.mxu0 %v2581
        %v2620 = vpop.f32.mrf.mxu0
        %v2621 = vadd.f32 0.0, %v2620
        %v2622 = vpop.f32.mrf.mxu0
        %v2623 = vpop.f32.mrf.mxu0
        %v2624 = vpop.f32.mrf.mxu0
        %2625 = vdwg.mxu0
        %v2626 = vsel %vm2403, %v2621, -inf
        %2627 = vmax.xlane.f32.xlu0 %v2626
        %v2628 = vpop.xlane.xlu0 %2627
        %v2629 = vsub.f32 %v2621, %v2628
        %v2630 = vmul.f32 %v2629, 1.442695
        %v2631 = vpow.pop %v2630
        %v2632 = vsel %vm2403, %v2631, 0.0
        %2633 = vadd.xlane.f32.xlu0 %v2632
        %v2634 = vpop.xlane.xlu0 %2633
        %v2635 = vrcp.pop %v2634
        %v2636 = vmul.f32 %v2631, %v2635
        %v2637 = vpack.c.bf16 %v2636, %v2636
        %2638 = vrot.lane.b32.xlu0 %v2355, 64
        %v2639 = vpop.permute.xlu0 %2638
        %v2641 = vsel %vm2403, %v2637, 0
        %v2644 = vsel %vm2419, %v2639, 0
        %2646 = vmatprep.subr.bf16.mxu0 0
        %2647 = vmatpush1.bf16.msra.mxu0 0
        %2648 = vmatprep.subr.bf16.mxu0 0
        %2649 = vmatpush1.bf16.msra.mxu0 0
        %2650 = vmatprep.subr.bf16.mxu0 0
        %2651 = vmatpush1.bf16.msra.mxu0 0
        %2652 = vmatprep.subr.bf16.mxu0 0
        %2653 = vmatpush1.bf16.msra.mxu0 0
        %2654 = vmatprep.subr.bf16.mxu0 0
        %2655 = vmatpush1.bf16.msra.mxu0 0
        %2656 = vmatprep.subr.bf16.mxu0 0
        %2657 = vmatpush1.bf16.msra.mxu0 0
        %2658 = vmatprep.subr.bf16.mxu0 0
        %2659 = vmatpush1.bf16.msra.mxu0 0
        %2660 = vmatprep.subr.bf16.mxu0 0
        %2661 = vmatpush1.bf16.msra.mxu0 %v2644
        %2662 = vmatprep.subr.bf16.mxu0 0
        %2663 = vmatpush2.bf16.msra.mxu0 0
        %2664 = vmatprep.subr.bf16.mxu0 0
        %2665 = vmatpush2.bf16.msra.mxu0 0
        %2666 = vmatprep.subr.bf16.mxu0 0
        %2667 = vmatpush2.bf16.msra.mxu0 0
        %2668 = vmatprep.subr.bf16.mxu0 0
        %2669 = vmatpush2.bf16.msra.mxu0 0
        %2670 = vmatprep.subr.bf16.mxu0 0
        %2671 = vmatpush2.bf16.msra.mxu0 0
        %2672 = vmatprep.subr.bf16.mxu0 0
        %2673 = vmatpush2.bf16.msra.mxu0 0
        %2674 = vmatprep.subr.bf16.mxu0 0
        %2675 = vmatpush2.bf16.msra.mxu0 0
        %2676 = vmatprep.subr.bf16.mxu0 0
        %2677 = vmatpush2.bf16.msra.mxu0 0
        %2678 = vmatprep.mubr.bf16.mxu0 0
        %2679 = vmatmul.mubr.bf16.gmra.mxu0 %v2641
        %v2680 = vpop.f32.mrf.mxu0
        %v2681 = vadd.f32 0.0, %v2680
        %v2682 = vpop.f32.mrf.mxu0
        %v2683 = vpop.f32.mrf.mxu0
        %v2684 = vpop.f32.mrf.mxu0
        %2685 = vdwg.mxu0
        %2686 = vrot.lane.b32.xlu0 %v2353, 32
        %v2687 = vpop.permute.xlu0 %2686
        %2688 = vrot.lane.b32.xlu0 %v2354, 32
        %v2689 = vpop.permute.xlu0 %2688
        %v2691 = vsel %vm2356, %v2687, 0
        %v2694 = vsel %vm2356, %v2689, 0
        %2696 = vmatprep.subr.bf16.mxu0 0
        %2697 = vmatpush1.bf16.xpose.msra.mxu0 0
        %2698 = vmatprep.subr.bf16.mxu0 0
        %2699 = vmatpush1.bf16.xpose.msra.mxu0 0
        %2700 = vmatprep.subr.bf16.mxu0 0
        %2701 = vmatpush1.bf16.xpose.msra.mxu0 0
        %2702 = vmatprep.subr.bf16.mxu0 0
        %2703 = vmatpush1.bf16.xpose.msra.mxu0 0
        %2704 = vmatprep.subr.bf16.mxu0 0
        %2705 = vmatpush1.bf16.xpose.msra.mxu0 0
        %2706 = vmatprep.subr.bf16.mxu0 0
        %2707 = vmatpush1.bf16.xpose.msra.mxu0 0
        %2708 = vmatprep.subr.bf16.mxu0 0
        %2709 = vmatpush1.bf16.xpose.msra.mxu0 0
        %2710 = vmatprep.subr.bf16.mxu0 0
        %2711 = vmatpush1.bf16.xpose.msra.mxu0 %v2694
        %2712 = vmatprep.subr.bf16.mxu0 0
        %2713 = vmatpush2.bf16.xpose.msra.mxu0 0
        %2714 = vmatprep.subr.bf16.mxu0 0
        %2715 = vmatpush2.bf16.xpose.msra.mxu0 0
        %2716 = vmatprep.subr.bf16.mxu0 0
        %2717 = vmatpush2.bf16.xpose.msra.mxu0 0
        %2718 = vmatprep.subr.bf16.mxu0 0
        %2719 = vmatpush2.bf16.xpose.msra.mxu0 0
        %2720 = vmatprep.subr.bf16.mxu0 0
        %2721 = vmatpush2.bf16.xpose.msra.mxu0 0
        %2722 = vmatprep.subr.bf16.mxu0 0
        %2723 = vmatpush2.bf16.xpose.msra.mxu0 0
        %2724 = vmatprep.subr.bf16.mxu0 0
        %2725 = vmatpush2.bf16.xpose.msra.mxu0 0
        %2726 = vmatprep.subr.bf16.mxu0 0
        %2727 = vmatpush2.bf16.xpose.msra.mxu0 0
        %2728 = vmatprep.mubr.bf16.mxu0 0
        %2729 = vmatmul.mubr.bf16.gmra.mxu0 %v2691
        %v2730 = vpop.f32.mrf.mxu0
        %v2731 = vadd.f32 0.0, %v2730
        %v2732 = vpop.f32.mrf.mxu0
        %v2733 = vpop.f32.mrf.mxu0
        %v2734 = vpop.f32.mrf.mxu0
        %2735 = vdwg.mxu0
        %v2736 = vsel %vm2403, %v2731, -inf
        %2737 = vmax.xlane.f32.xlu0 %v2736
        %v2738 = vpop.xlane.xlu0 %2737
        %v2739 = vsub.f32 %v2731, %v2738
        %v2740 = vmul.f32 %v2739, 1.442695
        %v2741 = vpow.pop %v2740
        %v2742 = vsel %vm2403, %v2741, 0.0
        %2743 = vadd.xlane.f32.xlu0 %v2742
        %v2744 = vpop.xlane.xlu0 %2743
        %v2745 = vrcp.pop %v2744
        %v2746 = vmul.f32 %v2741, %v2745
        %v2747 = vpack.c.bf16 %v2746, %v2746
        %2748 = vrot.lane.b32.xlu0 %v2355, 32
        %v2749 = vpop.permute.xlu0 %2748
        %v2751 = vsel %vm2403, %v2747, 0
        %v2754 = vsel %vm2419, %v2749, 0
        %2756 = vmatprep.subr.bf16.mxu0 0
        %2757 = vmatpush1.bf16.msra.mxu0 0
        %2758 = vmatprep.subr.bf16.mxu0 0
        %2759 = vmatpush1.bf16.msra.mxu0 0
        %2760 = vmatprep.subr.bf16.mxu0 0
        %2761 = vmatpush1.bf16.msra.mxu0 0
        %2762 = vmatprep.subr.bf16.mxu0 0
        %2763 = vmatpush1.bf16.msra.mxu0 0
        %2764 = vmatprep.subr.bf16.mxu0 0
        %2765 = vmatpush1.bf16.msra.mxu0 0
        %2766 = vmatprep.subr.bf16.mxu0 0
        %2767 = vmatpush1.bf16.msra.mxu0 0
        %2768 = vmatprep.subr.bf16.mxu0 0
        %2769 = vmatpush1.bf16.msra.mxu0 0
        %2770 = vmatprep.subr.bf16.mxu0 0
        %2771 = vmatpush1.bf16.msra.mxu0 %v2754
        %2772 = vmatprep.subr.bf16.mxu0 0
        %2773 = vmatpush2.bf16.msra.mxu0 0
        %2774 = vmatprep.subr.bf16.mxu0 0
        %2775 = vmatpush2.bf16.msra.mxu0 0
        %2776 = vmatprep.subr.bf16.mxu0 0
        %2777 = vmatpush2.bf16.msra.mxu0 0
        %2778 = vmatprep.subr.bf16.mxu0 0
        %2779 = vmatpush2.bf16.msra.mxu0 0
        %2780 = vmatprep.subr.bf16.mxu0 0
        %2781 = vmatpush2.bf16.msra.mxu0 0
        %2782 = vmatprep.subr.bf16.mxu0 0
        %2783 = vmatpush2.bf16.msra.mxu0 0
        %2784 = vmatprep.subr.bf16.mxu0 0
        %2785 = vmatpush2.bf16.msra.mxu0 0
        %2786 = vmatprep.subr.bf16.mxu0 0
        %2787 = vmatpush2.bf16.msra.mxu0 0
        %2788 = vmatprep.mubr.bf16.mxu0 0
        %2789 = vmatmul.mubr.bf16.gmra.mxu0 %v2751
        %v2790 = vpop.f32.mrf.mxu0
        %v2791 = vadd.f32 0.0, %v2790
        %v2792 = vpop.f32.mrf.mxu0
        %v2793 = vpop.f32.mrf.mxu0
        %v2794 = vpop.f32.mrf.mxu0
        %2795 = vdwg.mxu0
        %2797 = vrot.lane.b32.xlu0 %v2571, 32
        %v2798 = vpop.permute.xlu0 %2797
        %2801 = vrot.lane.b32.xlu0 %v2681, 64
        %v2802 = vpop.permute.xlu0 %2801
        %2805 = vrot.lane.b32.xlu0 %v2791, 96
        %v2806 = vpop.permute.xlu0 %2805
        %v2808 = vsel %vm2356, %v2458, %v2798
        %vm2809 = vcmask 523264
        %v2810 = vsel %vm2809, %v2808, %v2802
        %vm2811 = vcmask 785408
        %v2812 = vsel %vm2811, %v2810, %v2806
        %v2813 = vpack.c.bf16 %v2812, %v2812
        %v2814 = vld [vmem:[#allocation14] sm:$0xf]
        %v2815 = vld [vmem:[#allocation14 + $0x4] sm:$0xf]
        %v2816 = vld [vmem:[#allocation14 + $0x8] sm:$0xf]
        %v2817 = vld [vmem:[#allocation14 + $0xc] sm:$0xf]
        %v2818 = vld [vmem:[#allocation14 + $0x10] sm:$0xf]
        %v2819 = vld [vmem:[#allocation14 + $0x14] sm:$0xf]
        %v2820 = vld [vmem:[#allocation14 + $0x18] sm:$0xf]
        %v2821 = vld [vmem:[#allocation14 + $0x1c] sm:$0xf]
        %v2822 = vld [vmem:[#allocation14 + $0x20] sm:$0xf]
        %v2823 = vld [vmem:[#allocation14 + $0x24] sm:$0xf]
        %v2824 = vld [vmem:[#allocation14 + $0x28] sm:$0xf]
        %v2825 = vld [vmem:[#allocation14 + $0x2c] sm:$0xf]
        %v2826 = vld [vmem:[#allocation14 + $0x30] sm:$0xf]
        %v2827 = vld [vmem:[#allocation14 + $0x34] sm:$0xf]
        %v2828 = vld [vmem:[#allocation14 + $0x38] sm:$0xf]
        %v2829 = vld [vmem:[#allocation14 + $0x3c] sm:$0xf]
        %v2830 = vld [vmem:[#allocation16] sm:$0x1]
        %v2832 = vlaneseq
        %v2833 = vshrl.u32 %v2832, 7
        %v2834 = vsub.s32 0, %v2833
        %v2835 = vrot.slane %v2830, %v2834
        %v2853 = vunpack.c.l.b16 %v2814
        %v2854 = vunpack.c.l.b16 %v2815
        %v2855 = vunpack.c.l.b16 %v2816
        %v2856 = vunpack.c.l.b16 %v2817
        %v2857 = vunpack.c.l.b16 %v2818
        %v2858 = vunpack.c.l.b16 %v2819
        %v2859 = vunpack.c.l.b16 %v2820
        %v2860 = vunpack.c.l.b16 %v2821
        %v2861 = vunpack.c.l.b16 %v2822
        %v2862 = vunpack.c.l.b16 %v2823
        %v2863 = vunpack.c.l.b16 %v2824
        %v2864 = vunpack.c.l.b16 %v2825
        %v2865 = vunpack.c.l.b16 %v2826
        %v2866 = vunpack.c.l.b16 %v2827
        %v2867 = vunpack.c.l.b16 %v2828
        %v2868 = vunpack.c.l.b16 %v2829
        %v2869 = vpack.c.b16 %v2854, %v2853
        %v2870 = vpack.c.b16 %v2856, %v2855
        %v2871 = vpack.c.b16 %v2858, %v2857
        %v2872 = vpack.c.b16 %v2860, %v2859
        %v2873 = vpack.c.b16 %v2862, %v2861
        %v2874 = vpack.c.b16 %v2864, %v2863
        %v2875 = vpack.c.b16 %v2866, %v2865
        %v2876 = vpack.c.b16 %v2868, %v2867
        %2885 = vmatprep.subr.bf16.mxu0 0
        %2886 = vmatpush1.bf16.msra.mxu0 %v2876
        %2887 = vmatprep.subr.bf16.mxu0 0
        %2888 = vmatpush1.bf16.msra.mxu0 %v2875
        %2889 = vmatprep.subr.bf16.mxu0 0
        %2890 = vmatpush1.bf16.msra.mxu0 %v2874
        %2891 = vmatprep.subr.bf16.mxu0 0
        %2892 = vmatpush1.bf16.msra.mxu0 %v2873
        %2893 = vmatprep.subr.bf16.mxu0 0
        %2894 = vmatpush1.bf16.msra.mxu0 %v2872
        %2895 = vmatprep.subr.bf16.mxu0 0
        %2896 = vmatpush1.bf16.msra.mxu0 %v2871
        %2897 = vmatprep.subr.bf16.mxu0 0
        %2898 = vmatpush1.bf16.msra.mxu0 %v2870
        %2899 = vmatprep.subr.bf16.mxu0 0
        %2900 = vmatpush1.bf16.msra.mxu0 %v2869
        %2901 = vmatprep.subr.bf16.mxu0 0
        %2902 = vmatpush2.bf16.msra.mxu0 0
        %2903 = vmatprep.subr.bf16.mxu0 0
        %2904 = vmatpush2.bf16.msra.mxu0 0
        %2905 = vmatprep.subr.bf16.mxu0 0
        %2906 = vmatpush2.bf16.msra.mxu0 0
        %2907 = vmatprep.subr.bf16.mxu0 0
        %2908 = vmatpush2.bf16.msra.mxu0 0
        %2909 = vmatprep.subr.bf16.mxu0 0
        %2910 = vmatpush2.bf16.msra.mxu0 0
        %2911 = vmatprep.subr.bf16.mxu0 0
        %2912 = vmatpush2.bf16.msra.mxu0 0
        %2913 = vmatprep.subr.bf16.mxu0 0
        %2914 = vmatpush2.bf16.msra.mxu0 0
        %2915 = vmatprep.subr.bf16.mxu0 0
        %2916 = vmatpush2.bf16.msra.mxu0 0
        %2917 = vmatprep.mubr.bf16.mxu0 0
        %2918 = vmatmul.mubr.bf16.gmra.mxu0 %v2813
        %v2919 = vpop.f32.mrf.mxu0
        %v2920 = vadd.f32 %v2835, %v2919
        %v2921 = vpop.f32.mrf.mxu0
        %v2922 = vpop.f32.mrf.mxu0
        %v2923 = vpop.f32.mrf.mxu0
        %2924 = vdwg.mxu0
        %v2925 = vlaneseq
        %v2926 = vshrl.u32 %v2925, 7
        %v2927 = vsub.s32 0, %v2926
        %v2928 = vrot.slane %v1881, %v2927
        %v2929 = vmul.f32 %v2928, %v2920
        %v2930 = vadd.f32 %v1766, %v2929
        %v2931 = vlaneseq
        %v2932 = vshrl.u32 %v2931, 7
        %v2933 = vsub.s32 0, %v2932
        %v2934 = vrot.slane %v1986, %v2933
        %v2935 = vadd.f32 %v2930, %v2934
        %v2936 = vld [vmem:[#allocation50] sm:$0xf]
        %v2937 = vld [vmem:[#allocation50 + $0x4] sm:$0xf]
        %v2938 = vld [vmem:[#allocation50 + $0x8] sm:$0xf]
        %v2939 = vld [vmem:[#allocation50 + $0xc] sm:$0xf]
        %v2940 = vld [vmem:[#allocation50 + $0x10] sm:$0xf]
        %v2941 = vld [vmem:[#allocation50 + $0x14] sm:$0xf]
        %v2942 = vld [vmem:[#allocation50 + $0x18] sm:$0xf]
        %v2943 = vld [vmem:[#allocation50 + $0x1c] sm:$0xf]
        %v2944 = vld [vmem:[#allocation50 + $0x20] sm:$0xf]
        %v2945 = vld [vmem:[#allocation50 + $0x24] sm:$0xf]
        %v2946 = vld [vmem:[#allocation50 + $0x28] sm:$0xf]
        %v2947 = vld [vmem:[#allocation50 + $0x2c] sm:$0xf]
        %v2948 = vld [vmem:[#allocation50 + $0x30] sm:$0xf]
        %v2949 = vld [vmem:[#allocation50 + $0x34] sm:$0xf]
        %v2950 = vld [vmem:[#allocation50 + $0x38] sm:$0xf]
        %v2951 = vld [vmem:[#allocation50 + $0x3c] sm:$0xf]
        %v2952 = vld [vmem:[#allocation52] sm:$0x1]
        %v2969 = vunpack.c.l.b16 %v2936
        %v2970 = vunpack.c.l.b16 %v2937
        %v2971 = vunpack.c.l.b16 %v2938
        %v2972 = vunpack.c.l.b16 %v2939
        %v2973 = vunpack.c.l.b16 %v2940
        %v2974 = vunpack.c.l.b16 %v2941
        %v2975 = vunpack.c.l.b16 %v2942
        %v2976 = vunpack.c.l.b16 %v2943
        %v2977 = vunpack.c.l.b16 %v2944
        %v2978 = vunpack.c.l.b16 %v2945
        %v2979 = vunpack.c.l.b16 %v2946
        %v2980 = vunpack.c.l.b16 %v2947
        %v2981 = vunpack.c.l.b16 %v2948
        %v2982 = vunpack.c.l.b16 %v2949
        %v2983 = vunpack.c.l.b16 %v2950
        %v2984 = vunpack.c.l.b16 %v2951
        %v2985 = vpack.c.b16 %v2970, %v2969
        %v2986 = vpack.c.b16 %v2972, %v2971
        %v2987 = vpack.c.b16 %v2974, %v2973
        %v2988 = vpack.c.b16 %v2976, %v2975
        %v2989 = vpack.c.b16 %v2978, %v2977
        %v2990 = vpack.c.b16 %v2980, %v2979
        %v2991 = vpack.c.b16 %v2982, %v2981
        %v2992 = vpack.c.b16 %v2984, %v2983
        %3001 = vmatprep.subr.bf16.mxu0 0
        %3002 = vmatpush1.bf16.msra.mxu0 %v2992
        %3003 = vmatprep.subr.bf16.mxu0 0
        %3004 = vmatpush1.bf16.msra.mxu0 %v2991
        %3005 = vmatprep.subr.bf16.mxu0 0
        %3006 = vmatpush1.bf16.msra.mxu0 %v2990
        %3007 = vmatprep.subr.bf16.mxu0 0
        %3008 = vmatpush1.bf16.msra.mxu0 %v2989
        %3009 = vmatprep.subr.bf16.mxu0 0
        %3010 = vmatpush1.bf16.msra.mxu0 %v2988
        %3011 = vmatprep.subr.bf16.mxu0 0
        %3012 = vmatpush1.bf16.msra.mxu0 %v2987
        %3013 = vmatprep.subr.bf16.mxu0 0
        %3014 = vmatpush1.bf16.msra.mxu0 %v2986
        %3015 = vmatprep.subr.bf16.mxu0 0
        %3016 = vmatpush1.bf16.msra.mxu0 %v2985
        %3017 = vmatprep.subr.bf16.mxu0 0
        %3018 = vmatpush2.bf16.msra.mxu0 0
        %3019 = vmatprep.subr.bf16.mxu0 0
        %3020 = vmatpush2.bf16.msra.mxu0 0
        %3021 = vmatprep.subr.bf16.mxu0 0
        %3022 = vmatpush2.bf16.msra.mxu0 0
        %3023 = vmatprep.subr.bf16.mxu0 0
        %3024 = vmatpush2.bf16.msra.mxu0 0
        %3025 = vmatprep.subr.bf16.mxu0 0
        %3026 = vmatpush2.bf16.msra.mxu0 0
        %3027 = vmatprep.subr.bf16.mxu0 0
        %3028 = vmatpush2.bf16.msra.mxu0 0
        %3029 = vmatprep.subr.bf16.mxu0 0
        %3030 = vmatpush2.bf16.msra.mxu0 0
        %3031 = vmatprep.subr.bf16.mxu0 0
        %3032 = vmatpush2.bf16.msra.mxu0 0
        %3033 = vmatprep.mubr.bf16.mxu0 0
        %3034 = vmatmul.mubr.bf16.gmra.mxu0 %v1780
        %v3035 = vpop.f32.mrf.mxu0
        %v3036 = vadd.f32 %v2952, %v3035
        %v3037 = vpop.f32.mrf.mxu0
        %v3038 = vpop.f32.mrf.mxu0
        %v3039 = vpop.f32.mrf.mxu0
        %3040 = vdwg.mxu0
        %v3041 = vld [vmem:[#allocation53] sm:$0xf]
        %v3042 = vld [vmem:[#allocation53 + $0x4] sm:$0xf]
        %v3043 = vld [vmem:[#allocation53 + $0x8] sm:$0xf]
        %v3044 = vld [vmem:[#allocation53 + $0xc] sm:$0xf]
        %v3045 = vld [vmem:[#allocation53 + $0x10] sm:$0xf]
        %v3046 = vld [vmem:[#allocation53 + $0x14] sm:$0xf]
        %v3047 = vld [vmem:[#allocation53 + $0x18] sm:$0xf]
        %v3048 = vld [vmem:[#allocation53 + $0x1c] sm:$0xf]
        %v3049 = vld [vmem:[#allocation53 + $0x20] sm:$0xf]
        %v3050 = vld [vmem:[#allocation53 + $0x24] sm:$0xf]
        %v3051 = vld [vmem:[#allocation53 + $0x28] sm:$0xf]
        %v3052 = vld [vmem:[#allocation53 + $0x2c] sm:$0xf]
        %v3053 = vld [vmem:[#allocation53 + $0x30] sm:$0xf]
        %v3054 = vld [vmem:[#allocation53 + $0x34] sm:$0xf]
        %v3055 = vld [vmem:[#allocation53 + $0x38] sm:$0xf]
        %v3056 = vld [vmem:[#allocation53 + $0x3c] sm:$0xf]
        %v3057 = vld [vmem:[#allocation55] sm:$0x1]
        %v3074 = vunpack.c.l.b16 %v3041
        %v3075 = vunpack.c.l.b16 %v3042
        %v3076 = vunpack.c.l.b16 %v3043
        %v3077 = vunpack.c.l.b16 %v3044
        %v3078 = vunpack.c.l.b16 %v3045
        %v3079 = vunpack.c.l.b16 %v3046
        %v3080 = vunpack.c.l.b16 %v3047
        %v3081 = vunpack.c.l.b16 %v3048
        %v3082 = vunpack.c.l.b16 %v3049
        %v3083 = vunpack.c.l.b16 %v3050
        %v3084 = vunpack.c.l.b16 %v3051
        %v3085 = vunpack.c.l.b16 %v3052
        %v3086 = vunpack.c.l.b16 %v3053
        %v3087 = vunpack.c.l.b16 %v3054
        %v3088 = vunpack.c.l.b16 %v3055
        %v3089 = vunpack.c.l.b16 %v3056
        %v3090 = vpack.c.b16 %v3075, %v3074
        %v3091 = vpack.c.b16 %v3077, %v3076
        %v3092 = vpack.c.b16 %v3079, %v3078
        %v3093 = vpack.c.b16 %v3081, %v3080
        %v3094 = vpack.c.b16 %v3083, %v3082
        %v3095 = vpack.c.b16 %v3085, %v3084
        %v3096 = vpack.c.b16 %v3087, %v3086
        %v3097 = vpack.c.b16 %v3089, %v3088
        %3106 = vmatprep.subr.bf16.mxu0 0
        %3107 = vmatpush1.bf16.msra.mxu0 %v3097
        %3108 = vmatprep.subr.bf16.mxu0 0
        %3109 = vmatpush1.bf16.msra.mxu0 %v3096
        %3110 = vmatprep.subr.bf16.mxu0 0
        %3111 = vmatpush1.bf16.msra.mxu0 %v3095
        %3112 = vmatprep.subr.bf16.mxu0 0
        %3113 = vmatpush1.bf16.msra.mxu0 %v3094
        %3114 = vmatprep.subr.bf16.mxu0 0
        %3115 = vmatpush1.bf16.msra.mxu0 %v3093
        %3116 = vmatprep.subr.bf16.mxu0 0
        %3117 = vmatpush1.bf16.msra.mxu0 %v3092
        %3118 = vmatprep.subr.bf16.mxu0 0
        %3119 = vmatpush1.bf16.msra.mxu0 %v3091
        %3120 = vmatprep.subr.bf16.mxu0 0
        %3121 = vmatpush1.bf16.msra.mxu0 %v3090
        %3122 = vmatprep.subr.bf16.mxu0 0
        %3123 = vmatpush2.bf16.msra.mxu0 0
        %3124 = vmatprep.subr.bf16.mxu0 0
        %3125 = vmatpush2.bf16.msra.mxu0 0
        %3126 = vmatprep.subr.bf16.mxu0 0
        %3127 = vmatpush2.bf16.msra.mxu0 0
        %3128 = vmatprep.subr.bf16.mxu0 0
        %3129 = vmatpush2.bf16.msra.mxu0 0
        %3130 = vmatprep.subr.bf16.mxu0 0
        %3131 = vmatpush2.bf16.msra.mxu0 0
        %3132 = vmatprep.subr.bf16.mxu0 0
        %3133 = vmatpush2.bf16.msra.mxu0 0
        %3134 = vmatprep.subr.bf16.mxu0 0
        %3135 = vmatpush2.bf16.msra.mxu0 0
        %3136 = vmatprep.subr.bf16.mxu0 0
        %3137 = vmatpush2.bf16.msra.mxu0 0
        %3138 = vmatprep.mubr.bf16.mxu0 0
        %3139 = vmatmul.mubr.bf16.gmra.mxu0 %v1780
        %v3140 = vpop.f32.mrf.mxu0
        %v3141 = vadd.f32 %v3057, %v3140
        %v3142 = vpop.f32.mrf.mxu0
        %v3143 = vpop.f32.mrf.mxu0
        %v3144 = vpop.f32.mrf.mxu0
        %3145 = vdwg.mxu0
        %v3146 = vld [vmem:[#allocation38] sm:$0x1]
        %v3147 = vld [vmem:[#allocation40] sm:$0x1]
        %3148 = vadd.xlane.f32.xlu0 %v2935
        %v3149 = vpop.xlane.xlu0 %3148
        %v3150 = vmul.f32 %v3149, %v1995
        %v3151 = vsub.f32 %v2935, %v3150
        %v3152 = vmul.f32 %v3151, %v3151
        %3153 = vadd.xlane.f32.xlu0 %v3152
        %v3154 = vpop.xlane.xlu0 %3153
        %v3155 = vmul.f32 %v3154, %v1995
        %v3156 = vadd.f32 %v3155, 1e-05
        %v3157 = vrsqrt.pop %v3156
        %v3158 = vmul.f32 %v3151, %v3157
        %v3160 = vlaneseq
        %v3161 = vshrl.u32 %v3160, 7
        %v3162 = vsub.s32 0, %v3161
        %v3163 = vrot.slane %v3146, %v3162
        %v3165 = vmul.f32 %v3158, %v3163
        %v3167 = vlaneseq
        %v3168 = vshrl.u32 %v3167, 7
        %v3169 = vsub.s32 0, %v3168
        %v3170 = vrot.slane %v3147, %v3169
        %v3172 = vadd.f32 %v3165, %v3170
        %v3173 = vpack.c.bf16 %v3172, %v3172
        %v3174 = vld [vmem:[#allocation17] sm:$0xf]
        %v3175 = vld [vmem:[#allocation17 + $0x4] sm:$0xf]
        %v3176 = vld [vmem:[#allocation17 + $0x8] sm:$0xf]
        %v3177 = vld [vmem:[#allocation17 + $0xc] sm:$0xf]
        %v3178 = vld [vmem:[#allocation17 + $0x10] sm:$0xf]
        %v3179 = vld [vmem:[#allocation17 + $0x14] sm:$0xf]
        %v3180 = vld [vmem:[#allocation17 + $0x18] sm:$0xf]
        %v3181 = vld [vmem:[#allocation17 + $0x1c] sm:$0xf]
        %v3182 = vld [vmem:[#allocation17 + $0x20] sm:$0xf]
        %v3183 = vld [vmem:[#allocation17 + $0x24] sm:$0xf]
        %v3184 = vld [vmem:[#allocation17 + $0x28] sm:$0xf]
        %v3185 = vld [vmem:[#allocation17 + $0x2c] sm:$0xf]
        %v3186 = vld [vmem:[#allocation17 + $0x30] sm:$0xf]
        %v3187 = vld [vmem:[#allocation17 + $0x34] sm:$0xf]
        %v3188 = vld [vmem:[#allocation17 + $0x38] sm:$0xf]
        %v3189 = vld [vmem:[#allocation17 + $0x3c] sm:$0xf]
        %v3190 = vld [vmem:[#allocation19] sm:$0x1]
        %v3192 = vlaneseq
        %v3193 = vshrl.u32 %v3192, 7
        %v3194 = vsub.s32 0, %v3193
        %v3195 = vrot.slane %v3190, %v3194
        %v3213 = vunpack.c.l.b16 %v3174
        %v3214 = vunpack.c.l.b16 %v3175
        %v3215 = vunpack.c.l.b16 %v3176
        %v3216 = vunpack.c.l.b16 %v3177
        %v3217 = vunpack.c.l.b16 %v3178
        %v3218 = vunpack.c.l.b16 %v3179
        %v3219 = vunpack.c.l.b16 %v3180
        %v3220 = vunpack.c.l.b16 %v3181
        %v3221 = vunpack.c.l.b16 %v3182
        %v3222 = vunpack.c.l.b16 %v3183
        %v3223 = vunpack.c.l.b16 %v3184
        %v3224 = vunpack.c.l.b16 %v3185
        %v3225 = vunpack.c.l.b16 %v3186
        %v3226 = vunpack.c.l.b16 %v3187
        %v3227 = vunpack.c.l.b16 %v3188
        %v3228 = vunpack.c.l.b16 %v3189
        %v3229 = vpack.c.b16 %v3214, %v3213
        %v3230 = vpack.c.b16 %v3216, %v3215
        %v3231 = vpack.c.b16 %v3218, %v3217
        %v3232 = vpack.c.b16 %v3220, %v3219
        %v3233 = vpack.c.b16 %v3222, %v3221
        %v3234 = vpack.c.b16 %v3224, %v3223
        %v3235 = vpack.c.b16 %v3226, %v3225
        %v3236 = vpack.c.b16 %v3228, %v3227
        %3245 = vmatprep.subr.bf16.mxu0 0
        %3246 = vmatpush1.bf16.msra.mxu0 %v3236
        %3247 = vmatprep.subr.bf16.mxu0 0
        %3248 = vmatpush1.bf16.msra.mxu0 %v3235
        %3249 = vmatprep.subr.bf16.mxu0 0
        %3250 = vmatpush1.bf16.msra.mxu0 %v3234
        %3251 = vmatprep.subr.bf16.mxu0 0
        %3252 = vmatpush1.bf16.msra.mxu0 %v3233
        %3253 = vmatprep.subr.bf16.mxu0 0
        %3254 = vmatpush1.bf16.msra.mxu0 %v3232
        %3255 = vmatprep.subr.bf16.mxu0 0
        %3256 = vmatpush1.bf16.msra.mxu0 %v3231
        %3257 = vmatprep.subr.bf16.mxu0 0
        %3258 = vmatpush1.bf16.msra.mxu0 %v3230
        %3259 = vmatprep.subr.bf16.mxu0 0
        %3260 = vmatpush1.bf16.msra.mxu0 %v3229
        %3261 = vmatprep.subr.bf16.mxu0 0
        %3262 = vmatpush2.bf16.msra.mxu0 0
        %3263 = vmatprep.subr.bf16.mxu0 0
        %3264 = vmatpush2.bf16.msra.mxu0 0
        %3265 = vmatprep.subr.bf16.mxu0 0
        %3266 = vmatpush2.bf16.msra.mxu0 0
        %3267 = vmatprep.subr.bf16.mxu0 0
        %3268 = vmatpush2.bf16.msra.mxu0 0
        %3269 = vmatprep.subr.bf16.mxu0 0
        %3270 = vmatpush2.bf16.msra.mxu0 0
        %3271 = vmatprep.subr.bf16.mxu0 0
        %3272 = vmatpush2.bf16.msra.mxu0 0
        %3273 = vmatprep.subr.bf16.mxu0 0
        %3274 = vmatpush2.bf16.msra.mxu0 0
        %3275 = vmatprep.subr.bf16.mxu0 0
        %3276 = vmatpush2.bf16.msra.mxu0 0
        %3277 = vmatprep.mubr.bf16.mxu0 0
        %3278 = vmatmul.mubr.bf16.gmra.mxu0 %v3173
        %v3279 = vpop.f32.mrf.mxu0
        %v3280 = vadd.f32 %v3195, %v3279
        %v3281 = vpop.f32.mrf.mxu0
        %v3282 = vpop.f32.mrf.mxu0
        %v3283 = vpop.f32.mrf.mxu0
        %3284 = vdwg.mxu0
        %v3285 = vld [vmem:[#allocation20] sm:$0xf]
        %v3286 = vld [vmem:[#allocation20 + $0x4] sm:$0xf]
        %v3287 = vld [vmem:[#allocation20 + $0x8] sm:$0xf]
        %v3288 = vld [vmem:[#allocation20 + $0xc] sm:$0xf]
        %v3289 = vld [vmem:[#allocation20 + $0x10] sm:$0xf]
        %v3290 = vld [vmem:[#allocation20 + $0x14] sm:$0xf]
        %v3291 = vld [vmem:[#allocation20 + $0x18] sm:$0xf]
        %v3292 = vld [vmem:[#allocation20 + $0x1c] sm:$0xf]
        %v3293 = vld [vmem:[#allocation20 + $0x20] sm:$0xf]
        %v3294 = vld [vmem:[#allocation20 + $0x24] sm:$0xf]
        %v3295 = vld [vmem:[#allocation20 + $0x28] sm:$0xf]
        %v3296 = vld [vmem:[#allocation20 + $0x2c] sm:$0xf]
        %v3297 = vld [vmem:[#allocation20 + $0x30] sm:$0xf]
        %v3298 = vld [vmem:[#allocation20 + $0x34] sm:$0xf]
        %v3299 = vld [vmem:[#allocation20 + $0x38] sm:$0xf]
        %v3300 = vld [vmem:[#allocation20 + $0x3c] sm:$0xf]
        %v3301 = vld [vmem:[#allocation22] sm:$0x1]
        %v3303 = vlaneseq
        %v3304 = vshrl.u32 %v3303, 7
        %v3305 = vsub.s32 0, %v3304
        %v3306 = vrot.slane %v3301, %v3305
        %v3310 = vunpack.c.l.b16 %v1767
        %v3311 = vunpack.c.l.b16 %v1768
        %v3312 = vpack.c.b16 %v3311, %v3310
        %v3330 = vunpack.c.l.b16 %v3285
        %v3331 = vunpack.c.l.b16 %v3286
        %v3332 = vunpack.c.l.b16 %v3287
        %v3333 = vunpack.c.l.b16 %v3288
        %v3334 = vunpack.c.l.b16 %v3289
        %v3335 = vunpack.c.l.b16 %v3290
        %v3336 = vunpack.c.l.b16 %v3291
        %v3337 = vunpack.c.l.b16 %v3292
        %v3338 = vunpack.c.l.b16 %v3293
        %v3339 = vunpack.c.l.b16 %v3294
        %v3340 = vunpack.c.l.b16 %v3295
        %v3341 = vunpack.c.l.b16 %v3296
        %v3342 = vunpack.c.l.b16 %v3297
        %v3343 = vunpack.c.l.b16 %v3298
        %v3344 = vunpack.c.l.b16 %v3299
        %v3345 = vunpack.c.l.b16 %v3300
        %v3346 = vpack.c.b16 %v3331, %v3330
        %v3347 = vpack.c.b16 %v3333, %v3332
        %v3348 = vpack.c.b16 %v3335, %v3334
        %v3349 = vpack.c.b16 %v3337, %v3336
        %v3350 = vpack.c.b16 %v3339, %v3338
        %v3351 = vpack.c.b16 %v3341, %v3340
        %v3352 = vpack.c.b16 %v3343, %v3342
        %v3353 = vpack.c.b16 %v3345, %v3344
        %3362 = vmatprep.subr.bf16.mxu0 0
        %3363 = vmatpush1.bf16.msra.mxu0 %v3353
        %3364 = vmatprep.subr.bf16.mxu0 0
        %3365 = vmatpush1.bf16.msra.mxu0 %v3352
        %3366 = vmatprep.subr.bf16.mxu0 0
        %3367 = vmatpush1.bf16.msra.mxu0 %v3351
        %3368 = vmatprep.subr.bf16.mxu0 0
        %3369 = vmatpush1.bf16.msra.mxu0 %v3350
        %3370 = vmatprep.subr.bf16.mxu0 0
        %3371 = vmatpush1.bf16.msra.mxu0 %v3349
        %3372 = vmatprep.subr.bf16.mxu0 0
        %3373 = vmatpush1.bf16.msra.mxu0 %v3348
        %3374 = vmatprep.subr.bf16.mxu0 0
        %3375 = vmatpush1.bf16.msra.mxu0 %v3347
        %3376 = vmatprep.subr.bf16.mxu0 0
        %3377 = vmatpush1.bf16.msra.mxu0 %v3346
        %3378 = vmatprep.subr.bf16.mxu0 0
        %3379 = vmatpush2.bf16.msra.mxu0 0
        %3380 = vmatprep.subr.bf16.mxu0 0
        %3381 = vmatpush2.bf16.msra.mxu0 0
        %3382 = vmatprep.subr.bf16.mxu0 0
        %3383 = vmatpush2.bf16.msra.mxu0 0
        %3384 = vmatprep.subr.bf16.mxu0 0
        %3385 = vmatpush2.bf16.msra.mxu0 0
        %3386 = vmatprep.subr.bf16.mxu0 0
        %3387 = vmatpush2.bf16.msra.mxu0 0
        %3388 = vmatprep.subr.bf16.mxu0 0
        %3389 = vmatpush2.bf16.msra.mxu0 0
        %3390 = vmatprep.subr.bf16.mxu0 0
        %3391 = vmatpush2.bf16.msra.mxu0 0
        %3392 = vmatprep.subr.bf16.mxu0 0
        %3393 = vmatpush2.bf16.msra.mxu0 0
        %3394 = vmatprep.mubr.bf16.mxu0 0
        %3395 = vmatmul.mubr.bf16.gmra.mxu0 %v3312
        %v3396 = vpop.f32.mrf.mxu0
        %v3397 = vadd.f32 %v3306, %v3396
        %v3398 = vpop.f32.mrf.mxu0
        %v3399 = vpop.f32.mrf.mxu0
        %v3400 = vadd.f32 %v3306, %v3399
        %v3401 = vpop.f32.mrf.mxu0
        %3402 = vdwg.mxu0
        %v3403 = vld [vmem:[#allocation23] sm:$0xf]
        %v3404 = vld [vmem:[#allocation23 + $0x4] sm:$0xf]
        %v3405 = vld [vmem:[#allocation23 + $0x8] sm:$0xf]
        %v3406 = vld [vmem:[#allocation23 + $0xc] sm:$0xf]
        %v3407 = vld [vmem:[#allocation23 + $0x10] sm:$0xf]
        %v3408 = vld [vmem:[#allocation23 + $0x14] sm:$0xf]
        %v3409 = vld [vmem:[#allocation23 + $0x18] sm:$0xf]
        %v3410 = vld [vmem:[#allocation23 + $0x1c] sm:$0xf]
        %v3411 = vld [vmem:[#allocation23 + $0x20] sm:$0xf]
        %v3412 = vld [vmem:[#allocation23 + $0x24] sm:$0xf]
        %v3413 = vld [vmem:[#allocation23 + $0x28] sm:$0xf]
        %v3414 = vld [vmem:[#allocation23 + $0x2c] sm:$0xf]
        %v3415 = vld [vmem:[#allocation23 + $0x30] sm:$0xf]
        %v3416 = vld [vmem:[#allocation23 + $0x34] sm:$0xf]
        %v3417 = vld [vmem:[#allocation23 + $0x38] sm:$0xf]
        %v3418 = vld [vmem:[#allocation23 + $0x3c] sm:$0xf]
        %v3419 = vld [vmem:[#allocation25] sm:$0x1]
        %v3421 = vlaneseq
        %v3422 = vshrl.u32 %v3421, 7
        %v3423 = vsub.s32 0, %v3422
        %v3424 = vrot.slane %v3419, %v3423
        %v3442 = vunpack.c.l.b16 %v3403
        %v3443 = vunpack.c.l.b16 %v3404
        %v3444 = vunpack.c.l.b16 %v3405
        %v3445 = vunpack.c.l.b16 %v3406
        %v3446 = vunpack.c.l.b16 %v3407
        %v3447 = vunpack.c.l.b16 %v3408
        %v3448 = vunpack.c.l.b16 %v3409
        %v3449 = vunpack.c.l.b16 %v3410
        %v3450 = vunpack.c.l.b16 %v3411
        %v3451 = vunpack.c.l.b16 %v3412
        %v3452 = vunpack.c.l.b16 %v3413
        %v3453 = vunpack.c.l.b16 %v3414
        %v3454 = vunpack.c.l.b16 %v3415
        %v3455 = vunpack.c.l.b16 %v3416
        %v3456 = vunpack.c.l.b16 %v3417
        %v3457 = vunpack.c.l.b16 %v3418
        %v3458 = vpack.c.b16 %v3443, %v3442
        %v3459 = vpack.c.b16 %v3445, %v3444
        %v3460 = vpack.c.b16 %v3447, %v3446
        %v3461 = vpack.c.b16 %v3449, %v3448
        %v3462 = vpack.c.b16 %v3451, %v3450
        %v3463 = vpack.c.b16 %v3453, %v3452
        %v3464 = vpack.c.b16 %v3455, %v3454
        %v3465 = vpack.c.b16 %v3457, %v3456
        %3474 = vmatprep.subr.bf16.mxu0 0
        %3475 = vmatpush1.bf16.msra.mxu0 %v3465
        %3476 = vmatprep.subr.bf16.mxu0 0
        %3477 = vmatpush1.bf16.msra.mxu0 %v3464
        %3478 = vmatprep.subr.bf16.mxu0 0
        %3479 = vmatpush1.bf16.msra.mxu0 %v3463
        %3480 = vmatprep.subr.bf16.mxu0 0
        %3481 = vmatpush1.bf16.msra.mxu0 %v3462
        %3482 = vmatprep.subr.bf16.mxu0 0
        %3483 = vmatpush1.bf16.msra.mxu0 %v3461
        %3484 = vmatprep.subr.bf16.mxu0 0
        %3485 = vmatpush1.bf16.msra.mxu0 %v3460
        %3486 = vmatprep.subr.bf16.mxu0 0
        %3487 = vmatpush1.bf16.msra.mxu0 %v3459
        %3488 = vmatprep.subr.bf16.mxu0 0
        %3489 = vmatpush1.bf16.msra.mxu0 %v3458
        %3490 = vmatprep.subr.bf16.mxu0 0
        %3491 = vmatpush2.bf16.msra.mxu0 0
        %3492 = vmatprep.subr.bf16.mxu0 0
        %3493 = vmatpush2.bf16.msra.mxu0 0
        %3494 = vmatprep.subr.bf16.mxu0 0
        %3495 = vmatpush2.bf16.msra.mxu0 0
        %3496 = vmatprep.subr.bf16.mxu0 0
        %3497 = vmatpush2.bf16.msra.mxu0 0
        %3498 = vmatprep.subr.bf16.mxu0 0
        %3499 = vmatpush2.bf16.msra.mxu0 0
        %3500 = vmatprep.subr.bf16.mxu0 0
        %3501 = vmatpush2.bf16.msra.mxu0 0
        %3502 = vmatprep.subr.bf16.mxu0 0
        %3503 = vmatpush2.bf16.msra.mxu0 0
        %3504 = vmatprep.subr.bf16.mxu0 0
        %3505 = vmatpush2.bf16.msra.mxu0 0
        %3506 = vmatprep.mubr.bf16.mxu0 0
        %3507 = vmatmul.mubr.bf16.gmra.mxu0 %v3312
        %v3508 = vpop.f32.mrf.mxu0
        %v3509 = vadd.f32 %v3424, %v3508
        %v3510 = vpop.f32.mrf.mxu0
        %v3511 = vpop.f32.mrf.mxu0
        %v3512 = vadd.f32 %v3424, %v3511
        %v3513 = vpop.f32.mrf.mxu0
        %3514 = vdwg.mxu0
        %v3515 = vpack.c.bf16 %v3280, %v3280
        %v3516 = vpack.c.bf16 %v3400, %v3397
        %v3517 = vpack.c.bf16 %v3512, %v3509
        %v3519 = vsel %vm2356, %v3515, 0
        %v3522 = vsel %vm2356, %v3516, 0
        %3524 = vmatprep.subr.bf16.mxu0 0
        %3525 = vmatpush1.bf16.xpose.msra.mxu0 0
        %3526 = vmatprep.subr.bf16.mxu0 0
        %3527 = vmatpush1.bf16.xpose.msra.mxu0 0
        %3528 = vmatprep.subr.bf16.mxu0 0
        %3529 = vmatpush1.bf16.xpose.msra.mxu0 0
        %3530 = vmatprep.subr.bf16.mxu0 0
        %3531 = vmatpush1.bf16.xpose.msra.mxu0 0
        %3532 = vmatprep.subr.bf16.mxu0 0
        %3533 = vmatpush1.bf16.xpose.msra.mxu0 0
        %3534 = vmatprep.subr.bf16.mxu0 0
        %3535 = vmatpush1.bf16.xpose.msra.mxu0 0
        %3536 = vmatprep.subr.bf16.mxu0 0
        %3537 = vmatpush1.bf16.xpose.msra.mxu0 0
        %3538 = vmatprep.subr.bf16.mxu0 0
        %3539 = vmatpush1.bf16.xpose.msra.mxu0 %v3522
        %3540 = vmatprep.subr.bf16.mxu0 0
        %3541 = vmatpush2.bf16.xpose.msra.mxu0 0
        %3542 = vmatprep.subr.bf16.mxu0 0
        %3543 = vmatpush2.bf16.xpose.msra.mxu0 0
        %3544 = vmatprep.subr.bf16.mxu0 0
        %3545 = vmatpush2.bf16.xpose.msra.mxu0 0
        %3546 = vmatprep.subr.bf16.mxu0 0
        %3547 = vmatpush2.bf16.xpose.msra.mxu0 0
        %3548 = vmatprep.subr.bf16.mxu0 0
        %3549 = vmatpush2.bf16.xpose.msra.mxu0 0
        %3550 = vmatprep.subr.bf16.mxu0 0
        %3551 = vmatpush2.bf16.xpose.msra.mxu0 0
        %3552 = vmatprep.subr.bf16.mxu0 0
        %3553 = vmatpush2.bf16.xpose.msra.mxu0 0
        %3554 = vmatprep.subr.bf16.mxu0 0
        %3555 = vmatpush2.bf16.xpose.msra.mxu0 0
        %3556 = vmatprep.mubr.bf16.mxu0 0
        %3557 = vmatmul.mubr.bf16.gmra.mxu0 %v3519
        %v3558 = vpop.f32.mrf.mxu0
        %v3559 = vadd.f32 0.0, %v3558
        %v3560 = vpop.f32.mrf.mxu0
        %v3561 = vpop.f32.mrf.mxu0
        %v3562 = vpop.f32.mrf.mxu0
        %3563 = vdwg.mxu0
        %vm3564 = vcmask 130048
        %v3565 = vsel %vm3564, %v3559, -inf
        %3566 = vmax.xlane.f32.xlu0 %v3565
        %v3567 = vpop.xlane.xlu0 %3566
        %v3568 = vsub.f32 %v3559, %v3567
        %v3569 = vmul.f32 %v3568, 1.442695
        %v3570 = vpow.pop %v3569
        %v3571 = vsel %vm3564, %v3570, 0.0
        %3572 = vadd.xlane.f32.xlu0 %v3571
        %v3573 = vpop.xlane.xlu0 %3572
        %v3574 = vrcp.pop %v3573
        %v3575 = vmul.f32 %v3570, %v3574
        %v3576 = vpack.c.bf16 %v3575, %v3575
        %v3578 = vsel %vm3564, %v3576, 0
        %3580 = vmatprep.subr.bf16.mxu0 0
        %3581 = vmatpush1.bf16.msra.mxu0 0
        %3582 = vmatprep.subr.bf16.mxu0 0
        %3583 = vmatpush1.bf16.msra.mxu0 0
        %3584 = vmatprep.subr.bf16.mxu0 0
        %3585 = vmatpush1.bf16.msra.mxu0 0
        %3586 = vmatprep.subr.bf16.mxu0 0
        %3587 = vmatpush1.bf16.msra.mxu0 0
        %3588 = vmatprep.subr.bf16.mxu0 0
        %3589 = vmatpush1.bf16.msra.mxu0 0
        %3590 = vmatprep.subr.bf16.mxu0 0
        %3591 = vmatpush1.bf16.msra.mxu0 0
        %3592 = vmatprep.subr.bf16.mxu0 0
        %3593 = vmatpush1.bf16.msra.mxu0 0
        %3594 = vmatprep.subr.bf16.mxu0 0
        %3595 = vmatpush1.bf16.msra.mxu0 %v3517
        %3596 = vmatprep.subr.bf16.mxu0 0
        %3597 = vmatpush2.bf16.msra.mxu0 0
        %3598 = vmatprep.subr.bf16.mxu0 0
        %3599 = vmatpush2.bf16.msra.mxu0 0
        %3600 = vmatprep.subr.bf16.mxu0 0
        %3601 = vmatpush2.bf16.msra.mxu0 0
        %3602 = vmatprep.subr.bf16.mxu0 0
        %3603 = vmatpush2.bf16.msra.mxu0 0
        %3604 = vmatprep.subr.bf16.mxu0 0
        %3605 = vmatpush2.bf16.msra.mxu0 0
        %3606 = vmatprep.subr.bf16.mxu0 0
        %3607 = vmatpush2.bf16.msra.mxu0 0
        %3608 = vmatprep.subr.bf16.mxu0 0
        %3609 = vmatpush2.bf16.msra.mxu0 0
        %3610 = vmatprep.subr.bf16.mxu0 0
        %3611 = vmatpush2.bf16.msra.mxu0 0
        %3612 = vmatprep.mubr.bf16.mxu0 0
        %3613 = vmatmul.mubr.bf16.gmra.mxu0 %v3578
        %v3614 = vpop.f32.mrf.mxu0
        %v3615 = vadd.f32 0.0, %v3614
        %v3616 = vpop.f32.mrf.mxu0
        %v3617 = vpop.f32.mrf.mxu0
        %v3618 = vpop.f32.mrf.mxu0
        %3619 = vdwg.mxu0
        %3621 = vrot.lane.b32.xlu0 %v3515, 96
        %v3622 = vpop.permute.xlu0 %3621
        %3624 = vrot.lane.b32.xlu0 %v3516, 96
        %v3625 = vpop.permute.xlu0 %3624
        %v3627 = vsel %vm2356, %v3622, 0
        %v3630 = vsel %vm2356, %v3625, 0
        %3632 = vmatprep.subr.bf16.mxu0 0
        %3633 = vmatpush1.bf16.xpose.msra.mxu0 0
        %3634 = vmatprep.subr.bf16.mxu0 0
        %3635 = vmatpush1.bf16.xpose.msra.mxu0 0
        %3636 = vmatprep.subr.bf16.mxu0 0
        %3637 = vmatpush1.bf16.xpose.msra.mxu0 0
        %3638 = vmatprep.subr.bf16.mxu0 0
        %3639 = vmatpush1.bf16.xpose.msra.mxu0 0
        %3640 = vmatprep.subr.bf16.mxu0 0
        %3641 = vmatpush1.bf16.xpose.msra.mxu0 0
        %3642 = vmatprep.subr.bf16.mxu0 0
        %3643 = vmatpush1.bf16.xpose.msra.mxu0 0
        %3644 = vmatprep.subr.bf16.mxu0 0
        %3645 = vmatpush1.bf16.xpose.msra.mxu0 0
        %3646 = vmatprep.subr.bf16.mxu0 0
        %3647 = vmatpush1.bf16.xpose.msra.mxu0 %v3630
        %3648 = vmatprep.subr.bf16.mxu0 0
        %3649 = vmatpush2.bf16.xpose.msra.mxu0 0
        %3650 = vmatprep.subr.bf16.mxu0 0
        %3651 = vmatpush2.bf16.xpose.msra.mxu0 0
        %3652 = vmatprep.subr.bf16.mxu0 0
        %3653 = vmatpush2.bf16.xpose.msra.mxu0 0
        %3654 = vmatprep.subr.bf16.mxu0 0
        %3655 = vmatpush2.bf16.xpose.msra.mxu0 0
        %3656 = vmatprep.subr.bf16.mxu0 0
        %3657 = vmatpush2.bf16.xpose.msra.mxu0 0
        %3658 = vmatprep.subr.bf16.mxu0 0
        %3659 = vmatpush2.bf16.xpose.msra.mxu0 0
        %3660 = vmatprep.subr.bf16.mxu0 0
        %3661 = vmatpush2.bf16.xpose.msra.mxu0 0
        %3662 = vmatprep.subr.bf16.mxu0 0
        %3663 = vmatpush2.bf16.xpose.msra.mxu0 0
        %3664 = vmatprep.mubr.bf16.mxu0 0
        %3665 = vmatmul.mubr.bf16.gmra.mxu0 %v3627
        %v3666 = vpop.f32.mrf.mxu0
        %v3667 = vadd.f32 0.0, %v3666
        %v3668 = vpop.f32.mrf.mxu0
        %v3669 = vpop.f32.mrf.mxu0
        %v3670 = vpop.f32.mrf.mxu0
        %3671 = vdwg.mxu0
        %v3672 = vsel %vm3564, %v3667, -inf
        %3673 = vmax.xlane.f32.xlu0 %v3672
        %v3674 = vpop.xlane.xlu0 %3673
        %v3675 = vsub.f32 %v3667, %v3674
        %v3676 = vmul.f32 %v3675, 1.442695
        %v3677 = vpow.pop %v3676
        %v3678 = vsel %vm3564, %v3677, 0.0
        %3679 = vadd.xlane.f32.xlu0 %v3678
        %v3680 = vpop.xlane.xlu0 %3679
        %v3681 = vrcp.pop %v3680
        %v3682 = vmul.f32 %v3677, %v3681
        %v3683 = vpack.c.bf16 %v3682, %v3682
        %3685 = vrot.lane.b32.xlu0 %v3517, 96
        %v3686 = vpop.permute.xlu0 %3685
        %v3689 = vsel %vm3564, %v3683, 0
        %3691 = vmatprep.subr.bf16.mxu0 0
        %3692 = vmatpush1.bf16.msra.mxu0 0
        %3693 = vmatprep.subr.bf16.mxu0 0
        %3694 = vmatpush1.bf16.msra.mxu0 0
        %3695 = vmatprep.subr.bf16.mxu0 0
        %3696 = vmatpush1.bf16.msra.mxu0 0
        %3697 = vmatprep.subr.bf16.mxu0 0
        %3698 = vmatpush1.bf16.msra.mxu0 0
        %3699 = vmatprep.subr.bf16.mxu0 0
        %3700 = vmatpush1.bf16.msra.mxu0 0
        %3701 = vmatprep.subr.bf16.mxu0 0
        %3702 = vmatpush1.bf16.msra.mxu0 0
        %3703 = vmatprep.subr.bf16.mxu0 0
        %3704 = vmatpush1.bf16.msra.mxu0 0
        %3705 = vmatprep.subr.bf16.mxu0 0
        %3706 = vmatpush1.bf16.msra.mxu0 %v3686
        %3707 = vmatprep.subr.bf16.mxu0 0
        %3708 = vmatpush2.bf16.msra.mxu0 0
        %3709 = vmatprep.subr.bf16.mxu0 0
        %3710 = vmatpush2.bf16.msra.mxu0 0
        %3711 = vmatprep.subr.bf16.mxu0 0
        %3712 = vmatpush2.bf16.msra.mxu0 0
        %3713 = vmatprep.subr.bf16.mxu0 0
        %3714 = vmatpush2.bf16.msra.mxu0 0
        %3715 = vmatprep.subr.bf16.mxu0 0
        %3716 = vmatpush2.bf16.msra.mxu0 0
        %3717 = vmatprep.subr.bf16.mxu0 0
        %3718 = vmatpush2.bf16.msra.mxu0 0
        %3719 = vmatprep.subr.bf16.mxu0 0
        %3720 = vmatpush2.bf16.msra.mxu0 0
        %3721 = vmatprep.subr.bf16.mxu0 0
        %3722 = vmatpush2.bf16.msra.mxu0 0
        %3723 = vmatprep.mubr.bf16.mxu0 0
        %3724 = vmatmul.mubr.bf16.gmra.mxu0 %v3689
        %v3725 = vpop.f32.mrf.mxu0
        %v3726 = vadd.f32 0.0, %v3725
        %v3727 = vpop.f32.mrf.mxu0
        %v3728 = vpop.f32.mrf.mxu0
        %v3729 = vpop.f32.mrf.mxu0
        %3730 = vdwg.mxu0
        %3731 = vrot.lane.b32.xlu0 %v3515, 64
        %v3732 = vpop.permute.xlu0 %3731
        %3733 = vrot.lane.b32.xlu0 %v3516, 64
        %v3734 = vpop.permute.xlu0 %3733
        %v3736 = vsel %vm2356, %v3732, 0
        %v3739 = vsel %vm2356, %v3734, 0
        %3741 = vmatprep.subr.bf16.mxu0 0
        %3742 = vmatpush1.bf16.xpose.msra.mxu0 0
        %3743 = vmatprep.subr.bf16.mxu0 0
        %3744 = vmatpush1.bf16.xpose.msra.mxu0 0
        %3745 = vmatprep.subr.bf16.mxu0 0
        %3746 = vmatpush1.bf16.xpose.msra.mxu0 0
        %3747 = vmatprep.subr.bf16.mxu0 0
        %3748 = vmatpush1.bf16.xpose.msra.mxu0 0
        %3749 = vmatprep.subr.bf16.mxu0 0
        %3750 = vmatpush1.bf16.xpose.msra.mxu0 0
        %3751 = vmatprep.subr.bf16.mxu0 0
        %3752 = vmatpush1.bf16.xpose.msra.mxu0 0
        %3753 = vmatprep.subr.bf16.mxu0 0
        %3754 = vmatpush1.bf16.xpose.msra.mxu0 0
        %3755 = vmatprep.subr.bf16.mxu0 0
        %3756 = vmatpush1.bf16.xpose.msra.mxu0 %v3739
        %3757 = vmatprep.subr.bf16.mxu0 0
        %3758 = vmatpush2.bf16.xpose.msra.mxu0 0
        %3759 = vmatprep.subr.bf16.mxu0 0
        %3760 = vmatpush2.bf16.xpose.msra.mxu0 0
        %3761 = vmatprep.subr.bf16.mxu0 0
        %3762 = vmatpush2.bf16.xpose.msra.mxu0 0
        %3763 = vmatprep.subr.bf16.mxu0 0
        %3764 = vmatpush2.bf16.xpose.msra.mxu0 0
        %3765 = vmatprep.subr.bf16.mxu0 0
        %3766 = vmatpush2.bf16.xpose.msra.mxu0 0
        %3767 = vmatprep.subr.bf16.mxu0 0
        %3768 = vmatpush2.bf16.xpose.msra.mxu0 0
        %3769 = vmatprep.subr.bf16.mxu0 0
        %3770 = vmatpush2.bf16.xpose.msra.mxu0 0
        %3771 = vmatprep.subr.bf16.mxu0 0
        %3772 = vmatpush2.bf16.xpose.msra.mxu0 0
        %3773 = vmatprep.mubr.bf16.mxu0 0
        %3774 = vmatmul.mubr.bf16.gmra.mxu0 %v3736
        %v3775 = vpop.f32.mrf.mxu0
        %v3776 = vadd.f32 0.0, %v3775
        %v3777 = vpop.f32.mrf.mxu0
        %v3778 = vpop.f32.mrf.mxu0
        %v3779 = vpop.f32.mrf.mxu0
        %3780 = vdwg.mxu0
        %v3781 = vsel %vm3564, %v3776, -inf
        %3782 = vmax.xlane.f32.xlu0 %v3781
        %v3783 = vpop.xlane.xlu0 %3782
        %v3784 = vsub.f32 %v3776, %v3783
        %v3785 = vmul.f32 %v3784, 1.442695
        %v3786 = vpow.pop %v3785
        %v3787 = vsel %vm3564, %v3786, 0.0
        %3788 = vadd.xlane.f32.xlu0 %v3787
        %v3789 = vpop.xlane.xlu0 %3788
        %v3790 = vrcp.pop %v3789
        %v3791 = vmul.f32 %v3786, %v3790
        %v3792 = vpack.c.bf16 %v3791, %v3791
        %3793 = vrot.lane.b32.xlu0 %v3517, 64
        %v3794 = vpop.permute.xlu0 %3793
        %v3797 = vsel %vm3564, %v3792, 0
        %3799 = vmatprep.subr.bf16.mxu0 0
        %3800 = vmatpush1.bf16.msra.mxu0 0
        %3801 = vmatprep.subr.bf16.mxu0 0
        %3802 = vmatpush1.bf16.msra.mxu0 0
        %3803 = vmatprep.subr.bf16.mxu0 0
        %3804 = vmatpush1.bf16.msra.mxu0 0
        %3805 = vmatprep.subr.bf16.mxu0 0
        %3806 = vmatpush1.bf16.msra.mxu0 0
        %3807 = vmatprep.subr.bf16.mxu0 0
        %3808 = vmatpush1.bf16.msra.mxu0 0
        %3809 = vmatprep.subr.bf16.mxu0 0
        %3810 = vmatpush1.bf16.msra.mxu0 0
        %3811 = vmatprep.subr.bf16.mxu0 0
        %3812 = vmatpush1.bf16.msra.mxu0 0
        %3813 = vmatprep.subr.bf16.mxu0 0
        %3814 = vmatpush1.bf16.msra.mxu0 %v3794
        %3815 = vmatprep.subr.bf16.mxu0 0
        %3816 = vmatpush2.bf16.msra.mxu0 0
        %3817 = vmatprep.subr.bf16.mxu0 0
        %3818 = vmatpush2.bf16.msra.mxu0 0
        %3819 = vmatprep.subr.bf16.mxu0 0
        %3820 = vmatpush2.bf16.msra.mxu0 0
        %3821 = vmatprep.subr.bf16.mxu0 0
        %3822 = vmatpush2.bf16.msra.mxu0 0
        %3823 = vmatprep.subr.bf16.mxu0 0
        %3824 = vmatpush2.bf16.msra.mxu0 0
        %3825 = vmatprep.subr.bf16.mxu0 0
        %3826 = vmatpush2.bf16.msra.mxu0 0
        %3827 = vmatprep.subr.bf16.mxu0 0
        %3828 = vmatpush2.bf16.msra.mxu0 0
        %3829 = vmatprep.subr.bf16.mxu0 0
        %3830 = vmatpush2.bf16.msra.mxu0 0
        %3831 = vmatprep.mubr.bf16.mxu0 0
        %3832 = vmatmul.mubr.bf16.gmra.mxu0 %v3797
        %v3833 = vpop.f32.mrf.mxu0
        %v3834 = vadd.f32 0.0, %v3833
        %v3835 = vpop.f32.mrf.mxu0
        %v3836 = vpop.f32.mrf.mxu0
        %v3837 = vpop.f32.mrf.mxu0
        %3838 = vdwg.mxu0
        %3839 = vrot.lane.b32.xlu0 %v3515, 32
        %v3840 = vpop.permute.xlu0 %3839
        %3841 = vrot.lane.b32.xlu0 %v3516, 32
        %v3842 = vpop.permute.xlu0 %3841
        %v3844 = vsel %vm2356, %v3840, 0
        %v3847 = vsel %vm2356, %v3842, 0
        %3849 = vmatprep.subr.bf16.mxu0 0
        %3850 = vmatpush1.bf16.xpose.msra.mxu0 0
        %3851 = vmatprep.subr.bf16.mxu0 0
        %3852 = vmatpush1.bf16.xpose.msra.mxu0 0
        %3853 = vmatprep.subr.bf16.mxu0 0
        %3854 = vmatpush1.bf16.xpose.msra.mxu0 0
        %3855 = vmatprep.subr.bf16.mxu0 0
        %3856 = vmatpush1.bf16.xpose.msra.mxu0 0
        %3857 = vmatprep.subr.bf16.mxu0 0
        %3858 = vmatpush1.bf16.xpose.msra.mxu0 0
        %3859 = vmatprep.subr.bf16.mxu0 0
        %3860 = vmatpush1.bf16.xpose.msra.mxu0 0
        %3861 = vmatprep.subr.bf16.mxu0 0
        %3862 = vmatpush1.bf16.xpose.msra.mxu0 0
        %3863 = vmatprep.subr.bf16.mxu0 0
        %3864 = vmatpush1.bf16.xpose.msra.mxu0 %v3847
        %3865 = vmatprep.subr.bf16.mxu0 0
        %3866 = vmatpush2.bf16.xpose.msra.mxu0 0
        %3867 = vmatprep.subr.bf16.mxu0 0
        %3868 = vmatpush2.bf16.xpose.msra.mxu0 0
        %3869 = vmatprep.subr.bf16.mxu0 0
        %3870 = vmatpush2.bf16.xpose.msra.mxu0 0
        %3871 = vmatprep.subr.bf16.mxu0 0
        %3872 = vmatpush2.bf16.xpose.msra.mxu0 0
        %3873 = vmatprep.subr.bf16.mxu0 0
        %3874 = vmatpush2.bf16.xpose.msra.mxu0 0
        %3875 = vmatprep.subr.bf16.mxu0 0
        %3876 = vmatpush2.bf16.xpose.msra.mxu0 0
        %3877 = vmatprep.subr.bf16.mxu0 0
        %3878 = vmatpush2.bf16.xpose.msra.mxu0 0
        %3879 = vmatprep.subr.bf16.mxu0 0
        %3880 = vmatpush2.bf16.xpose.msra.mxu0 0
        %3881 = vmatprep.mubr.bf16.mxu0 0
        %3882 = vmatmul.mubr.bf16.gmra.mxu0 %v3844
        %v3883 = vpop.f32.mrf.mxu0
        %v3884 = vadd.f32 0.0, %v3883
        %v3885 = vpop.f32.mrf.mxu0
        %v3886 = vpop.f32.mrf.mxu0
        %v3887 = vpop.f32.mrf.mxu0
        %3888 = vdwg.mxu0
        %v3889 = vsel %vm3564, %v3884, -inf
        %3890 = vmax.xlane.f32.xlu0 %v3889
        %v3891 = vpop.xlane.xlu0 %3890
        %v3892 = vsub.f32 %v3884, %v3891
        %v3893 = vmul.f32 %v3892, 1.442695
        %v3894 = vpow.pop %v3893
        %v3895 = vsel %vm3564, %v3894, 0.0
        %3896 = vadd.xlane.f32.xlu0 %v3895
        %v3897 = vpop.xlane.xlu0 %3896
        %v3898 = vrcp.pop %v3897
        %v3899 = vmul.f32 %v3894, %v3898
        %v3900 = vpack.c.bf16 %v3899, %v3899
        %3901 = vrot.lane.b32.xlu0 %v3517, 32
        %v3902 = vpop.permute.xlu0 %3901
        %v3905 = vsel %vm3564, %v3900, 0
        %3907 = vmatprep.subr.bf16.mxu0 0
        %3908 = vmatpush1.bf16.msra.mxu0 0
        %3909 = vmatprep.subr.bf16.mxu0 0
        %3910 = vmatpush1.bf16.msra.mxu0 0
        %3911 = vmatprep.subr.bf16.mxu0 0
        %3912 = vmatpush1.bf16.msra.mxu0 0
        %3913 = vmatprep.subr.bf16.mxu0 0
        %3914 = vmatpush1.bf16.msra.mxu0 0
        %3915 = vmatprep.subr.bf16.mxu0 0
        %3916 = vmatpush1.bf16.msra.mxu0 0
        %3917 = vmatprep.subr.bf16.mxu0 0
        %3918 = vmatpush1.bf16.msra.mxu0 0
        %3919 = vmatprep.subr.bf16.mxu0 0
        %3920 = vmatpush1.bf16.msra.mxu0 0
        %3921 = vmatprep.subr.bf16.mxu0 0
        %3922 = vmatpush1.bf16.msra.mxu0 %v3902
        %3923 = vmatprep.subr.bf16.mxu0 0
        %3924 = vmatpush2.bf16.msra.mxu0 0
        %3925 = vmatprep.subr.bf16.mxu0 0
        %3926 = vmatpush2.bf16.msra.mxu0 0
        %3927 = vmatprep.subr.bf16.mxu0 0
        %3928 = vmatpush2.bf16.msra.mxu0 0
        %3929 = vmatprep.subr.bf16.mxu0 0
        %3930 = vmatpush2.bf16.msra.mxu0 0
        %3931 = vmatprep.subr.bf16.mxu0 0
        %3932 = vmatpush2.bf16.msra.mxu0 0
        %3933 = vmatprep.subr.bf16.mxu0 0
        %3934 = vmatpush2.bf16.msra.mxu0 0
        %3935 = vmatprep.subr.bf16.mxu0 0
        %3936 = vmatpush2.bf16.msra.mxu0 0
        %3937 = vmatprep.subr.bf16.mxu0 0
        %3938 = vmatpush2.bf16.msra.mxu0 0
        %3939 = vmatprep.mubr.bf16.mxu0 0
        %3940 = vmatmul.mubr.bf16.gmra.mxu0 %v3905
        %v3941 = vpop.f32.mrf.mxu0
        %v3942 = vadd.f32 0.0, %v3941
        %v3943 = vpop.f32.mrf.mxu0
        %v3944 = vpop.f32.mrf.mxu0
        %v3945 = vpop.f32.mrf.mxu0
        %3946 = vdwg.mxu0
        %3948 = vrot.lane.b32.xlu0 %v3726, 32
        %v3949 = vpop.permute.xlu0 %3948
        %3952 = vrot.lane.b32.xlu0 %v3834, 64
        %v3953 = vpop.permute.xlu0 %3952
        %3956 = vrot.lane.b32.xlu0 %v3942, 96
        %v3957 = vpop.permute.xlu0 %3956
        %v3959 = vsel %vm2356, %v3615, %v3949
        %v3960 = vsel %vm2809, %v3959, %v3953
        %v3961 = vsel %vm2811, %v3960, %v3957
        %v3962 = vpack.c.bf16 %v3961, %v3961
        %v3963 = vld [vmem:[#allocation26] sm:$0xf]
        %v3964 = vld [vmem:[#allocation26 + $0x4] sm:$0xf]
        %v3965 = vld [vmem:[#allocation26 + $0x8] sm:$0xf]
        %v3966 = vld [vmem:[#allocation26 + $0xc] sm:$0xf]
        %v3967 = vld [vmem:[#allocation26 + $0x10] sm:$0xf]
        %v3968 = vld [vmem:[#allocation26 + $0x14] sm:$0xf]
        %v3969 = vld [vmem:[#allocation26 + $0x18] sm:$0xf]
        %v3970 = vld [vmem:[#allocation26 + $0x1c] sm:$0xf]
        %v3971 = vld [vmem:[#allocation26 + $0x20] sm:$0xf]
        %v3972 = vld [vmem:[#allocation26 + $0x24] sm:$0xf]
        %v3973 = vld [vmem:[#allocation26 + $0x28] sm:$0xf]
        %v3974 = vld [vmem:[#allocation26 + $0x2c] sm:$0xf]
        %v3975 = vld [vmem:[#allocation26 + $0x30] sm:$0xf]
        %v3976 = vld [vmem:[#allocation26 + $0x34] sm:$0xf]
        %v3977 = vld [vmem:[#allocation26 + $0x38] sm:$0xf]
        %v3978 = vld [vmem:[#allocation26 + $0x3c] sm:$0xf]
        %v3979 = vld [vmem:[#allocation28] sm:$0x1]
        %v3981 = vlaneseq
        %v3982 = vshrl.u32 %v3981, 7
        %v3983 = vsub.s32 0, %v3982
        %v3984 = vrot.slane %v3979, %v3983
        %v4002 = vunpack.c.l.b16 %v3963
        %v4003 = vunpack.c.l.b16 %v3964
        %v4004 = vunpack.c.l.b16 %v3965
        %v4005 = vunpack.c.l.b16 %v3966
        %v4006 = vunpack.c.l.b16 %v3967
        %v4007 = vunpack.c.l.b16 %v3968
        %v4008 = vunpack.c.l.b16 %v3969
        %v4009 = vunpack.c.l.b16 %v3970
        %v4010 = vunpack.c.l.b16 %v3971
        %v4011 = vunpack.c.l.b16 %v3972
        %v4012 = vunpack.c.l.b16 %v3973
        %v4013 = vunpack.c.l.b16 %v3974
        %v4014 = vunpack.c.l.b16 %v3975
        %v4015 = vunpack.c.l.b16 %v3976
        %v4016 = vunpack.c.l.b16 %v3977
        %v4017 = vunpack.c.l.b16 %v3978
        %v4018 = vpack.c.b16 %v4003, %v4002
        %v4019 = vpack.c.b16 %v4005, %v4004
        %v4020 = vpack.c.b16 %v4007, %v4006
        %v4021 = vpack.c.b16 %v4009, %v4008
        %v4022 = vpack.c.b16 %v4011, %v4010
        %v4023 = vpack.c.b16 %v4013, %v4012
        %v4024 = vpack.c.b16 %v4015, %v4014
        %v4025 = vpack.c.b16 %v4017, %v4016
        %4034 = vmatprep.subr.bf16.mxu0 0
        %4035 = vmatpush1.bf16.msra.mxu0 %v4025
        %4036 = vmatprep.subr.bf16.mxu0 0
        %4037 = vmatpush1.bf16.msra.mxu0 %v4024
        %4038 = vmatprep.subr.bf16.mxu0 0
        %4039 = vmatpush1.bf16.msra.mxu0 %v4023
        %4040 = vmatprep.subr.bf16.mxu0 0
        %4041 = vmatpush1.bf16.msra.mxu0 %v4022
        %4042 = vmatprep.subr.bf16.mxu0 0
        %4043 = vmatpush1.bf16.msra.mxu0 %v4021
        %4044 = vmatprep.subr.bf16.mxu0 0
        %4045 = vmatpush1.bf16.msra.mxu0 %v4020
        %4046 = vmatprep.subr.bf16.mxu0 0
        %4047 = vmatpush1.bf16.msra.mxu0 %v4019
        %4048 = vmatprep.subr.bf16.mxu0 0
        %4049 = vmatpush1.bf16.msra.mxu0 %v4018
        %4050 = vmatprep.subr.bf16.mxu0 0
        %4051 = vmatpush2.bf16.msra.mxu0 0
        %4052 = vmatprep.subr.bf16.mxu0 0
        %4053 = vmatpush2.bf16.msra.mxu0 0
        %4054 = vmatprep.subr.bf16.mxu0 0
        %4055 = vmatpush2.bf16.msra.mxu0 0
        %4056 = vmatprep.subr.bf16.mxu0 0
        %4057 = vmatpush2.bf16.msra.mxu0 0
        %4058 = vmatprep.subr.bf16.mxu0 0
        %4059 = vmatpush2.bf16.msra.mxu0 0
        %4060 = vmatprep.subr.bf16.mxu0 0
        %4061 = vmatpush2.bf16.msra.mxu0 0
        %4062 = vmatprep.subr.bf16.mxu0 0
        %4063 = vmatpush2.bf16.msra.mxu0 0
        %4064 = vmatprep.subr.bf16.mxu0 0
        %4065 = vmatpush2.bf16.msra.mxu0 0
        %4066 = vmatprep.mubr.bf16.mxu0 0
        %4067 = vmatmul.mubr.bf16.gmra.mxu0 %v3962
        %v4068 = vpop.f32.mrf.mxu0
        %v4069 = vadd.f32 %v3984, %v4068
        %v4070 = vpop.f32.mrf.mxu0
        %v4071 = vpop.f32.mrf.mxu0
        %v4072 = vpop.f32.mrf.mxu0
        %4073 = vdwg.mxu0
        %v4074 = vlaneseq
        %v4075 = vshrl.u32 %v4074, 7
        %v4076 = vsub.s32 0, %v4075
        %v4077 = vrot.slane %v3036, %v4076
        %v4078 = vmul.f32 %v4077, %v4069
        %v4079 = vadd.f32 %v2935, %v4078
        %v4080 = vlaneseq
        %v4081 = vshrl.u32 %v4080, 7
        %v4082 = vsub.s32 0, %v4081
        %v4083 = vrot.slane %v3141, %v4082
        %v4084 = vadd.f32 %v4079, %v4083
        %v4085 = vld [vmem:[%s75] sm:$0xf]
        %v4086 = vld [vmem:[%s75 + $0x4] sm:$0xf]
        %v4087 = vld [vmem:[%s75 + $0x8] sm:$0xf]
        %v4088 = vld [vmem:[%s75 + $0xc] sm:$0xf]
        %v4089 = vld [vmem:[%s75 + $0x10] sm:$0xf]
        %v4090 = vld [vmem:[%s75 + $0x14] sm:$0xf]
        %v4091 = vld [vmem:[%s75 + $0x18] sm:$0xf]
        %v4092 = vld [vmem:[%s75 + $0x1c] sm:$0xf]
        %v4093 = vld [vmem:[%s75 + $0x20] sm:$0xf]
        %v4094 = vld [vmem:[%s75 + $0x24] sm:$0xf]
        %v4095 = vld [vmem:[%s75 + $0x28] sm:$0xf]
        %v4096 = vld [vmem:[%s75 + $0x2c] sm:$0xf]
        %v4097 = vld [vmem:[%s75 + $0x30] sm:$0xf]
        %v4098 = vld [vmem:[%s75 + $0x34] sm:$0xf]
        %v4099 = vld [vmem:[%s75 + $0x38] sm:$0xf]
        %v4100 = vld [vmem:[%s75 + $0x3c] sm:$0xf]
        %v4101 = vld [vmem:[%s77] sm:$0x1]
        %v4118 = vunpack.c.l.b16 %v4085
        %v4119 = vunpack.c.l.b16 %v4086
        %v4120 = vunpack.c.l.b16 %v4087
        %v4121 = vunpack.c.l.b16 %v4088
        %v4122 = vunpack.c.l.b16 %v4089
        %v4123 = vunpack.c.l.b16 %v4090
        %v4124 = vunpack.c.l.b16 %v4091
        %v4125 = vunpack.c.l.b16 %v4092
        %v4126 = vunpack.c.l.b16 %v4093
        %v4127 = vunpack.c.l.b16 %v4094
        %v4128 = vunpack.c.l.b16 %v4095
        %v4129 = vunpack.c.l.b16 %v4096
        %v4130 = vunpack.c.l.b16 %v4097
        %v4131 = vunpack.c.l.b16 %v4098
        %v4132 = vunpack.c.l.b16 %v4099
        %v4133 = vunpack.c.l.b16 %v4100
        %v4134 = vpack.c.b16 %v4119, %v4118
        %v4135 = vpack.c.b16 %v4121, %v4120
        %v4136 = vpack.c.b16 %v4123, %v4122
        %v4137 = vpack.c.b16 %v4125, %v4124
        %v4138 = vpack.c.b16 %v4127, %v4126
        %v4139 = vpack.c.b16 %v4129, %v4128
        %v4140 = vpack.c.b16 %v4131, %v4130
        %v4141 = vpack.c.b16 %v4133, %v4132
        %4150 = vmatprep.subr.bf16.mxu0 0
        %4151 = vmatpush1.bf16.msra.mxu0 %v4141
        %4152 = vmatprep.subr.bf16.mxu0 0
        %4153 = vmatpush1.bf16.msra.mxu0 %v4140
        %4154 = vmatprep.subr.bf16.mxu0 0
        %4155 = vmatpush1.bf16.msra.mxu0 %v4139
        %4156 = vmatprep.subr.bf16.mxu0 0
        %4157 = vmatpush1.bf16.msra.mxu0 %v4138
        %4158 = vmatprep.subr.bf16.mxu0 0
        %4159 = vmatpush1.bf16.msra.mxu0 %v4137
        %4160 = vmatprep.subr.bf16.mxu0 0
        %4161 = vmatpush1.bf16.msra.mxu0 %v4136
        %4162 = vmatprep.subr.bf16.mxu0 0
        %4163 = vmatpush1.bf16.msra.mxu0 %v4135
        %4164 = vmatprep.subr.bf16.mxu0 0
        %4165 = vmatpush1.bf16.msra.mxu0 %v4134
        %4166 = vmatprep.subr.bf16.mxu0 0
        %4167 = vmatpush2.bf16.msra.mxu0 0
        %4168 = vmatprep.subr.bf16.mxu0 0
        %4169 = vmatpush2.bf16.msra.mxu0 0
        %4170 = vmatprep.subr.bf16.mxu0 0
        %4171 = vmatpush2.bf16.msra.mxu0 0
        %4172 = vmatprep.subr.bf16.mxu0 0
        %4173 = vmatpush2.bf16.msra.mxu0 0
        %4174 = vmatprep.subr.bf16.mxu0 0
        %4175 = vmatpush2.bf16.msra.mxu0 0
        %4176 = vmatprep.subr.bf16.mxu0 0
        %4177 = vmatpush2.bf16.msra.mxu0 0
        %4178 = vmatprep.subr.bf16.mxu0 0
        %4179 = vmatpush2.bf16.msra.mxu0 0
        %4180 = vmatprep.subr.bf16.mxu0 0
        %4181 = vmatpush2.bf16.msra.mxu0 0
        %4182 = vmatprep.mubr.bf16.mxu0 0
        %4183 = vmatmul.mubr.bf16.gmra.mxu0 %v1780
        %v4184 = vpop.f32.mrf.mxu0
        %v4185 = vadd.f32 %v4101, %v4184
        %v4186 = vpop.f32.mrf.mxu0
        %v4187 = vpop.f32.mrf.mxu0
        %v4188 = vpop.f32.mrf.mxu0
        %4189 = vdwg.mxu0
        %v4190 = vld [vmem:[#allocation56] sm:$0xf]
        %v4191 = vld [vmem:[#allocation56 + $0x4] sm:$0xf]
        %v4192 = vld [vmem:[#allocation56 + $0x8] sm:$0xf]
        %v4193 = vld [vmem:[#allocation56 + $0xc] sm:$0xf]
        %v4194 = vld [vmem:[#allocation56 + $0x10] sm:$0xf]
        %v4195 = vld [vmem:[#allocation56 + $0x14] sm:$0xf]
        %v4196 = vld [vmem:[#allocation56 + $0x18] sm:$0xf]
        %v4197 = vld [vmem:[#allocation56 + $0x1c] sm:$0xf]
        %v4198 = vld [vmem:[#allocation56 + $0x20] sm:$0xf]
        %v4199 = vld [vmem:[#allocation56 + $0x24] sm:$0xf]
        %v4200 = vld [vmem:[#allocation56 + $0x28] sm:$0xf]
        %v4201 = vld [vmem:[#allocation56 + $0x2c] sm:$0xf]
        %v4202 = vld [vmem:[#allocation56 + $0x30] sm:$0xf]
        %v4203 = vld [vmem:[#allocation56 + $0x34] sm:$0xf]
        %v4204 = vld [vmem:[#allocation56 + $0x38] sm:$0xf]
        %v4205 = vld [vmem:[#allocation56 + $0x3c] sm:$0xf]
        %v4206 = vld [vmem:[%s81] sm:$0x1]
        %v4223 = vunpack.c.l.b16 %v4190
        %v4224 = vunpack.c.l.b16 %v4191
        %v4225 = vunpack.c.l.b16 %v4192
        %v4226 = vunpack.c.l.b16 %v4193
        %v4227 = vunpack.c.l.b16 %v4194
        %v4228 = vunpack.c.l.b16 %v4195
        %v4229 = vunpack.c.l.b16 %v4196
        %v4230 = vunpack.c.l.b16 %v4197
        %v4231 = vunpack.c.l.b16 %v4198
        %v4232 = vunpack.c.l.b16 %v4199
        %v4233 = vunpack.c.l.b16 %v4200
        %v4234 = vunpack.c.l.b16 %v4201
        %v4235 = vunpack.c.l.b16 %v4202
        %v4236 = vunpack.c.l.b16 %v4203
        %v4237 = vunpack.c.l.b16 %v4204
        %v4238 = vunpack.c.l.b16 %v4205
        %v4239 = vpack.c.b16 %v4224, %v4223
        %v4240 = vpack.c.b16 %v4226, %v4225
        %v4241 = vpack.c.b16 %v4228, %v4227
        %v4242 = vpack.c.b16 %v4230, %v4229
        %v4243 = vpack.c.b16 %v4232, %v4231
        %v4244 = vpack.c.b16 %v4234, %v4233
        %v4245 = vpack.c.b16 %v4236, %v4235
        %v4246 = vpack.c.b16 %v4238, %v4237
        %4255 = vmatprep.subr.bf16.mxu0 0
        %4256 = vmatpush1.bf16.msra.mxu0 %v4246
        %4257 = vmatprep.subr.bf16.mxu0 0
        %4258 = vmatpush1.bf16.msra.mxu0 %v4245
        %4259 = vmatprep.subr.bf16.mxu0 0
        %4260 = vmatpush1.bf16.msra.mxu0 %v4244
        %4261 = vmatprep.subr.bf16.mxu0 0
        %4262 = vmatpush1.bf16.msra.mxu0 %v4243
        %4263 = vmatprep.subr.bf16.mxu0 0
        %4264 = vmatpush1.bf16.msra.mxu0 %v4242
        %4265 = vmatprep.subr.bf16.mxu0 0
        %4266 = vmatpush1.bf16.msra.mxu0 %v4241
        %4267 = vmatprep.subr.bf16.mxu0 0
        %4268 = vmatpush1.bf16.msra.mxu0 %v4240
        %4269 = vmatprep.subr.bf16.mxu0 0
        %4270 = vmatpush1.bf16.msra.mxu0 %v4239
        %4271 = vmatprep.subr.bf16.mxu0 0
        %4272 = vmatpush2.bf16.msra.mxu0 0
        %4273 = vmatprep.subr.bf16.mxu0 0
        %4274 = vmatpush2.bf16.msra.mxu0 0
        %4275 = vmatprep.subr.bf16.mxu0 0
        %4276 = vmatpush2.bf16.msra.mxu0 0
        %4277 = vmatprep.subr.bf16.mxu0 0
        %4278 = vmatpush2.bf16.msra.mxu0 0
        %4279 = vmatprep.subr.bf16.mxu0 0
        %4280 = vmatpush2.bf16.msra.mxu0 0
        %4281 = vmatprep.subr.bf16.mxu0 0
        %4282 = vmatpush2.bf16.msra.mxu0 0
        %4283 = vmatprep.subr.bf16.mxu0 0
        %4284 = vmatpush2.bf16.msra.mxu0 0
        %4285 = vmatprep.subr.bf16.mxu0 0
        %4286 = vmatpush2.bf16.msra.mxu0 0
        %4287 = vmatprep.mubr.bf16.mxu0 0
        %4288 = vmatmul.mubr.bf16.gmra.mxu0 %v1780
        %v4289 = vpop.f32.mrf.mxu0
        %v4290 = vadd.f32 %v4206, %v4289
        %v4291 = vpop.f32.mrf.mxu0
        %v4292 = vpop.f32.mrf.mxu0
        %v4293 = vpop.f32.mrf.mxu0
        %4294 = vdwg.mxu0
        %v4295 = vld [vmem:[#allocation41] sm:$0x1]
        %v4296 = vld [vmem:[#allocation43] sm:$0x1]
        %4297 = vadd.xlane.f32.xlu0 %v4084
        %v4298 = vpop.xlane.xlu0 %4297
        %v4299 = vmul.f32 %v4298, %v1995
        %v4300 = vsub.f32 %v4084, %v4299
        %v4301 = vmul.f32 %v4300, %v4300
        %4302 = vadd.xlane.f32.xlu0 %v4301
        %v4303 = vpop.xlane.xlu0 %4302
        %v4304 = vmul.f32 %v4303, %v1995
        %v4305 = vadd.f32 %v4304, 1e-05
        %v4306 = vrsqrt.pop %v4305
        %v4307 = vmul.f32 %v4300, %v4306
        %v4309 = vlaneseq
        %v4310 = vshrl.u32 %v4309, 7
        %v4311 = vsub.s32 0, %v4310
        %v4312 = vrot.slane %v4295, %v4311
        %v4314 = vmul.f32 %v4307, %v4312
        %v4316 = vlaneseq
        %v4317 = vshrl.u32 %v4316, 7
        %v4318 = vsub.s32 0, %v4317
        %v4319 = vrot.slane %v4296, %v4318
        %v4321 = vadd.f32 %v4314, %v4319
        %v4322 = vpack.c.bf16 %v4321, %v4321
        %v4323 = vld [vmem:[#allocation29] sm:$0xf]
        %v4324 = vld [vmem:[#allocation29 + $0x4] sm:$0xf]
        %v4325 = vld [vmem:[#allocation29 + $0x8] sm:$0xf]
        %v4326 = vld [vmem:[#allocation29 + $0xc] sm:$0xf]
        %v4327 = vld [vmem:[#allocation29 + $0x10] sm:$0xf]
        %v4328 = vld [vmem:[#allocation29 + $0x14] sm:$0xf]
        %v4329 = vld [vmem:[#allocation29 + $0x18] sm:$0xf]
        %v4330 = vld [vmem:[#allocation29 + $0x1c] sm:$0xf]
        %v4331 = vld [vmem:[#allocation29 + $0x20] sm:$0xf]
        %v4332 = vld [vmem:[#allocation29 + $0x24] sm:$0xf]
        %v4333 = vld [vmem:[#allocation29 + $0x28] sm:$0xf]
        %v4334 = vld [vmem:[#allocation29 + $0x2c] sm:$0xf]
        %v4335 = vld [vmem:[#allocation29 + $0x30] sm:$0xf]
        %v4336 = vld [vmem:[#allocation29 + $0x34] sm:$0xf]
        %v4337 = vld [vmem:[#allocation29 + $0x38] sm:$0xf]
        %v4338 = vld [vmem:[#allocation29 + $0x3c] sm:$0xf]
        %v4339 = vld [vmem:[#allocation31] sm:$0x1]
        %v4341 = vlaneseq
        %v4342 = vshrl.u32 %v4341, 7
        %v4343 = vsub.s32 0, %v4342
        %v4344 = vrot.slane %v4339, %v4343
        %v4362 = vunpack.c.l.b16 %v4323
        %v4363 = vunpack.c.l.b16 %v4324
        %v4364 = vunpack.c.l.b16 %v4325
        %v4365 = vunpack.c.l.b16 %v4326
        %v4366 = vunpack.c.l.b16 %v4327
        %v4367 = vunpack.c.l.b16 %v4328
        %v4368 = vunpack.c.l.b16 %v4329
        %v4369 = vunpack.c.l.b16 %v4330
        %v4370 = vunpack.c.l.b16 %v4331
        %v4371 = vunpack.c.l.b16 %v4332
        %v4372 = vunpack.c.l.b16 %v4333
        %v4373 = vunpack.c.l.b16 %v4334
        %v4374 = vunpack.c.l.b16 %v4335
        %v4375 = vunpack.c.l.b16 %v4336
        %v4376 = vunpack.c.l.b16 %v4337
        %v4377 = vunpack.c.l.b16 %v4338
        %v4378 = vpack.c.b16 %v4363, %v4362
        %v4379 = vpack.c.b16 %v4365, %v4364
        %v4380 = vpack.c.b16 %v4367, %v4366
        %v4381 = vpack.c.b16 %v4369, %v4368
        %v4382 = vpack.c.b16 %v4371, %v4370
        %v4383 = vpack.c.b16 %v4373, %v4372
        %v4384 = vpack.c.b16 %v4375, %v4374
        %v4385 = vpack.c.b16 %v4377, %v4376
        %4394 = vmatprep.subr.bf16.mxu0 0
        %4395 = vmatpush1.bf16.msra.mxu0 %v4385
        %4396 = vmatprep.subr.bf16.mxu0 0
        %4397 = vmatpush1.bf16.msra.mxu0 %v4384
        %4398 = vmatprep.subr.bf16.mxu0 0
        %4399 = vmatpush1.bf16.msra.mxu0 %v4383
        %4400 = vmatprep.subr.bf16.mxu0 0
        %4401 = vmatpush1.bf16.msra.mxu0 %v4382
        %4402 = vmatprep.subr.bf16.mxu0 0
        %4403 = vmatpush1.bf16.msra.mxu0 %v4381
        %4404 = vmatprep.subr.bf16.mxu0 0
        %4405 = vmatpush1.bf16.msra.mxu0 %v4380
        %4406 = vmatprep.subr.bf16.mxu0 0
        %4407 = vmatpush1.bf16.msra.mxu0 %v4379
        %4408 = vmatprep.subr.bf16.mxu0 0
        %4409 = vmatpush1.bf16.msra.mxu0 %v4378
        %4410 = vmatprep.subr.bf16.mxu0 0
        %4411 = vmatpush2.bf16.msra.mxu0 0
        %4412 = vmatprep.subr.bf16.mxu0 0
        %4413 = vmatpush2.bf16.msra.mxu0 0
        %4414 = vmatprep.subr.bf16.mxu0 0
        %4415 = vmatpush2.bf16.msra.mxu0 0
        %4416 = vmatprep.subr.bf16.mxu0 0
        %4417 = vmatpush2.bf16.msra.mxu0 0
        %4418 = vmatprep.subr.bf16.mxu0 0
        %4419 = vmatpush2.bf16.msra.mxu0 0
        %4420 = vmatprep.subr.bf16.mxu0 0
        %4421 = vmatpush2.bf16.msra.mxu0 0
        %4422 = vmatprep.subr.bf16.mxu0 0
        %4423 = vmatpush2.bf16.msra.mxu0 0
        %4424 = vmatprep.subr.bf16.mxu0 0
        %4425 = vmatpush2.bf16.msra.mxu0 0
        %4426 = vmatprep.mubr.bf16.mxu0 0
        %4427 = vmatmul.mubr.bf16.gmra.mxu0 %v4322
        %v4428 = vpop.f32.mrf.mxu0
        %v4429 = vadd.f32 %v4344, %v4428
        %v4430 = vpop.f32.mrf.mxu0
        %v4431 = vpop.f32.mrf.mxu0
        %v4432 = vpop.f32.mrf.mxu0
        %4433 = vdwg.mxu0
        %v4434 = vmax.f32 %v4429, 0.0
        %v4435 = vpack.c.bf16 %v4434, %v4434
        %v4436 = vld [vmem:[#allocation32] sm:$0xf]
        %v4437 = vld [vmem:[#allocation32 + $0x4] sm:$0xf]
        %v4438 = vld [vmem:[#allocation32 + $0x8] sm:$0xf]
        %v4439 = vld [vmem:[#allocation32 + $0xc] sm:$0xf]
        %v4440 = vld [vmem:[#allocation32 + $0x10] sm:$0xf]
        %v4441 = vld [vmem:[#allocation32 + $0x14] sm:$0xf]
        %v4442 = vld [vmem:[#allocation32 + $0x18] sm:$0xf]
        %v4443 = vld [vmem:[#allocation32 + $0x1c] sm:$0xf]
        %v4444 = vld [vmem:[#allocation32 + $0x20] sm:$0xf]
        %v4445 = vld [vmem:[#allocation32 + $0x24] sm:$0xf]
        %v4446 = vld [vmem:[#allocation32 + $0x28] sm:$0xf]
        %v4447 = vld [vmem:[#allocation32 + $0x2c] sm:$0xf]
        %v4448 = vld [vmem:[#allocation32 + $0x30] sm:$0xf]
        %v4449 = vld [vmem:[#allocation32 + $0x34] sm:$0xf]
        %v4450 = vld [vmem:[#allocation32 + $0x38] sm:$0xf]
        %v4451 = vld [vmem:[#allocation32 + $0x3c] sm:$0xf]
        %s4452 = scalar_lea.vmem [#allocation29], 64
        %v4453 = vld [vmem:[%s4452] sm:$0xf]
        %v4454 = vld [vmem:[%s4452 + $0x4] sm:$0xf]
        %v4455 = vld [vmem:[%s4452 + $0x8] sm:$0xf]
        %v4456 = vld [vmem:[%s4452 + $0xc] sm:$0xf]
        %v4457 = vld [vmem:[%s4452 + $0x10] sm:$0xf]
        %v4458 = vld [vmem:[%s4452 + $0x14] sm:$0xf]
        %v4459 = vld [vmem:[%s4452 + $0x18] sm:$0xf]
        %v4460 = vld [vmem:[%s4452 + $0x1c] sm:$0xf]
        %v4461 = vld [vmem:[%s4452 + $0x20] sm:$0xf]
        %v4462 = vld [vmem:[%s4452 + $0x24] sm:$0xf]
        %v4463 = vld [vmem:[%s4452 + $0x28] sm:$0xf]
        %v4464 = vld [vmem:[%s4452 + $0x2c] sm:$0xf]
        %v4465 = vld [vmem:[%s4452 + $0x30] sm:$0xf]
        %v4466 = vld [vmem:[%s4452 + $0x34] sm:$0xf]
        %v4467 = vld [vmem:[%s4452 + $0x38] sm:$0xf]
        %v4468 = vld [vmem:[%s4452 + $0x3c] sm:$0xf]
        %s4469 = scalar_lea.vmem [#allocation31], 1
        %v4470 = vld [vmem:[%s4469] sm:$0x1]
        %v4472 = vlaneseq
        %v4473 = vshrl.u32 %v4472, 7
        %v4474 = vsub.s32 0, %v4473
        %v4475 = vrot.slane %v4470, %v4474
        %v4493 = vunpack.c.l.b16 %v4453
        %v4494 = vunpack.c.l.b16 %v4454
        %v4495 = vunpack.c.l.b16 %v4455
        %v4496 = vunpack.c.l.b16 %v4456
        %v4497 = vunpack.c.l.b16 %v4457
        %v4498 = vunpack.c.l.b16 %v4458
        %v4499 = vunpack.c.l.b16 %v4459
        %v4500 = vunpack.c.l.b16 %v4460
        %v4501 = vunpack.c.l.b16 %v4461
        %v4502 = vunpack.c.l.b16 %v4462
        %v4503 = vunpack.c.l.b16 %v4463
        %v4504 = vunpack.c.l.b16 %v4464
        %v4505 = vunpack.c.l.b16 %v4465
        %v4506 = vunpack.c.l.b16 %v4466
        %v4507 = vunpack.c.l.b16 %v4467
        %v4508 = vunpack.c.l.b16 %v4468
        %v4509 = vpack.c.b16 %v4494, %v4493
        %v4510 = vpack.c.b16 %v4496, %v4495
        %v4511 = vpack.c.b16 %v4498, %v4497
        %v4512 = vpack.c.b16 %v4500, %v4499
        %v4513 = vpack.c.b16 %v4502, %v4501
        %v4514 = vpack.c.b16 %v4504, %v4503
        %v4515 = vpack.c.b16 %v4506, %v4505
        %v4516 = vpack.c.b16 %v4508, %v4507
        %4525 = vmatprep.subr.bf16.mxu0 0
        %4526 = vmatpush1.bf16.msra.mxu0 %v4516
        %4527 = vmatprep.subr.bf16.mxu0 0
        %4528 = vmatpush1.bf16.msra.mxu0 %v4515
        %4529 = vmatprep.subr.bf16.mxu0 0
        %4530 = vmatpush1.bf16.msra.mxu0 %v4514
        %4531 = vmatprep.subr.bf16.mxu0 0
        %4532 = vmatpush1.bf16.msra.mxu0 %v4513
        %4533 = vmatprep.subr.bf16.mxu0 0
        %4534 = vmatpush1.bf16.msra.mxu0 %v4512
        %4535 = vmatprep.subr.bf16.mxu0 0
        %4536 = vmatpush1.bf16.msra.mxu0 %v4511
        %4537 = vmatprep.subr.bf16.mxu0 0
        %4538 = vmatpush1.bf16.msra.mxu0 %v4510
        %4539 = vmatprep.subr.bf16.mxu0 0
        %4540 = vmatpush1.bf16.msra.mxu0 %v4509
        %4541 = vmatprep.subr.bf16.mxu0 0
        %4542 = vmatpush2.bf16.msra.mxu0 0
        %4543 = vmatprep.subr.bf16.mxu0 0
        %4544 = vmatpush2.bf16.msra.mxu0 0
        %4545 = vmatprep.subr.bf16.mxu0 0
        %4546 = vmatpush2.bf16.msra.mxu0 0
        %4547 = vmatprep.subr.bf16.mxu0 0
        %4548 = vmatpush2.bf16.msra.mxu0 0
        %4549 = vmatprep.subr.bf16.mxu0 0
        %4550 = vmatpush2.bf16.msra.mxu0 0
        %4551 = vmatprep.subr.bf16.mxu0 0
        %4552 = vmatpush2.bf16.msra.mxu0 0
        %4553 = vmatprep.subr.bf16.mxu0 0
        %4554 = vmatpush2.bf16.msra.mxu0 0
        %4555 = vmatprep.subr.bf16.mxu0 0
        %4556 = vmatpush2.bf16.msra.mxu0 0
        %4557 = vmatprep.mubr.bf16.mxu0 0
        %4558 = vmatmul.mubr.bf16.gmra.mxu0 %v4322
        %v4559 = vpop.f32.mrf.mxu0
        %v4560 = vadd.f32 %v4475, %v4559
        %v4561 = vpop.f32.mrf.mxu0
        %v4562 = vpop.f32.mrf.mxu0
        %v4563 = vpop.f32.mrf.mxu0
        %4564 = vdwg.mxu0
        %v4565 = vmax.f32 %v4560, 0.0
        %v4566 = vpack.c.bf16 %v4565, %v4565
        %s4567 = scalar_lea.vmem [#allocation32], 64
        %v4568 = vld [vmem:[%s4567] sm:$0xf]
        %v4569 = vld [vmem:[%s4567 + $0x4] sm:$0xf]
        %v4570 = vld [vmem:[%s4567 + $0x8] sm:$0xf]
        %v4571 = vld [vmem:[%s4567 + $0xc] sm:$0xf]
        %v4572 = vld [vmem:[%s4567 + $0x10] sm:$0xf]
        %v4573 = vld [vmem:[%s4567 + $0x14] sm:$0xf]
        %v4574 = vld [vmem:[%s4567 + $0x18] sm:$0xf]
        %v4575 = vld [vmem:[%s4567 + $0x1c] sm:$0xf]
        %v4576 = vld [vmem:[%s4567 + $0x20] sm:$0xf]
        %v4577 = vld [vmem:[%s4567 + $0x24] sm:$0xf]
        %v4578 = vld [vmem:[%s4567 + $0x28] sm:$0xf]
        %v4579 = vld [vmem:[%s4567 + $0x2c] sm:$0xf]
        %v4580 = vld [vmem:[%s4567 + $0x30] sm:$0xf]
        %v4581 = vld [vmem:[%s4567 + $0x34] sm:$0xf]
        %v4582 = vld [vmem:[%s4567 + $0x38] sm:$0xf]
        %v4583 = vld [vmem:[%s4567 + $0x3c] sm:$0xf]
        %v4600 = vunpack.c.l.b16 %v4568
        %v4601 = vunpack.c.l.b16 %v4569
        %v4602 = vunpack.c.l.b16 %v4570
        %v4603 = vunpack.c.l.b16 %v4571
        %v4604 = vunpack.c.l.b16 %v4572
        %v4605 = vunpack.c.l.b16 %v4573
        %v4606 = vunpack.c.l.b16 %v4574
        %v4607 = vunpack.c.l.b16 %v4575
        %v4608 = vunpack.c.l.b16 %v4576
        %v4609 = vunpack.c.l.b16 %v4577
        %v4610 = vunpack.c.l.b16 %v4578
        %v4611 = vunpack.c.l.b16 %v4579
        %v4612 = vunpack.c.l.b16 %v4580
        %v4613 = vunpack.c.l.b16 %v4581
        %v4614 = vunpack.c.l.b16 %v4582
        %v4615 = vunpack.c.l.b16 %v4583
        %v4616 = vpack.c.b16 %v4601, %v4600
        %v4617 = vpack.c.b16 %v4603, %v4602
        %v4618 = vpack.c.b16 %v4605, %v4604
        %v4619 = vpack.c.b16 %v4607, %v4606
        %v4620 = vpack.c.b16 %v4609, %v4608
        %v4621 = vpack.c.b16 %v4611, %v4610
        %v4622 = vpack.c.b16 %v4613, %v4612
        %v4623 = vpack.c.b16 %v4615, %v4614
        %4632 = vmatprep.subr.bf16.mxu0 0
        %4633 = vmatpush1.bf16.msra.mxu0 %v4623
        %4634 = vmatprep.subr.bf16.mxu0 0
        %4635 = vmatpush1.bf16.msra.mxu0 %v4622
        %4636 = vmatprep.subr.bf16.mxu0 0
        %4637 = vmatpush1.bf16.msra.mxu0 %v4621
        %4638 = vmatprep.subr.bf16.mxu0 0
        %4639 = vmatpush1.bf16.msra.mxu0 %v4620
        %4640 = vmatprep.subr.bf16.mxu0 0
        %4641 = vmatpush1.bf16.msra.mxu0 %v4619
        %4642 = vmatprep.subr.bf16.mxu0 0
        %4643 = vmatpush1.bf16.msra.mxu0 %v4618
        %4644 = vmatprep.subr.bf16.mxu0 0
        %4645 = vmatpush1.bf16.msra.mxu0 %v4617
        %4646 = vmatprep.subr.bf16.mxu0 0
        %4647 = vmatpush1.bf16.msra.mxu0 %v4616
        %4648 = vmatprep.subr.bf16.mxu0 0
        %4649 = vmatpush2.bf16.msra.mxu0 0
        %4650 = vmatprep.subr.bf16.mxu0 0
        %4651 = vmatpush2.bf16.msra.mxu0 0
        %4652 = vmatprep.subr.bf16.mxu0 0
        %4653 = vmatpush2.bf16.msra.mxu0 0
        %4654 = vmatprep.subr.bf16.mxu0 0
        %4655 = vmatpush2.bf16.msra.mxu0 0
        %4656 = vmatprep.subr.bf16.mxu0 0
        %4657 = vmatpush2.bf16.msra.mxu0 0
        %4658 = vmatprep.subr.bf16.mxu0 0
        %4659 = vmatpush2.bf16.msra.mxu0 0
        %4660 = vmatprep.subr.bf16.mxu0 0
        %4661 = vmatpush2.bf16.msra.mxu0 0
        %4662 = vmatprep.subr.bf16.mxu0 0
        %4663 = vmatpush2.bf16.msra.mxu0 0
        %4664 = vmatprep.mubr.bf16.mxu0 0
        %4665 = vmatmul.mubr.bf16.gmra.mxu0 %v4566
        %v4666 = vpop.f32.mrf.mxu0
        %v4667 = vadd.f32 0.0, %v4666
        %v4668 = vpop.f32.mrf.mxu0
        %v4669 = vpop.f32.mrf.mxu0
        %v4670 = vpop.f32.mrf.mxu0
        %4671 = vdwg.mxu0
        %v4688 = vunpack.c.l.b16 %v4436
        %v4689 = vunpack.c.l.b16 %v4437
        %v4690 = vunpack.c.l.b16 %v4438
        %v4691 = vunpack.c.l.b16 %v4439
        %v4692 = vunpack.c.l.b16 %v4440
        %v4693 = vunpack.c.l.b16 %v4441
        %v4694 = vunpack.c.l.b16 %v4442
        %v4695 = vunpack.c.l.b16 %v4443
        %v4696 = vunpack.c.l.b16 %v4444
        %v4697 = vunpack.c.l.b16 %v4445
        %v4698 = vunpack.c.l.b16 %v4446
        %v4699 = vunpack.c.l.b16 %v4447
        %v4700 = vunpack.c.l.b16 %v4448
        %v4701 = vunpack.c.l.b16 %v4449
        %v4702 = vunpack.c.l.b16 %v4450
        %v4703 = vunpack.c.l.b16 %v4451
        %v4704 = vpack.c.b16 %v4689, %v4688
        %v4705 = vpack.c.b16 %v4691, %v4690
        %v4706 = vpack.c.b16 %v4693, %v4692
        %v4707 = vpack.c.b16 %v4695, %v4694
        %v4708 = vpack.c.b16 %v4697, %v4696
        %v4709 = vpack.c.b16 %v4699, %v4698
        %v4710 = vpack.c.b16 %v4701, %v4700
        %v4711 = vpack.c.b16 %v4703, %v4702
        %4720 = vmatprep.subr.bf16.mxu0 0
        %4721 = vmatpush1.bf16.msra.mxu0 %v4711
        %4722 = vmatprep.subr.bf16.mxu0 0
        %4723 = vmatpush1.bf16.msra.mxu0 %v4710
        %4724 = vmatprep.subr.bf16.mxu0 0
        %4725 = vmatpush1.bf16.msra.mxu0 %v4709
        %4726 = vmatprep.subr.bf16.mxu0 0
        %4727 = vmatpush1.bf16.msra.mxu0 %v4708
        %4728 = vmatprep.subr.bf16.mxu0 0
        %4729 = vmatpush1.bf16.msra.mxu0 %v4707
        %4730 = vmatprep.subr.bf16.mxu0 0
        %4731 = vmatpush1.bf16.msra.mxu0 %v4706
        %4732 = vmatprep.subr.bf16.mxu0 0
        %4733 = vmatpush1.bf16.msra.mxu0 %v4705
        %4734 = vmatprep.subr.bf16.mxu0 0
        %4735 = vmatpush1.bf16.msra.mxu0 %v4704
        %4736 = vmatprep.subr.bf16.mxu0 0
        %4737 = vmatpush2.bf16.msra.mxu0 0
        %4738 = vmatprep.subr.bf16.mxu0 0
        %4739 = vmatpush2.bf16.msra.mxu0 0
        %4740 = vmatprep.subr.bf16.mxu0 0
        %4741 = vmatpush2.bf16.msra.mxu0 0
        %4742 = vmatprep.subr.bf16.mxu0 0
        %4743 = vmatpush2.bf16.msra.mxu0 0
        %4744 = vmatprep.subr.bf16.mxu0 0
        %4745 = vmatpush2.bf16.msra.mxu0 0
        %4746 = vmatprep.subr.bf16.mxu0 0
        %4747 = vmatpush2.bf16.msra.mxu0 0
        %4748 = vmatprep.subr.bf16.mxu0 0
        %4749 = vmatpush2.bf16.msra.mxu0 0
        %4750 = vmatprep.subr.bf16.mxu0 0
        %4751 = vmatpush2.bf16.msra.mxu0 0
        %4752 = vmatprep.mubr.bf16.mxu0 0
        %4753 = vmatmul.mubr.bf16.gmra.mxu0 %v4435
        %v4754 = vpop.f32.mrf.mxu0
        %v4755 = vadd.f32 %v4667, %v4754
        %v4756 = vpop.f32.mrf.mxu0
        %v4757 = vpop.f32.mrf.mxu0
        %v4758 = vpop.f32.mrf.mxu0
        %4759 = vdwg.mxu0
        %v4760 = vld [vmem:[#allocation34] sm:$0x1]
        %v4762 = vlaneseq
        %v4763 = vshrl.u32 %v4762, 7
        %v4764 = vsub.s32 0, %v4763
        %v4765 = vrot.slane %v4760, %v4764
        %v4767 = vadd.f32 %v4755, %v4765
        %v4768 = vlaneseq
        %v4769 = vshrl.u32 %v4768, 7
        %v4770 = vsub.s32 0, %v4769
        %v4771 = vrot.slane %v4185, %v4770
        %v4772 = vmul.f32 %v4771, %v4767
        %v4773 = vadd.f32 %v4084, %v4772
        %v4774 = vlaneseq
        %v4775 = vshrl.u32 %v4774, 7
        %v4776 = vsub.s32 0, %v4775
        %v4777 = vrot.slane %v4290, %v4776
        %v4778 = vadd.f32 %v4773, %v4777
        %4779 = vst [vmem:[%s1761] sm:$0xff] %v4778
        %s4780 = sand.u32 %s1004, 1
        %s4781 = scalar_lea.sflag [#allocation4], %s4780
        %s4782 = sand.u32 %s1004, 1
        %s4783 = smul.addr %s4782, 8
        %s4784 = scalar_lea.vmem [#allocation58], %s4783
        // Predicated region
        $region329: #{tpu_custom_call.1} parent=183 // pred_check
          %p4785 = pneg %p1014
        $region330: #{tpu_custom_call.1} parent=183 // pred_check_branch
          %4787 = sbr.rel (%p4785) target = $region332
        $region331: #{tpu_custom_call.1} parent=183 // pred_region
          %s4789 = ssub.s32 128, 128
          %4790 = vsyncadd %s4781, %s4789
          %s4791 = smul.addr %s120, 128
          %s4792 = scalar_lea.hbm %s83, %s4791
          %s4794 = sshll.u32 %s4784, 4
          %s4795 = int_to_ptr.vmem [resolvable:$true] %s4794
          %4797 = dma.vmem_to_hbm [thread:$0]  %s4795, 128, %s4792, %s4781
        $region332: #{tpu_custom_call.1} parent=183 // pred_fallthru
          _
      $region184: #{tpu_custom_call.1} parent=5 // pred_fallthru
        _
      %p4798 = scmp.le.s32.totalorder 2, %s115
      // Predicated region
      $region333: #{tpu_custom_call.1} parent=5 // pred_check
        %p4799 = pneg %p4798
      $region334: #{tpu_custom_call.1} parent=5 // pred_check_branch
        %4801 = sbr.rel (%p4799) target = $region336
      $region335: #{tpu_custom_call.1} parent=5 // pred_region
        %s4802 = ssub.s32 %s115, 2
        // Predicated region
        $region337: #{tpu_custom_call.1} parent=335 // pred_check
          %p4803 = pneg %p1020
        $region338: #{tpu_custom_call.1} parent=335 // pred_check_branch
          %4805 = sbr.rel (%p4803) target = $region340
        $region339: #{tpu_custom_call.1} parent=335 // pred_region
          %s4806 = sand.u32 %s1005, 1
          %s4807 = scalar_lea.sflag [#allocation4], %s4806
          %s4808 = sand.u32 %s1005, 1
          %s4809 = smul.addr %s4808, 8
          %s4810 = scalar_lea.vmem [#allocation58], %s4809
          %4811 = dma.done %s4807, 128
        $region340: #{tpu_custom_call.1} parent=335 // pred_fallthru
          _
      $region336: #{tpu_custom_call.1} parent=5 // pred_fallthru
        _
    $region6: #{tpu_custom_call.1} parent=1 // loop_footer
      %s119 = sadd.s32 1, %s115
    $region7: #{tpu_custom_call.1} parent=1 // loop_footer_branch
      %114 = sbr.rel target = $region3
    $region8: #{tpu_custom_call.1} parent=1 // loop_exit
      _
    %4812 = vsyncpa [#allocation3], 1
    %s4813 = scalar_lea.sflag [#allocation3], 1
    %4814 = vsyncpa %s4813, 1
    %4815 = vsyncpa [#allocation6], 1
    %s4816 = scalar_lea.sflag [#allocation6], 1
    %4817 = vsyncpa %s4816, 1
    %4818 = vsyncpa [#allocation9], 1
    %4819 = vsyncpa [#allocation12], 1
    %4820 = vsyncpa [#allocation15], 1
    %4821 = vsyncpa [#allocation18], 1
    %4822 = vsyncpa [#allocation21], 1
    %4823 = vsyncpa [#allocation24], 1
    %4824 = vsyncpa [#allocation27], 1
    %4825 = vsyncpa [#allocation30], 1
    %4826 = vsyncpa [#allocation33], 1
    %4827 = vsyncpa [#allocation36], 1
    %4828 = vsyncpa [#allocation39], 1
    %4829 = vsyncpa [#allocation42], 1
    %4830 = vsyncpa [#allocation45], 1
    %4831 = vsyncpa [#allocation48], 1
    %4832 = vsyncpa [#allocation51], 1
    %4833 = vsyncpa [#allocation54], 1
    %4834 = vsyncpa [#allocation57], 1
    %4835 = vsyncpa [#allocation4], 1
    %s4836 = scalar_lea.sflag [#allocation4], 1
    %4837 = vsyncpa %s4836, 1

</llo_original>
